<compile_context>
chip_gen: v7x
topology: tpu7x:2x2x1
jax: 0.10.0
libtpu: 0.0.40
codegen_flags: <defaults>
</compile_context>

<pallas_src>
import functools

import jax
import jax.numpy as jnp
import numpy as np
from jax.experimental import pallas as pl
from jax.experimental.pallas import tpu as pltpu

RC_IN = 4032  # fixed by nn.Linear(4032, hidden_size * 2) in the module


def _round_up(x, m):
    return (x + m - 1) // m * m


def _decoder_kernel(x_ref, h_ref, c_ref, enc_ref, rc_ref,
                    wih0_ref, whh0_ref, b0_ref,
                    wih1_ref, whh1_ref, b1_ref,
                    wout_h_ref, wout_c_ref, wrc_fold_ref, bout_ref,
                    out_ref, h_out_ref, c_out_ref, attn_ref,
                    h_sc, c_sc,
                    *, seq_len, hidden_size):
    f32 = jnp.float32
    bf16 = jnp.bfloat16
    H = hidden_size
    t = pl.program_id(0)

    # LSTM state is carried across the T decode steps in VMEM scratch.
    @pl.when(t == 0)
    def _():
        h_sc[...] = h_ref[...]
        c_sc[...] = c_ref[...]

    # ---- embedding linear is pre-folded into layer-0 input weights ----
    x_bf = x_ref[0].astype(bf16)                                    # (B, O)

    # ---- 2-layer LSTM, one decode step; fused 4H-wide gate matmuls ----
    def lstm_step(xin_bf, h_prev, c_prev, wih_ref, whh_ref, b_ref):
        pre = (jnp.dot(xin_bf, wih_ref[...], preferred_element_type=f32)
               + jnp.dot(h_prev.astype(bf16), whh_ref[...], preferred_element_type=f32)
               + b_ref[...])                                        # (B, 4H)
        sg = jax.nn.sigmoid(pre)        # whole-width activations; gates extracted below
        th = jnp.tanh(pre)
        i = sg[:, 0:H]                  # PyTorch gate order i, f, g, o
        f = sg[:, H:2 * H]
        g = th[:, 2 * H:3 * H]
        o = sg[:, 3 * H:4 * H]
        c_new = f * c_prev + i * g
        h_new = o * jnp.tanh(c_new)
        return h_new, c_new

    h0n, c0n = lstm_step(x_bf, h_sc[0], c_sc[0], wih0_ref, whh0_ref, b0_ref)
    h1n, c1n = lstm_step(h0n.astype(bf16), h_sc[1], c_sc[1], wih1_ref, whh1_ref, b1_ref)
    h_sc[0] = h0n
    h_sc[1] = h1n
    c_sc[0] = c0n
    c_sc[1] = c1n

    # ---- dot-product (Luong) attention + masked softmax, on the MXU ----
    enc_bf = enc_ref[...]                                           # (B, S_pad, H) bf16
    q = h1n.astype(bf16)[:, None, :]                                # (B, 1, H)
    scores = jnp.einsum('bqh,bsh->bqs', q, enc_bf,
                        preferred_element_type=f32)                 # (B, 1, S_pad)
    s_pad = scores.shape[-1]
    if seq_len < s_pad:                                             # mask the zero padding
        ids = jax.lax.broadcasted_iota(jnp.int32, scores.shape, 2)
        scores = jnp.where(ids < seq_len, scores, -1e30)
    m = jnp.max(scores, axis=-1, keepdims=True)
    e = jnp.exp(scores - m)
    attn = e * pl.reciprocal(jnp.sum(e, axis=-1, keepdims=True), approx=True)
    attn_ref[0] = attn[:, 0, :].astype(attn_ref.dtype)              # bf16 writeback
    context = jnp.einsum('bqs,bsh->bqh', attn.astype(bf16), enc_bf,
                         preferred_element_type=f32)[:, 0, :]       # (B, H)

    # ---- output linear over cat([lstm_out, context, rc_info], -1) ----
    # rc linear pre-folded into wrc_fold / bout; the concat is a sum of partial matmuls.
    out = (jnp.dot(h1n.astype(bf16), wout_h_ref[...], preferred_element_type=f32)
           + jnp.dot(context.astype(bf16), wout_c_ref[...], preferred_element_type=f32)
           + jnp.dot(rc_ref[0], wrc_fold_ref[...], preferred_element_type=f32)
           + bout_ref[...])
    out_ref[0] = out

    # Write the carried LSTM state back once, at the last decode step.
    @pl.when(t == pl.num_programs(0) - 1)
    def _():
        h_out_ref[...] = h_sc[...]
        c_out_ref[...] = c_sc[...]


def prepare_params(params, *, hidden_size):
    """Fold embedding->LSTM0 and rc->output linears, pad the rc contraction to a
    lane multiple, cast all matmul weights to bf16 (biases stay f32)."""
    H = hidden_size
    bf16 = jnp.bfloat16
    rc_pad = _round_up(RC_IN, 128)

    # rc linear folded through the output linear (dropout2 = identity in eval).
    wout = params['wout']                       # (4H, O): [lstm_out | context | rc]
    wout_h, wout_c, wout_rc = wout[:H], wout[H:2 * H], wout[2 * H:]
    wrc_fold = params['wrc'] @ wout_rc          # (4032, O)
    bout_fold = params['bout'] + params['brc'] @ wout_rc

    # embedding linear folded through LSTM layer-0 input weights (dropout1 = identity).
    wih0_fold = params['w_emb'] @ params['wih0']                    # (O, 4H)
    b0_fold = params['b0'] + params['b_emb'] @ params['wih0']       # (1, 4H)

    return dict(
        wih0=wih0_fold.astype(bf16),
        whh0=params['whh0'].astype(bf16),
        b0=b0_fold,
        wih1=params['wih1'].astype(bf16),
        whh1=params['whh1'].astype(bf16),
        b1=params['b1'],
        wout_h=wout_h.astype(bf16),
        wout_c=wout_c.astype(bf16),
        wrc_fold=jnp.pad(wrc_fold, ((0, rc_pad - RC_IN), (0, 0))).astype(bf16),
        bout=bout_fold,
    )


@jax.jit
def decoder_forward(prepped, inputs, hidden, encoder_outputs, rc_inputs):
    """Runs T chained decoder steps (== T sequential module forwards with the
    hidden state carried) in one resident-weight pallas_call."""
    h, c = hidden
    B, T, O = inputs.shape
    _, S, H = encoder_outputs.shape
    rc_pad = prepped['wrc_fold'].shape[0]
    s_pad = _round_up(S, 128)

    # Time-major per-step streams; pad + bf16 cast happen once per SEQUENCE here,
    # not once per decode step.
    x_t = jnp.transpose(inputs, (1, 0, 2))                          # (T, B, O)
    rc_t = jnp.pad(jnp.transpose(rc_inputs, (1, 0, 2)),
                   ((0, 0), (0, 0), (0, rc_pad - RC_IN))).astype(jnp.bfloat16)
    enc_p = jnp.pad(encoder_outputs,
                    ((0, 0), (0, s_pad - S), (0, 0))).astype(jnp.bfloat16)

    def resident2(arr):
        return pl.BlockSpec(arr.shape, lambda t: (0, 0))

    def resident3(shape):
        return pl.BlockSpec(shape, lambda t: (0, 0, 0))

    kernel = functools.partial(_decoder_kernel, seq_len=S, hidden_size=H)
    grid_spec = pltpu.PrefetchScalarGridSpec(
        num_scalar_prefetch=0,
        grid=(T,),
        in_specs=[
            pl.BlockSpec((1, B, O), lambda t: (t, 0, 0)),           # x, per step
            resident3((2, B, H)),                                   # h0 (read at t==0)
            resident3((2, B, H)),                                   # c0 (read at t==0)
            resident3((B, s_pad, H)),                               # encoder, resident
            pl.BlockSpec((1, B, rc_pad), lambda t: (t, 0, 0)),      # rc, per step
            resident2(prepped['wih0']),                             # weights: resident
            resident2(prepped['whh0']),
            resident2(prepped['b0']),
            resident2(prepped['wih1']),
            resident2(prepped['whh1']),
            resident2(prepped['b1']),
            resident2(prepped['wout_h']),
            resident2(prepped['wout_c']),
            resident2(prepped['wrc_fold']),
            resident2(prepped['bout']),
        ],
        out_specs=[
            pl.BlockSpec((1, B, O), lambda t: (t, 0, 0)),           # out, per step
            resident3((2, B, H)),                                   # h_out (last step)
            resident3((2, B, H)),                                   # c_out (last step)
            pl.BlockSpec((1, B, s_pad), lambda t: (t, 0, 0)),       # attn, per step
        ],
        scratch_shapes=[pltpu.VMEM((2, B, H), jnp.float32),         # carried h
                        pltpu.VMEM((2, B, H), jnp.float32)],        # carried c
    )

    out_t, h_out, c_out, attn_t = pl.pallas_call(
        kernel,
        out_shape=(
            jax.ShapeDtypeStruct((T, B, O), jnp.float32),
            jax.ShapeDtypeStruct((2, B, H), jnp.float32),
            jax.ShapeDtypeStruct((2, B, H), jnp.float32),
            jax.ShapeDtypeStruct((T, B, s_pad), jnp.bfloat16),
        ),
        grid_spec=grid_spec,
        compiler_params=pltpu.CompilerParams(
            dimension_semantics=("arbitrary",),      # hidden state carried across steps
            vmem_limit_bytes=32 * 1024 * 1024,       # fits v5e/v6e/v7x (64 MiB/TC) budgets
        ),
    )(x_t, h, c, enc_p, rc_t,
      prepped['wih0'], prepped['whh0'], prepped['b0'],
      prepped['wih1'], prepped['whh1'], prepped['b1'],
      prepped['wout_h'], prepped['wout_c'], prepped['wrc_fold'], prepped['bout'])

    out = jnp.transpose(out_t, (1, 0, 2))                           # (B, T, O)
    attn = jnp.transpose(attn_t[:, :, :S].astype(jnp.float32), (1, 0, 2))  # (B, T, S)
    return out, (h_out, c_out), attn


def decoder_reference(params, inputs, hidden, encoder_outputs, rc_inputs):
    """Pure-JAX f32 reference: T sequential single-step module forwards
    with the original (unfolded) math, for validation."""
    h, c = hidden
    B, T, O = inputs.shape
    H = h.shape[-1]

    def lstm_step(xin, hp, cp, wih, whh, b):
        g = xin @ wih + hp @ whh + b
        i, f, gg, o = (jax.nn.sigmoid(g[:, :H]), jax.nn.sigmoid(g[:, H:2 * H]),
                       jnp.tanh(g[:, 2 * H:3 * H]), jax.nn.sigmoid(g[:, 3 * H:]))
        cn = f * cp + i * gg
        return o * jnp.tanh(cn), cn

    outs, attns = [], []
    for t in range(T):
        x = inputs[:, t, :]
        emb = x @ params['w_emb'] + params['b_emb']
        h0n, c0n = lstm_step(emb, h[0], c[0], params['wih0'], params['whh0'], params['b0'])
        h1n, c1n = lstm_step(h0n, h[1], c[1], params['wih1'], params['whh1'], params['b1'])
        h, c = jnp.stack([h0n, h1n]), jnp.stack([c0n, c1n])
        scores = jnp.einsum('bsh,bh->bs', encoder_outputs, h1n)
        attn = jax.nn.softmax(scores, axis=1)
        context = jnp.einsum('bs,bsh->bh', attn, encoder_outputs)
        rc = rc_inputs[:, t, :] @ params['wrc'] + params['brc']
        combine = jnp.concatenate([h1n, context, rc], axis=-1)
        outs.append(combine @ params['wout'] + params['bout'])
        attns.append(attn)
    return jnp.stack(outs, axis=1), (h, c), jnp.stack(attns, axis=1)


def init_params(key, H, O):
    ks = jax.random.split(key, 12)

    def u(k, shape, scale=0.1):
        return jax.random.uniform(k, shape, jnp.float32, -1.0, 1.0) * scale

    return dict(
        w_emb=u(ks[0], (O, H)),          b_emb=u(ks[1], (1, H)),
        wih0=u(ks[2], (H, 4 * H)),       whh0=u(ks[3], (H, 4 * H)),  b0=u(ks[4], (1, 4 * H)),
        wih1=u(ks[5], (H, 4 * H)),       whh1=u(ks[6], (H, 4 * H)),  b1=u(ks[7], (1, 4 * H)),
        wrc=u(ks[8], (RC_IN, 2 * H), 0.02), brc=u(ks[9], (1, 2 * H)),
        wout=u(ks[10], (4 * H, O)),      bout=u(ks[11], (1, O)),
    )


if __name__ == "__main__":
    # batch, hidden_size, output_size, seq_length, decode steps
    B, H, O, S, T = 2, 32, 5, 8, 4
    key = jax.random.PRNGKey(0)
    kp, k1, k2, k3, k4, k5 = jax.random.split(key, 6)

    params = init_params(kp, H, O)
    inputs = jax.random.normal(k1, (B, T, O), jnp.float32)       # T teacher-forced steps
    h0 = jax.random.normal(k2, (2, B, H), jnp.float32)
    c0 = jax.random.normal(k3, (2, B, H), jnp.float32)
    enc = jax.random.normal(k4, (B, S, H), jnp.float32)
    rcin = jax.random.normal(k5, (B, T, RC_IN), jnp.float32)

    r_out, (r_h, r_c), r_attn = decoder_reference(params, inputs, (h0, c0), enc, rcin)
    r_out, r_h, r_c, r_attn = map(np.asarray, (r_out, r_h, r_c, r_attn))

    prepped = prepare_params(params, hidden_size=H)
    out, (hn, cn), attn = decoder_forward(prepped, inputs, (h0, c0), enc, rcin)
    jax.block_until_ready((out, hn, cn, attn))

    # bf16 weights/activations (and bf16 attn writeback) => loosened tolerances
    # vs the pure-f32 reference.
    tol = dict(rtol=2e-2, atol=2e-2)
    np.testing.assert_allclose(np.asarray(out), r_out, **tol)
    np.testing.assert_allclose(np.asarray(hn), r_h, **tol)
    np.testing.assert_allclose(np.asarray(cn), r_c, **tol)
    np.testing.assert_allclose(np.asarray(attn), r_attn, **tol)

    print("KERNEL_OK")
</pallas_src>

<mosaic_0001>
module attributes {stable_mosaic.version = 11 : i64} {
  func.func @_decoder_kernel(%arg0: i32, %arg1: memref<1x2x5xf32, #tpu.memory_space<vmem>>, %arg2: memref<2x2x32xf32, #tpu.memory_space<vmem>>, %arg3: memref<2x2x32xf32, #tpu.memory_space<vmem>>, %arg4: memref<2x128x32xbf16, #tpu.memory_space<vmem>>, %arg5: memref<1x2x4096xbf16, #tpu.memory_space<vmem>>, %arg6: memref<5x128xbf16, #tpu.memory_space<vmem>>, %arg7: memref<32x128xbf16, #tpu.memory_space<vmem>>, %arg8: memref<1x128xf32, #tpu.memory_space<vmem>>, %arg9: memref<32x128xbf16, #tpu.memory_space<vmem>>, %arg10: memref<32x128xbf16, #tpu.memory_space<vmem>>, %arg11: memref<1x128xf32, #tpu.memory_space<vmem>>, %arg12: memref<32x5xbf16, #tpu.memory_space<vmem>>, %arg13: memref<32x5xbf16, #tpu.memory_space<vmem>>, %arg14: memref<4096x5xbf16, #tpu.memory_space<vmem>>, %arg15: memref<1x5xf32, #tpu.memory_space<vmem>>, %arg16: memref<1x2x5xf32, #tpu.memory_space<vmem>>, %arg17: memref<2x2x32xf32, #tpu.memory_space<vmem>>, %arg18: memref<2x2x32xf32, #tpu.memory_space<vmem>>, %arg19: memref<1x2x128xbf16, #tpu.memory_space<vmem>>, %arg20: memref<2x2x32xf32, #tpu.memory_space<vmem>>, %arg21: memref<2x2x32xf32, #tpu.memory_space<vmem>>) attributes {dimension_semantics = [#tpu.dimension_semantics<arbitrary>], iteration_bounds = array<i64: 4>, scalar_prefetch = 0 : i64, scratch_operands = 2 : i64, tpu.core_type = #tpu.core_type<tc>, window_params = [{transform_indices = @transform_0, window_bounds = array<i64: 1, 2, 5>}, {pipeline_mode = #tpu.pipeline_mode<synchronous>, transform_indices = @transform_1, window_bounds = array<i64: 2, 2, 32>}, {pipeline_mode = #tpu.pipeline_mode<synchronous>, transform_indices = @transform_2, window_bounds = array<i64: 2, 2, 32>}, {pipeline_mode = #tpu.pipeline_mode<synchronous>, transform_indices = @transform_3, window_bounds = array<i64: 2, 128, 32>}, {transform_indices = @transform_4, window_bounds = array<i64: 1, 2, 4096>}, {pipeline_mode = #tpu.pipeline_mode<synchronous>, transform_indices = @transform_5, window_bounds = array<i64: 5, 128>}, {pipeline_mode = #tpu.pipeline_mode<synchronous>, transform_indices = @transform_6, window_bounds = array<i64: 32, 128>}, {pipeline_mode = #tpu.pipeline_mode<synchronous>, transform_indices = @transform_7, window_bounds = array<i64: 1, 128>}, {pipeline_mode = #tpu.pipeline_mode<synchronous>, transform_indices = @transform_8, window_bounds = array<i64: 32, 128>}, {pipeline_mode = #tpu.pipeline_mode<synchronous>, transform_indices = @transform_9, window_bounds = array<i64: 32, 128>}, {pipeline_mode = #tpu.pipeline_mode<synchronous>, transform_indices = @transform_10, window_bounds = array<i64: 1, 128>}, {pipeline_mode = #tpu.pipeline_mode<synchronous>, transform_indices = @transform_11, window_bounds = array<i64: 32, 5>}, {pipeline_mode = #tpu.pipeline_mode<synchronous>, transform_indices = @transform_12, window_bounds = array<i64: 32, 5>}, {pipeline_mode = #tpu.pipeline_mode<synchronous>, transform_indices = @transform_13, window_bounds = array<i64: 4096, 5>}, {pipeline_mode = #tpu.pipeline_mode<synchronous>, transform_indices = @transform_14, window_bounds = array<i64: 1, 5>}, {transform_indices = @transform_15, window_bounds = array<i64: 1, 2, 5>}, {pipeline_mode = #tpu.pipeline_mode<synchronous>, transform_indices = @transform_16, window_bounds = array<i64: 2, 2, 32>}, {pipeline_mode = #tpu.pipeline_mode<synchronous>, transform_indices = @transform_17, window_bounds = array<i64: 2, 2, 32>}, {transform_indices = @transform_18, window_bounds = array<i64: 1, 2, 128>}]} {
    %c0_i32 = arith.constant 0 : i32
    %0 = arith.cmpi eq, %arg0, %c0_i32 : i32
    %1 = arith.extui %0 : i1 to i32
    %c0_i32_0 = arith.constant 0 : i32
    %2 = arith.cmpi ne, %1, %c0_i32_0 : i32
    scf.if %2 {
      %c0_72 = arith.constant 0 : index
      %c0_73 = arith.constant 0 : index
      %c0_74 = arith.constant 0 : index
      %123 = vector.load %arg2[%c0_72, %c0_73, %c0_74] : memref<2x2x32xf32, #tpu.memory_space<vmem>>, vector<2x2x32xf32>
      %c0_75 = arith.constant 0 : index
      %c0_76 = arith.constant 0 : index
      %c0_77 = arith.constant 0 : index
      %124 = vector.load %arg20[%c0_75, %c0_76, %c0_77] : memref<2x2x32xf32, #tpu.memory_space<vmem>>, vector<2x2x32xf32>
      tpu.vector_store %arg20[%c0_75, %c0_76, %c0_77], %123 {strides = array<i32>} : memref<2x2x32xf32, #tpu.memory_space<vmem>>, vector<2x2x32xf32>,
      %c0_78 = arith.constant 0 : index
      %c0_79 = arith.constant 0 : index
      %c0_80 = arith.constant 0 : index
      %125 = vector.load %arg3[%c0_78, %c0_79, %c0_80] : memref<2x2x32xf32, #tpu.memory_space<vmem>>, vector<2x2x32xf32>
      %c0_81 = arith.constant 0 : index
      %c0_82 = arith.constant 0 : index
      %c0_83 = arith.constant 0 : index
      %126 = vector.load %arg21[%c0_81, %c0_82, %c0_83] : memref<2x2x32xf32, #tpu.memory_space<vmem>>, vector<2x2x32xf32>
      tpu.vector_store %arg21[%c0_81, %c0_82, %c0_83], %125 {strides = array<i32>} : memref<2x2x32xf32, #tpu.memory_space<vmem>>, vector<2x2x32xf32>,
    } else {
    }
    %c0 = arith.constant 0 : index
    %c0_1 = arith.constant 0 : index
    %c0_2 = arith.constant 0 : index
    %3 = vector.load %arg1[%c0, %c0_1, %c0_2] : memref<1x2x5xf32, #tpu.memory_space<vmem>>, vector<1x2x5xf32>
    %4 = vector.shape_cast %3 : vector<1x2x5xf32> to vector<2x5xf32>
    %5 = arith.truncf %4 : vector<2x5xf32> to vector<2x5xbf16>
    %c0_3 = arith.constant 0 : index
    %c0_4 = arith.constant 0 : index
    %c0_5 = arith.constant 0 : index
    %6 = vector.load %arg20[%c0_3, %c0_4, %c0_5] : memref<2x2x32xf32, #tpu.memory_space<vmem>>, vector<1x2x32xf32>
    %7 = vector.shape_cast %6 : vector<1x2x32xf32> to vector<2x32xf32>
    %c0_6 = arith.constant 0 : index
    %c0_7 = arith.constant 0 : index
    %c0_8 = arith.constant 0 : index
    %8 = vector.load %arg21[%c0_6, %c0_7, %c0_8] : memref<2x2x32xf32, #tpu.memory_space<vmem>>, vector<1x2x32xf32>
    %9 = vector.shape_cast %8 : vector<1x2x32xf32> to vector<2x32xf32>
    %c0_9 = arith.constant 0 : index
    %c0_10 = arith.constant 0 : index
    %10 = vector.load %arg6[%c0_9, %c0_10] : memref<5x128xbf16, #tpu.memory_space<vmem>>, vector<5x128xbf16>
    %cst = arith.constant dense<0.000000e+00> : vector<2x128xf32>
    %11 = tpu.matmul %5, %10, %cst {dimension_numbers = #tpu.dot_dimension_numbers<[1], [0], [0], [1], [0, 0, 1, 1], [], []>} : vector<2x5xbf16>, vector<5x128xbf16>, vector<2x128xf32> -> vector<2x128xf32>
    %12 = arith.truncf %7 : vector<2x32xf32> to vector<2x32xbf16>
    %c0_11 = arith.constant 0 : index
    %c0_12 = arith.constant 0 : index
    %13 = vector.load %arg7[%c0_11, %c0_12] : memref<32x128xbf16, #tpu.memory_space<vmem>>, vector<32x128xbf16>
    %cst_13 = arith.constant dense<0.000000e+00> : vector<2x128xf32>
    %14 = tpu.matmul %12, %13, %cst_13 {dimension_numbers = #tpu.dot_dimension_numbers<[1], [0], [0], [1], [0, 0, 1, 1], [], []>} : vector<2x32xbf16>, vector<32x128xbf16>, vector<2x128xf32> -> vector<2x128xf32>
    %15 = arith.addf %11, %14 : vector<2x128xf32>
    %c0_14 = arith.constant 0 : index
    %c0_15 = arith.constant 0 : index
    %16 = vector.load %arg8[%c0_14, %c0_15] : memref<1x128xf32, #tpu.memory_space<vmem>>, vector<1x128xf32>
    %17 = vector.broadcast %16 : vector<1x128xf32> to vector<2x128xf32>
    %18 = arith.addf %15, %17 : vector<2x128xf32>
    %19 = arith.negf %18 : vector<2x128xf32>
    %20 = math.exp %19 : vector<2x128xf32>
    %cst_16 = arith.constant 1.000000e+00 : f32
    %21 = vector.broadcast %cst_16 : f32 to vector<2x128xf32>
    %22 = arith.addf %21, %20 : vector<2x128xf32>
    %23 = arith.divf %21, %22 : vector<2x128xf32>
    %24 = math.tanh %18 : vector<2x128xf32>
    %25 = vector.extract_strided_slice %23 {offsets = [0, 0], sizes = [2, 32], strides = [1, 1]} : vector<2x128xf32> to vector<2x32xf32>
    %26 = vector.extract_strided_slice %23 {offsets = [0, 32], sizes = [2, 32], strides = [1, 1]} : vector<2x128xf32> to vector<2x32xf32>
    %27 = vector.extract_strided_slice %24 {offsets = [0, 64], sizes = [2, 32], strides = [1, 1]} : vector<2x128xf32> to vector<2x32xf32>
    %28 = vector.extract_strided_slice %23 {offsets = [0, 96], sizes = [2, 32], strides = [1, 1]} : vector<2x128xf32> to vector<2x32xf32>
    %29 = arith.mulf %26, %9 : vector<2x32xf32>
    %30 = arith.mulf %25, %27 : vector<2x32xf32>
    %31 = arith.addf %29, %30 : vector<2x32xf32>
    %32 = math.tanh %31 : vector<2x32xf32>
    %33 = arith.mulf %28, %32 : vector<2x32xf32>
    %34 = arith.truncf %33 : vector<2x32xf32> to vector<2x32xbf16>
    %c1 = arith.constant 1 : index
    %c0_17 = arith.constant 0 : index
    %c0_18 = arith.constant 0 : index
    %35 = vector.load %arg20[%c1, %c0_17, %c0_18] : memref<2x2x32xf32, #tpu.memory_space<vmem>>, vector<1x2x32xf32>
    %36 = vector.shape_cast %35 : vector<1x2x32xf32> to vector<2x32xf32>
    %c1_19 = arith.constant 1 : index
    %c0_20 = arith.constant 0 : index
    %c0_21 = arith.constant 0 : index
    %37 = vector.load %arg21[%c1_19, %c0_20, %c0_21] : memref<2x2x32xf32, #tpu.memory_space<vmem>>, vector<1x2x32xf32>
    %38 = vector.shape_cast %37 : vector<1x2x32xf32> to vector<2x32xf32>
    %c0_22 = arith.constant 0 : index
    %c0_23 = arith.constant 0 : index
    %39 = vector.load %arg9[%c0_22, %c0_23] : memref<32x128xbf16, #tpu.memory_space<vmem>>, vector<32x128xbf16>
    %cst_24 = arith.constant dense<0.000000e+00> : vector<2x128xf32>
    %40 = tpu.matmul %34, %39, %cst_24 {dimension_numbers = #tpu.dot_dimension_numbers<[1], [0], [0], [1], [0, 0, 1, 1], [], []>} : vector<2x32xbf16>, vector<32x128xbf16>, vector<2x128xf32> -> vector<2x128xf32>
    %41 = arith.truncf %36 : vector<2x32xf32> to vector<2x32xbf16>
    %c0_25 = arith.constant 0 : index
    %c0_26 = arith.constant 0 : index
    %42 = vector.load %arg10[%c0_25, %c0_26] : memref<32x128xbf16, #tpu.memory_space<vmem>>, vector<32x128xbf16>
    %cst_27 = arith.constant dense<0.000000e+00> : vector<2x128xf32>
    %43 = tpu.matmul %41, %42, %cst_27 {dimension_numbers = #tpu.dot_dimension_numbers<[1], [0], [0], [1], [0, 0, 1, 1], [], []>} : vector<2x32xbf16>, vector<32x128xbf16>, vector<2x128xf32> -> vector<2x128xf32>
    %44 = arith.addf %40, %43 : vector<2x128xf32>
    %c0_28 = arith.constant 0 : index
    %c0_29 = arith.constant 0 : index
    %45 = vector.load %arg11[%c0_28, %c0_29] : memref<1x128xf32, #tpu.memory_space<vmem>>, vector<1x128xf32>
    %46 = vector.broadcast %45 : vector<1x128xf32> to vector<2x128xf32>
    %47 = arith.addf %44, %46 : vector<2x128xf32>
    %48 = arith.negf %47 : vector<2x128xf32>
    %49 = math.exp %48 : vector<2x128xf32>
    %cst_30 = arith.constant 1.000000e+00 : f32
    %50 = vector.broadcast %cst_30 : f32 to vector<2x128xf32>
    %51 = arith.addf %50, %49 : vector<2x128xf32>
    %52 = arith.divf %50, %51 : vector<2x128xf32>
    %53 = math.tanh %47 : vector<2x128xf32>
    %54 = vector.extract_strided_slice %52 {offsets = [0, 0], sizes = [2, 32], strides = [1, 1]} : vector<2x128xf32> to vector<2x32xf32>
    %55 = vector.extract_strided_slice %52 {offsets = [0, 32], sizes = [2, 32], strides = [1, 1]} : vector<2x128xf32> to vector<2x32xf32>
    %56 = vector.extract_strided_slice %53 {offsets = [0, 64], sizes = [2, 32], strides = [1, 1]} : vector<2x128xf32> to vector<2x32xf32>
    %57 = vector.extract_strided_slice %52 {offsets = [0, 96], sizes = [2, 32], strides = [1, 1]} : vector<2x128xf32> to vector<2x32xf32>
    %58 = arith.mulf %55, %38 : vector<2x32xf32>
    %59 = arith.mulf %54, %56 : vector<2x32xf32>
    %60 = arith.addf %58, %59 : vector<2x32xf32>
    %61 = math.tanh %60 : vector<2x32xf32>
    %62 = arith.mulf %57, %61 : vector<2x32xf32>
    %c0_31 = arith.constant 0 : index
    %c0_32 = arith.constant 0 : index
    %c0_33 = arith.constant 0 : index
    %63 = vector.load %arg20[%c0_31, %c0_32, %c0_33] : memref<2x2x32xf32, #tpu.memory_space<vmem>>, vector<1x2x32xf32>
    %64 = vector.shape_cast %63 : vector<1x2x32xf32> to vector<2x32xf32>
    %65 = vector.shape_cast %33 : vector<2x32xf32> to vector<1x2x32xf32>
    tpu.vector_store %arg20[%c0_31, %c0_32, %c0_33], %65 {strides = array<i32>} : memref<2x2x32xf32, #tpu.memory_space<vmem>>, vector<1x2x32xf32>,
    %c1_34 = arith.constant 1 : index
    %c0_35 = arith.constant 0 : index
    %c0_36 = arith.constant 0 : index
    %66 = vector.load %arg20[%c1_34, %c0_35, %c0_36] : memref<2x2x32xf32, #tpu.memory_space<vmem>>, vector<1x2x32xf32>
    %67 = vector.shape_cast %66 : vector<1x2x32xf32> to vector<2x32xf32>
    %68 = vector.shape_cast %62 : vector<2x32xf32> to vector<1x2x32xf32>
    tpu.vector_store %arg20[%c1_34, %c0_35, %c0_36], %68 {strides = array<i32>} : memref<2x2x32xf32, #tpu.memory_space<vmem>>, vector<1x2x32xf32>,
    %c0_37 = arith.constant 0 : index
    %c0_38 = arith.constant 0 : index
    %c0_39 = arith.constant 0 : index
    %69 = vector.load %arg21[%c0_37, %c0_38, %c0_39] : memref<2x2x32xf32, #tpu.memory_space<vmem>>, vector<1x2x32xf32>
    %70 = vector.shape_cast %69 : vector<1x2x32xf32> to vector<2x32xf32>
    %71 = vector.shape_cast %31 : vector<2x32xf32> to vector<1x2x32xf32>
    tpu.vector_store %arg21[%c0_37, %c0_38, %c0_39], %71 {strides = array<i32>} : memref<2x2x32xf32, #tpu.memory_space<vmem>>, vector<1x2x32xf32>,
    %c1_40 = arith.constant 1 : index
    %c0_41 = arith.constant 0 : index
    %c0_42 = arith.constant 0 : index
    %72 = vector.load %arg21[%c1_40, %c0_41, %c0_42] : memref<2x2x32xf32, #tpu.memory_space<vmem>>, vector<1x2x32xf32>
    %73 = vector.shape_cast %72 : vector<1x2x32xf32> to vector<2x32xf32>
    %74 = vector.shape_cast %60 : vector<2x32xf32> to vector<1x2x32xf32>
    tpu.vector_store %arg21[%c1_40, %c0_41, %c0_42], %74 {strides = array<i32>} : memref<2x2x32xf32, #tpu.memory_space<vmem>>, vector<1x2x32xf32>,
    %c0_43 = arith.constant 0 : index
    %c0_44 = arith.constant 0 : index
    %c0_45 = arith.constant 0 : index
    %75 = vector.load %arg4[%c0_43, %c0_44, %c0_45] : memref<2x128x32xbf16, #tpu.memory_space<vmem>>, vector<2x128x32xbf16>
    %76 = arith.truncf %62 : vector<2x32xf32> to vector<2x32xbf16>
    %77 = vector.shape_cast %76 : vector<2x32xbf16> to vector<2x1x32xbf16>
    "tpu.trace_start"() <{level = 10 : i32, message = "bqh,bsh->bqs"}> : () -> ()
    %cst_46 = arith.constant dense<0.000000e+00> : vector<2x1x128xf32>
    %78 = tpu.matmul %77, %75, %cst_46 {dimension_numbers = #tpu.dot_dimension_numbers<[2], [2], [1], [1], [0, 0, 0, 1, 1, 1], [0], [0]>} : vector<2x1x32xbf16>, vector<2x128x32xbf16>, vector<2x1x128xf32> -> vector<2x1x128xf32>
    "tpu.trace_stop"() : () -> ()
    %79 = tpu.iota {dimensions = array<i32: 2>} : vector<2x1x128xi32>
    %c8_i32 = arith.constant 8 : i32
    %80 = vector.broadcast %c8_i32 : i32 to vector<2x1x128xi32>
    %81 = arith.cmpi slt, %79, %80 : vector<2x1x128xi32>
    %cst_47 = arith.constant -1.000000e+30 : f32
    %82 = vector.broadcast %cst_47 : f32 to vector<2x1x128xf32>
    %83 = arith.select %81, %78, %82 : vector<2x1x128xi1>, vector<2x1x128xf32>
    %cst_48 = arith.constant dense<0xFF800000> : vector<2x1xf32>
    %84 = vector.multi_reduction <maximumf>, %83, %cst_48 [2] : vector<2x1x128xf32> to vector<2x1xf32>
    %85 = vector.shape_cast %84 : vector<2x1xf32> to vector<2x1x1xf32>
    %86 = vector.broadcast %85 : vector<2x1x1xf32> to vector<2x1x128xf32>
    %87 = arith.subf %83, %86 : vector<2x1x128xf32>
    %88 = math.exp %87 : vector<2x1x128xf32>
    %cst_49 = arith.constant dense<0.000000e+00> : vector<2x1xf32>
    %89 = vector.multi_reduction <add>, %88, %cst_49 [2] : vector<2x1x128xf32> to vector<2x1xf32>
    %90 = vector.shape_cast %89 : vector<2x1xf32> to vector<2x1x1xf32>
    %91 = tpu.reciprocal %90 {approx = true} : vector<2x1x1xf32> -> vector<2x1x1xf32>
    %92 = vector.broadcast %91 : vector<2x1x1xf32> to vector<2x1x128xf32>
    %93 = arith.mulf %88, %92 : vector<2x1x128xf32>
    %94 = vector.shape_cast %93 : vector<2x1x128xf32> to vector<2x128xf32>
    %95 = arith.truncf %94 : vector<2x128xf32> to vector<2x128xbf16>
    %c0_50 = arith.constant 0 : index
    %c0_51 = arith.constant 0 : index
    %c0_52 = arith.constant 0 : index
    %96 = vector.load %arg19[%c0_50, %c0_51, %c0_52] : memref<1x2x128xbf16, #tpu.memory_space<vmem>>, vector<1x2x128xbf16>
    %97 = vector.shape_cast %96 : vector<1x2x128xbf16> to vector<2x128xbf16>
    %98 = vector.shape_cast %95 : vector<2x128xbf16> to vector<1x2x128xbf16>
    tpu.vector_store %arg19[%c0_50, %c0_51, %c0_52], %98 {strides = array<i32>} : memref<1x2x128xbf16, #tpu.memory_space<vmem>>, vector<1x2x128xbf16>,
    %99 = arith.truncf %93 : vector<2x1x128xf32> to vector<2x1x128xbf16>
    "tpu.trace_start"() <{level = 10 : i32, message = "bqs,bsh->bqh"}> : () -> ()
    %cst_53 = arith.constant dense<0.000000e+00> : vector<2x1x32xf32>
    %100 = tpu.matmul %99, %75, %cst_53 {dimension_numbers = #tpu.dot_dimension_numbers<[2], [1], [1], [2], [0, 0, 0, 1, 1, 2], [0], [0]>} : vector<2x1x128xbf16>, vector<2x128x32xbf16>, vector<2x1x32xf32> -> vector<2x1x32xf32>
    "tpu.trace_stop"() : () -> ()
    %101 = vector.shape_cast %100 : vector<2x1x32xf32> to vector<2x32xf32>
    %102 = arith.truncf %62 : vector<2x32xf32> to vector<2x32xbf16>
    %c0_54 = arith.constant 0 : index
    %c0_55 = arith.constant 0 : index
    %103 = vector.load %arg12[%c0_54, %c0_55] : memref<32x5xbf16, #tpu.memory_space<vmem>>, vector<32x5xbf16>
    %cst_56 = arith.constant dense<0.000000e+00> : vector<2x5xf32>
    %104 = tpu.matmul %102, %103, %cst_56 {dimension_numbers = #tpu.dot_dimension_numbers<[1], [0], [0], [1], [0, 0, 1, 1], [], []>} : vector<2x32xbf16>, vector<32x5xbf16>, vector<2x5xf32> -> vector<2x5xf32>
    %105 = arith.truncf %101 : vector<2x32xf32> to vector<2x32xbf16>
    %c0_57 = arith.constant 0 : index
    %c0_58 = arith.constant 0 : index
    %106 = vector.load %arg13[%c0_57, %c0_58] : memref<32x5xbf16, #tpu.memory_space<vmem>>, vector<32x5xbf16>
    %cst_59 = arith.constant dense<0.000000e+00> : vector<2x5xf32>
    %107 = tpu.matmul %105, %106, %cst_59 {dimension_numbers = #tpu.dot_dimension_numbers<[1], [0], [0], [1], [0, 0, 1, 1], [], []>} : vector<2x32xbf16>, vector<32x5xbf16>, vector<2x5xf32> -> vector<2x5xf32>
    %108 = arith.addf %104, %107 : vector<2x5xf32>
    %c0_60 = arith.constant 0 : index
    %c0_61 = arith.constant 0 : index
    %c0_62 = arith.constant 0 : index
    %109 = vector.load %arg5[%c0_60, %c0_61, %c0_62] : memref<1x2x4096xbf16, #tpu.memory_space<vmem>>, vector<1x2x4096xbf16>
    %110 = vector.shape_cast %109 : vector<1x2x4096xbf16> to vector<2x4096xbf16>
    %c0_63 = arith.constant 0 : index
    %c0_64 = arith.constant 0 : index
    %111 = vector.load %arg14[%c0_63, %c0_64] : memref<4096x5xbf16, #tpu.memory_space<vmem>>, vector<4096x5xbf16>
    %cst_65 = arith.constant dense<0.000000e+00> : vector<2x5xf32>
    %112 = tpu.matmul %110, %111, %cst_65 {dimension_numbers = #tpu.dot_dimension_numbers<[1], [0], [0], [1], [0, 0, 1, 1], [], []>} : vector<2x4096xbf16>, vector<4096x5xbf16>, vector<2x5xf32> -> vector<2x5xf32>
    %113 = arith.addf %108, %112 : vector<2x5xf32>
    %c0_66 = arith.constant 0 : index
    %c0_67 = arith.constant 0 : index
    %114 = vector.load %arg15[%c0_66, %c0_67] : memref<1x5xf32, #tpu.memory_space<vmem>>, vector<1x5xf32>
    %115 = vector.broadcast %114 : vector<1x5xf32> to vector<2x5xf32>
    %116 = arith.addf %113, %115 : vector<2x5xf32>
    %c0_68 = arith.constant 0 : index
    %c0_69 = arith.constant 0 : index
    %c0_70 = arith.constant 0 : index
    %117 = vector.load %arg16[%c0_68, %c0_69, %c0_70] : memref<1x2x5xf32, #tpu.memory_space<vmem>>, vector<1x2x5xf32>
    %118 = vector.shape_cast %117 : vector<1x2x5xf32> to vector<2x5xf32>
    %119 = vector.shape_cast %116 : vector<2x5xf32> to vector<1x2x5xf32>
    tpu.vector_store %arg16[%c0_68, %c0_69, %c0_70], %119 {strides = array<i32>} : memref<1x2x5xf32, #tpu.memory_space<vmem>>, vector<1x2x5xf32>,
    %c3_i32 = arith.constant 3 : i32
    %120 = arith.cmpi eq, %arg0, %c3_i32 : i32
    %121 = arith.extui %120 : i1 to i32
    %c0_i32_71 = arith.constant 0 : i32
    %122 = arith.cmpi ne, %121, %c0_i32_71 : i32
    scf.if %122 {
      %c0_72 = arith.constant 0 : index
      %c0_73 = arith.constant 0 : index
      %c0_74 = arith.constant 0 : index
      %123 = vector.load %arg20[%c0_72, %c0_73, %c0_74] : memref<2x2x32xf32, #tpu.memory_space<vmem>>, vector<2x2x32xf32>
      %c0_75 = arith.constant 0 : index
      %c0_76 = arith.constant 0 : index
      %c0_77 = arith.constant 0 : index
      %124 = vector.load %arg17[%c0_75, %c0_76, %c0_77] : memref<2x2x32xf32, #tpu.memory_space<vmem>>, vector<2x2x32xf32>
      tpu.vector_store %arg17[%c0_75, %c0_76, %c0_77], %123 {strides = array<i32>} : memref<2x2x32xf32, #tpu.memory_space<vmem>>, vector<2x2x32xf32>,
      %c0_78 = arith.constant 0 : index
      %c0_79 = arith.constant 0 : index
      %c0_80 = arith.constant 0 : index
      %125 = vector.load %arg21[%c0_78, %c0_79, %c0_80] : memref<2x2x32xf32, #tpu.memory_space<vmem>>, vector<2x2x32xf32>
      %c0_81 = arith.constant 0 : index
      %c0_82 = arith.constant 0 : index
      %c0_83 = arith.constant 0 : index
      %126 = vector.load %arg18[%c0_81, %c0_82, %c0_83] : memref<2x2x32xf32, #tpu.memory_space<vmem>>, vector<2x2x32xf32>
      tpu.vector_store %arg18[%c0_81, %c0_82, %c0_83], %125 {strides = array<i32>} : memref<2x2x32xf32, #tpu.memory_space<vmem>>, vector<2x2x32xf32>,
    } else {
    }
    return
  }
  func.func @transform_0(%arg0: i32) -> (i32, i32, i32) {
    %c0_i32 = arith.constant 0 : i32
    %c0_i32_0 = arith.constant 0 : i32
    %c0_i32_1 = arith.constant 0 : i32
    return %arg0, %c0_i32, %c0_i32_0 : i32, i32, i32
  }
  func.func @transform_1(%arg0: i32) -> (i32, i32, i32) {
    %c0_i32 = arith.constant 0 : i32
    %c0_i32_0 = arith.constant 0 : i32
    %c0_i32_1 = arith.constant 0 : i32
    %c0_i32_2 = arith.constant 0 : i32
    return %c0_i32, %c0_i32_0, %c0_i32_1 : i32, i32, i32
  }
  func.func @transform_2(%arg0: i32) -> (i32, i32, i32) {
    %c0_i32 = arith.constant 0 : i32
    %c0_i32_0 = arith.constant 0 : i32
    %c0_i32_1 = arith.constant 0 : i32
    %c0_i32_2 = arith.constant 0 : i32
    return %c0_i32, %c0_i32_0, %c0_i32_1 : i32, i32, i32
  }
  func.func @transform_3(%arg0: i32) -> (i32, i32, i32) {
    %c0_i32 = arith.constant 0 : i32
    %c0_i32_0 = arith.constant 0 : i32
    %c0_i32_1 = arith.constant 0 : i32
    %c0_i32_2 = arith.constant 0 : i32
    return %c0_i32, %c0_i32_0, %c0_i32_1 : i32, i32, i32
  }
  func.func @transform_4(%arg0: i32) -> (i32, i32, i32) {
    %c0_i32 = arith.constant 0 : i32
    %c0_i32_0 = arith.constant 0 : i32
    %c0_i32_1 = arith.constant 0 : i32
    return %arg0, %c0_i32, %c0_i32_0 : i32, i32, i32
  }
  func.func @transform_5(%arg0: i32) -> (i32, i32) {
    %c0_i32 = arith.constant 0 : i32
    %c0_i32_0 = arith.constant 0 : i32
    %c0_i32_1 = arith.constant 0 : i32
    return %c0_i32, %c0_i32_0 : i32, i32
  }
  func.func @transform_6(%arg0: i32) -> (i32, i32) {
    %c0_i32 = arith.constant 0 : i32
    %c0_i32_0 = arith.constant 0 : i32
    %c0_i32_1 = arith.constant 0 : i32
    return %c0_i32, %c0_i32_0 : i32, i32
  }
  func.func @transform_7(%arg0: i32) -> (i32, i32) {
    %c0_i32 = arith.constant 0 : i32
    %c0_i32_0 = arith.constant 0 : i32
    %c0_i32_1 = arith.constant 0 : i32
    return %c0_i32, %c0_i32_0 : i32, i32
  }
  func.func @transform_8(%arg0: i32) -> (i32, i32) {
    %c0_i32 = arith.constant 0 : i32
    %c0_i32_0 = arith.constant 0 : i32
    %c0_i32_1 = arith.constant 0 : i32
    return %c0_i32, %c0_i32_0 : i32, i32
  }
  func.func @transform_9(%arg0: i32) -> (i32, i32) {
    %c0_i32 = arith.constant 0 : i32
    %c0_i32_0 = arith.constant 0 : i32
    %c0_i32_1 = arith.constant 0 : i32
    return %c0_i32, %c0_i32_0 : i32, i32
  }
  func.func @transform_10(%arg0: i32) -> (i32, i32) {
    %c0_i32 = arith.constant 0 : i32
    %c0_i32_0 = arith.constant 0 : i32
    %c0_i32_1 = arith.constant 0 : i32
    return %c0_i32, %c0_i32_0 : i32, i32
  }
  func.func @transform_11(%arg0: i32) -> (i32, i32) {
    %c0_i32 = arith.constant 0 : i32
    %c0_i32_0 = arith.constant 0 : i32
    %c0_i32_1 = arith.constant 0 : i32
    return %c0_i32, %c0_i32_0 : i32, i32
  }
  func.func @transform_12(%arg0: i32) -> (i32, i32) {
    %c0_i32 = arith.constant 0 : i32
    %c0_i32_0 = arith.constant 0 : i32
    %c0_i32_1 = arith.constant 0 : i32
    return %c0_i32, %c0_i32_0 : i32, i32
  }
  func.func @transform_13(%arg0: i32) -> (i32, i32) {
    %c0_i32 = arith.constant 0 : i32
    %c0_i32_0 = arith.constant 0 : i32
    %c0_i32_1 = arith.constant 0 : i32
    return %c0_i32, %c0_i32_0 : i32, i32
  }
  func.func @transform_14(%arg0: i32) -> (i32, i32) {
    %c0_i32 = arith.constant 0 : i32
    %c0_i32_0 = arith.constant 0 : i32
    %c0_i32_1 = arith.constant 0 : i32
    return %c0_i32, %c0_i32_0 : i32, i32
  }
  func.func @transform_15(%arg0: i32) -> (i32, i32, i32) {
    %c0_i32 = arith.constant 0 : i32
    %c0_i32_0 = arith.constant 0 : i32
    %c0_i32_1 = arith.constant 0 : i32
    return %arg0, %c0_i32, %c0_i32_0 : i32, i32, i32
  }
  func.func @transform_16(%arg0: i32) -> (i32, i32, i32) {
    %c0_i32 = arith.constant 0 : i32
    %c0_i32_0 = arith.constant 0 : i32
    %c0_i32_1 = arith.constant 0 : i32
    %c0_i32_2 = arith.constant 0 : i32
    return %c0_i32, %c0_i32_0, %c0_i32_1 : i32, i32, i32
  }
  func.func @transform_17(%arg0: i32) -> (i32, i32, i32) {
    %c0_i32 = arith.constant 0 : i32
    %c0_i32_0 = arith.constant 0 : i32
    %c0_i32_1 = arith.constant 0 : i32
    %c0_i32_2 = arith.constant 0 : i32
    return %c0_i32, %c0_i32_0, %c0_i32_1 : i32, i32, i32
  }
  func.func @transform_18(%arg0: i32) -> (i32, i32, i32) {
    %c0_i32 = arith.constant 0 : i32
    %c0_i32_0 = arith.constant 0 : i32
    %c0_i32_1 = arith.constant 0 : i32
    return %arg0, %c0_i32, %c0_i32_0 : i32, i32, i32
  }
}

</mosaic_0001>

<llo_original>
// kernel: decoder_forward.1
$region0: #{decoder_forward.1}
  #allocation0 [shape = 'u32[]', space=smem, size = 0x4, offset = 0x4, fixed_abs, tag = 'smem constant byte address 0x4 - core index']
  #allocation1 [shape = 'u32[144,128]{1,0:T(1,128)}', space=vmem, size = 0x12000, scoped, tag = 'internal scratch']
  #allocation2 [shape = 'f32[2,2,32]{2,1,0:T(2,128)}', space=vmem, size = 0x800, scoped, tag = 'scratch operand']
  #allocation3 [shape = 'f32[2,2,32]{2,1,0:T(2,128)}', space=vmem, size = 0x800, scoped, tag = 'scratch operand']
  %s0 = inlined_call_operand.vmem [shape: f32[4,2,5], index: 0, kind: input, shape index: {}]
  %s1 = inlined_call_operand.vmem [shape: f32[2,2,32], index: 1, kind: input, shape index: {}]
  %s2 = inlined_call_operand.vmem [shape: f32[2,2,32], index: 2, kind: input, shape index: {}]
  %s3 = inlined_call_operand.vmem [shape: bf16[2,128,32], index: 3, kind: input, shape index: {}]
  %s4 = inlined_call_operand.vmem [shape: bf16[4,2,4096], index: 4, kind: input, shape index: {}]
  %s5 = inlined_call_operand.vmem [shape: bf16[5,128], index: 5, kind: input, shape index: {}]
  %s6 = inlined_call_operand.vmem [shape: bf16[32,128], index: 6, kind: input, shape index: {}]
  %s7 = inlined_call_operand.vmem [shape: f32[1,128], index: 7, kind: input, shape index: {}]
  %s8 = inlined_call_operand.vmem [shape: bf16[32,128], index: 8, kind: input, shape index: {}]
  %s9 = inlined_call_operand.vmem [shape: bf16[32,128], index: 9, kind: input, shape index: {}]
  %s10 = inlined_call_operand.vmem [shape: f32[1,128], index: 10, kind: input, shape index: {}]
  %s11 = inlined_call_operand.vmem [shape: bf16[32,5], index: 11, kind: input, shape index: {}]
  %s12 = inlined_call_operand.vmem [shape: bf16[32,5], index: 12, kind: input, shape index: {}]
  %s13 = inlined_call_operand.vmem [shape: bf16[4096,5], index: 13, kind: input, shape index: {}]
  %s14 = inlined_call_operand.vmem [shape: f32[1,5], index: 14, kind: input, shape index: {}]
  %s15 = inlined_call_operand.vmem [shape: f32[4,2,5], index: 15, kind: output, shape index: {0}]
  %s16 = inlined_call_operand.hbm [shape: f32[2,2,32], index: 16, kind: output, shape index: {1}]
  %s17 = inlined_call_operand.hbm [shape: f32[2,2,32], index: 17, kind: output, shape index: {2}]
  %s18 = inlined_call_operand.vmem [shape: bf16[4,2,128], index: 18, kind: output, shape index: {3}]
  %19 = xla_tuple %s15, %s16, %s17, %s18
  %s20 = sld [smem:[#allocation0]]
  $region125: #{decoder_forward.1} parent=0
    _
  %s22 = ssub.s32 1, %s20
  %s23 = scalar_select 0, %s22, %s20
  $region1: #{decoder_forward.1} parent=0
    #allocation4 [shape = 'u8[2048]{0}', space=vmem, size = 0x800, scoped, tag = 'output window, operand 1, single buffered']
    #allocation5 [shape = 's32[2]{0}', space=sflag, size = 0x8, scoped, tag = 'scoped memory for decoder_forward.1']
    #allocation6 [shape = 'u8[2048]{0}', space=vmem, size = 0x800, scoped, tag = 'output window, operand 2, single buffered']
    #allocation7 [shape = 's32[1]{0}', space=sflag, size = 0x4, scoped, tag = 'scoped memory for decoder_forward.1']
    %24 = vsyncpa [#allocation5], 0
    %25 = vsyncpa [#allocation7], 0
    loop: start=0, step=1, limit=6
    $region2: #{decoder_forward.1} parent=1 // loop_pre_header
      _
    $region3: #{decoder_forward.1} parent=1 // loop_header
      %s27 = sphi 0, %s31
      %p28 = scmp.ge.s32.totalorder %s27, 6
      %s37 = sphi 0, %s39
      %s40 = sphi 0, %s37
      %s41 = sphi 0, %s40
      %s57 = sphi 0, %s41
      %s61 = sphi 0, %s61
      %s63 = sphi 0, %s61
      %s64 = sphi 0, %s63
      %s78 = sphi 0, %s64
      %s82 = sphi 0, %s82
      %s84 = sphi 0, %s82
      %s85 = sphi 0, %s84
      %s99 = sphi 0, %s85
      %s103 = sphi 0, %s103
      %s105 = sphi 0, %s103
      %s106 = sphi 0, %s105
      %s120 = sphi 0, %s106
      %s126 = sphi 0, %s128
      %s129 = sphi 0, %s126
      %s130 = sphi 0, %s129
      %s146 = sphi 0, %s130
      %s150 = sphi 0, %s150
      %s152 = sphi 0, %s150
      %s153 = sphi 0, %s152
      %s167 = sphi 0, %s153
      %s171 = sphi 0, %s171
      %s173 = sphi 0, %s171
      %s174 = sphi 0, %s173
      %s188 = sphi 0, %s174
      %s192 = sphi 0, %s192
      %s194 = sphi 0, %s192
      %s195 = sphi 0, %s194
      %s209 = sphi 0, %s195
      %s213 = sphi 0, %s213
      %s215 = sphi 0, %s213
      %s216 = sphi 0, %s215
      %s230 = sphi 0, %s216
      %s234 = sphi 0, %s234
      %s236 = sphi 0, %s234
      %s237 = sphi 0, %s236
      %s251 = sphi 0, %s237
      %s255 = sphi 0, %s255
      %s257 = sphi 0, %s255
      %s258 = sphi 0, %s257
      %s272 = sphi 0, %s258
      %s276 = sphi 0, %s276
      %s278 = sphi 0, %s276
      %s279 = sphi 0, %s278
      %s293 = sphi 0, %s279
      %s297 = sphi 0, %s297
      %s299 = sphi 0, %s297
      %s300 = sphi 0, %s299
      %s314 = sphi 0, %s300
      %s318 = sphi 0, %s318
      %s320 = sphi 0, %s318
      %s321 = sphi 0, %s320
      %s335 = sphi 0, %s321
      %s339 = sphi 0, %s339
      %s341 = sphi 0, %s339
      %s342 = sphi 0, %s341
      %s356 = sphi 0, %s342
      %s362 = sphi 0, %s364
      %s365 = sphi 0, %s362
      %s366 = sphi 0, %s365
      %s382 = sphi 0, %s366
      %s386 = sphi 0, %s386
      %s388 = sphi 0, %s386
      %s389 = sphi 0, %s388
      %s403 = sphi 0, %s389
      %s407 = sphi 0, %s407
      %s409 = sphi 0, %s407
      %s410 = sphi 0, %s409
      %s424 = sphi 0, %s410
      %s430 = sphi 0, %s432
      %s433 = sphi 0, %s430
      %s434 = sphi 0, %s433
      %s450 = sphi 0, %s434
    $region4: #{decoder_forward.1} parent=1 // loop_header_branch
      %30 = sbr.rel (%p28) target = $region8
    $region5: #{decoder_forward.1} parent=1 // loop_body
      %s32 = ssub.s32 %s27, 1
      %s33 = ssub.s32 %s27, 2
      %s34 = sadd.s32 %s27, 1
      %s35 = ssub.s32 %s27, %s34
      %p36 = scmp.eq.s32.totalorder %s35, 0
      %s38 = sadd.s32 %s37, 1
      %s39 = scalar_select %p36, %s37, %s38
      %p42 = pneg %p36
      %p43 = scmp.eq.s32.totalorder %s27, 3
      %p44 = por %p42, %p43
      %p45 = scmp.ne.s32.totalorder %s37, %s40
      %p46 = scmp.eq.s32.totalorder %s27, 0
      %p47 = por %p45, %p46
      %p48 = scmp.ne.s32.totalorder %s37, %s40
      %p49 = scmp.eq.s32.totalorder %s32, 3
      %p50 = por %p48, %p49
      %p51 = scmp.ne.s32.totalorder %s40, %s41
      %p52 = scmp.eq.s32.totalorder %s32, 0
      %p53 = por %p51, %p52
      %p54 = scmp.ne.s32.totalorder %s40, %s41
      %p55 = scmp.eq.s32.totalorder %s33, 3
      %p56 = por %p54, %p55
      %p58 = scmp.ne.s32.totalorder %s41, %s57
      %p59 = scmp.eq.s32.totalorder %s33, 0
      %p60 = por %p58, %p59
      %s62 = sadd.s32 %s61, 1
      %p65 = scmp.eq.s32.totalorder %s27, 3
      %p66 = scmp.ne.s32.totalorder %s61, %s63
      %p67 = scmp.eq.s32.totalorder %s27, 0
      %p68 = por %p66, %p67
      %p69 = scmp.ne.s32.totalorder %s61, %s63
      %p70 = scmp.eq.s32.totalorder %s32, 3
      %p71 = por %p69, %p70
      %p72 = scmp.ne.s32.totalorder %s63, %s64
      %p73 = scmp.eq.s32.totalorder %s32, 0
      %p74 = por %p72, %p73
      %p75 = scmp.ne.s32.totalorder %s63, %s64
      %p76 = scmp.eq.s32.totalorder %s33, 3
      %p77 = por %p75, %p76
      %p79 = scmp.ne.s32.totalorder %s64, %s78
      %p80 = scmp.eq.s32.totalorder %s33, 0
      %p81 = por %p79, %p80
      %s83 = sadd.s32 %s82, 1
      %p86 = scmp.eq.s32.totalorder %s27, 3
      %p87 = scmp.ne.s32.totalorder %s82, %s84
      %p88 = scmp.eq.s32.totalorder %s27, 0
      %p89 = por %p87, %p88
      %p90 = scmp.ne.s32.totalorder %s82, %s84
      %p91 = scmp.eq.s32.totalorder %s32, 3
      %p92 = por %p90, %p91
      %p93 = scmp.ne.s32.totalorder %s84, %s85
      %p94 = scmp.eq.s32.totalorder %s32, 0
      %p95 = por %p93, %p94
      %p96 = scmp.ne.s32.totalorder %s84, %s85
      %p97 = scmp.eq.s32.totalorder %s33, 3
      %p98 = por %p96, %p97
      %p100 = scmp.ne.s32.totalorder %s85, %s99
      %p101 = scmp.eq.s32.totalorder %s33, 0
      %p102 = por %p100, %p101
      %s104 = sadd.s32 %s103, 1
      %p107 = scmp.eq.s32.totalorder %s27, 3
      %p108 = scmp.ne.s32.totalorder %s103, %s105
      %p109 = scmp.eq.s32.totalorder %s27, 0
      %p110 = por %p108, %p109
      %p111 = scmp.ne.s32.totalorder %s103, %s105
      %p112 = scmp.eq.s32.totalorder %s32, 3
      %p113 = por %p111, %p112
      %p114 = scmp.ne.s32.totalorder %s105, %s106
      %p115 = scmp.eq.s32.totalorder %s32, 0
      %p116 = por %p114, %p115
      %p117 = scmp.ne.s32.totalorder %s105, %s106
      %p118 = scmp.eq.s32.totalorder %s33, 3
      %p119 = por %p117, %p118
      %p121 = scmp.ne.s32.totalorder %s106, %s120
      %p122 = scmp.eq.s32.totalorder %s33, 0
      %p123 = por %p121, %p122
      %s124 = ssub.s32 %s27, %s34
      %p125 = scmp.eq.s32.totalorder %s124, 0
      %s127 = sadd.s32 %s126, 1
      %s128 = scalar_select %p125, %s126, %s127
      %p131 = pneg %p125
      %p132 = scmp.eq.s32.totalorder %s27, 3
      %p133 = por %p131, %p132
      %p134 = scmp.ne.s32.totalorder %s126, %s129
      %p135 = scmp.eq.s32.totalorder %s27, 0
      %p136 = por %p134, %p135
      %p137 = scmp.ne.s32.totalorder %s126, %s129
      %p138 = scmp.eq.s32.totalorder %s32, 3
      %p139 = por %p137, %p138
      %p140 = scmp.ne.s32.totalorder %s129, %s130
      %p141 = scmp.eq.s32.totalorder %s32, 0
      %p142 = por %p140, %p141
      %p143 = scmp.ne.s32.totalorder %s129, %s130
      %p144 = scmp.eq.s32.totalorder %s33, 3
      %p145 = por %p143, %p144
      %p147 = scmp.ne.s32.totalorder %s130, %s146
      %p148 = scmp.eq.s32.totalorder %s33, 0
      %p149 = por %p147, %p148
      %s151 = sadd.s32 %s150, 1
      %p154 = scmp.eq.s32.totalorder %s27, 3
      %p155 = scmp.ne.s32.totalorder %s150, %s152
      %p156 = scmp.eq.s32.totalorder %s27, 0
      %p157 = por %p155, %p156
      %p158 = scmp.ne.s32.totalorder %s150, %s152
      %p159 = scmp.eq.s32.totalorder %s32, 3
      %p160 = por %p158, %p159
      %p161 = scmp.ne.s32.totalorder %s152, %s153
      %p162 = scmp.eq.s32.totalorder %s32, 0
      %p163 = por %p161, %p162
      %p164 = scmp.ne.s32.totalorder %s152, %s153
      %p165 = scmp.eq.s32.totalorder %s33, 3
      %p166 = por %p164, %p165
      %p168 = scmp.ne.s32.totalorder %s153, %s167
      %p169 = scmp.eq.s32.totalorder %s33, 0
      %p170 = por %p168, %p169
      %s172 = sadd.s32 %s171, 1
      %p175 = scmp.eq.s32.totalorder %s27, 3
      %p176 = scmp.ne.s32.totalorder %s171, %s173
      %p177 = scmp.eq.s32.totalorder %s27, 0
      %p178 = por %p176, %p177
      %p179 = scmp.ne.s32.totalorder %s171, %s173
      %p180 = scmp.eq.s32.totalorder %s32, 3
      %p181 = por %p179, %p180
      %p182 = scmp.ne.s32.totalorder %s173, %s174
      %p183 = scmp.eq.s32.totalorder %s32, 0
      %p184 = por %p182, %p183
      %p185 = scmp.ne.s32.totalorder %s173, %s174
      %p186 = scmp.eq.s32.totalorder %s33, 3
      %p187 = por %p185, %p186
      %p189 = scmp.ne.s32.totalorder %s174, %s188
      %p190 = scmp.eq.s32.totalorder %s33, 0
      %p191 = por %p189, %p190
      %s193 = sadd.s32 %s192, 1
      %p196 = scmp.eq.s32.totalorder %s27, 3
      %p197 = scmp.ne.s32.totalorder %s192, %s194
      %p198 = scmp.eq.s32.totalorder %s27, 0
      %p199 = por %p197, %p198
      %p200 = scmp.ne.s32.totalorder %s192, %s194
      %p201 = scmp.eq.s32.totalorder %s32, 3
      %p202 = por %p200, %p201
      %p203 = scmp.ne.s32.totalorder %s194, %s195
      %p204 = scmp.eq.s32.totalorder %s32, 0
      %p205 = por %p203, %p204
      %p206 = scmp.ne.s32.totalorder %s194, %s195
      %p207 = scmp.eq.s32.totalorder %s33, 3
      %p208 = por %p206, %p207
      %p210 = scmp.ne.s32.totalorder %s195, %s209
      %p211 = scmp.eq.s32.totalorder %s33, 0
      %p212 = por %p210, %p211
      %s214 = sadd.s32 %s213, 1
      %p217 = scmp.eq.s32.totalorder %s27, 3
      %p218 = scmp.ne.s32.totalorder %s213, %s215
      %p219 = scmp.eq.s32.totalorder %s27, 0
      %p220 = por %p218, %p219
      %p221 = scmp.ne.s32.totalorder %s213, %s215
      %p222 = scmp.eq.s32.totalorder %s32, 3
      %p223 = por %p221, %p222
      %p224 = scmp.ne.s32.totalorder %s215, %s216
      %p225 = scmp.eq.s32.totalorder %s32, 0
      %p226 = por %p224, %p225
      %p227 = scmp.ne.s32.totalorder %s215, %s216
      %p228 = scmp.eq.s32.totalorder %s33, 3
      %p229 = por %p227, %p228
      %p231 = scmp.ne.s32.totalorder %s216, %s230
      %p232 = scmp.eq.s32.totalorder %s33, 0
      %p233 = por %p231, %p232
      %s235 = sadd.s32 %s234, 1
      %p238 = scmp.eq.s32.totalorder %s27, 3
      %p239 = scmp.ne.s32.totalorder %s234, %s236
      %p240 = scmp.eq.s32.totalorder %s27, 0
      %p241 = por %p239, %p240
      %p242 = scmp.ne.s32.totalorder %s234, %s236
      %p243 = scmp.eq.s32.totalorder %s32, 3
      %p244 = por %p242, %p243
      %p245 = scmp.ne.s32.totalorder %s236, %s237
      %p246 = scmp.eq.s32.totalorder %s32, 0
      %p247 = por %p245, %p246
      %p248 = scmp.ne.s32.totalorder %s236, %s237
      %p249 = scmp.eq.s32.totalorder %s33, 3
      %p250 = por %p248, %p249
      %p252 = scmp.ne.s32.totalorder %s237, %s251
      %p253 = scmp.eq.s32.totalorder %s33, 0
      %p254 = por %p252, %p253
      %s256 = sadd.s32 %s255, 1
      %p259 = scmp.eq.s32.totalorder %s27, 3
      %p260 = scmp.ne.s32.totalorder %s255, %s257
      %p261 = scmp.eq.s32.totalorder %s27, 0
      %p262 = por %p260, %p261
      %p263 = scmp.ne.s32.totalorder %s255, %s257
      %p264 = scmp.eq.s32.totalorder %s32, 3
      %p265 = por %p263, %p264
      %p266 = scmp.ne.s32.totalorder %s257, %s258
      %p267 = scmp.eq.s32.totalorder %s32, 0
      %p268 = por %p266, %p267
      %p269 = scmp.ne.s32.totalorder %s257, %s258
      %p270 = scmp.eq.s32.totalorder %s33, 3
      %p271 = por %p269, %p270
      %p273 = scmp.ne.s32.totalorder %s258, %s272
      %p274 = scmp.eq.s32.totalorder %s33, 0
      %p275 = por %p273, %p274
      %s277 = sadd.s32 %s276, 1
      %p280 = scmp.eq.s32.totalorder %s27, 3
      %p281 = scmp.ne.s32.totalorder %s276, %s278
      %p282 = scmp.eq.s32.totalorder %s27, 0
      %p283 = por %p281, %p282
      %p284 = scmp.ne.s32.totalorder %s276, %s278
      %p285 = scmp.eq.s32.totalorder %s32, 3
      %p286 = por %p284, %p285
      %p287 = scmp.ne.s32.totalorder %s278, %s279
      %p288 = scmp.eq.s32.totalorder %s32, 0
      %p289 = por %p287, %p288
      %p290 = scmp.ne.s32.totalorder %s278, %s279
      %p291 = scmp.eq.s32.totalorder %s33, 3
      %p292 = por %p290, %p291
      %p294 = scmp.ne.s32.totalorder %s279, %s293
      %p295 = scmp.eq.s32.totalorder %s33, 0
      %p296 = por %p294, %p295
      %s298 = sadd.s32 %s297, 1
      %p301 = scmp.eq.s32.totalorder %s27, 3
      %p302 = scmp.ne.s32.totalorder %s297, %s299
      %p303 = scmp.eq.s32.totalorder %s27, 0
      %p304 = por %p302, %p303
      %p305 = scmp.ne.s32.totalorder %s297, %s299
      %p306 = scmp.eq.s32.totalorder %s32, 3
      %p307 = por %p305, %p306
      %p308 = scmp.ne.s32.totalorder %s299, %s300
      %p309 = scmp.eq.s32.totalorder %s32, 0
      %p310 = por %p308, %p309
      %p311 = scmp.ne.s32.totalorder %s299, %s300
      %p312 = scmp.eq.s32.totalorder %s33, 3
      %p313 = por %p311, %p312
      %p315 = scmp.ne.s32.totalorder %s300, %s314
      %p316 = scmp.eq.s32.totalorder %s33, 0
      %p317 = por %p315, %p316
      %s319 = sadd.s32 %s318, 1
      %p322 = scmp.eq.s32.totalorder %s27, 3
      %p323 = scmp.ne.s32.totalorder %s318, %s320
      %p324 = scmp.eq.s32.totalorder %s27, 0
      %p325 = por %p323, %p324
      %p326 = scmp.ne.s32.totalorder %s318, %s320
      %p327 = scmp.eq.s32.totalorder %s32, 3
      %p328 = por %p326, %p327
      %p329 = scmp.ne.s32.totalorder %s320, %s321
      %p330 = scmp.eq.s32.totalorder %s32, 0
      %p331 = por %p329, %p330
      %p332 = scmp.ne.s32.totalorder %s320, %s321
      %p333 = scmp.eq.s32.totalorder %s33, 3
      %p334 = por %p332, %p333
      %p336 = scmp.ne.s32.totalorder %s321, %s335
      %p337 = scmp.eq.s32.totalorder %s33, 0
      %p338 = por %p336, %p337
      %s340 = sadd.s32 %s339, 1
      %p343 = scmp.eq.s32.totalorder %s27, 3
      %p344 = scmp.ne.s32.totalorder %s339, %s341
      %p345 = scmp.eq.s32.totalorder %s27, 0
      %p346 = por %p344, %p345
      %p347 = scmp.ne.s32.totalorder %s339, %s341
      %p348 = scmp.eq.s32.totalorder %s32, 3
      %p349 = por %p347, %p348
      %p350 = scmp.ne.s32.totalorder %s341, %s342
      %p351 = scmp.eq.s32.totalorder %s32, 0
      %p352 = por %p350, %p351
      %p353 = scmp.ne.s32.totalorder %s341, %s342
      %p354 = scmp.eq.s32.totalorder %s33, 3
      %p355 = por %p353, %p354
      %p357 = scmp.ne.s32.totalorder %s342, %s356
      %p358 = scmp.eq.s32.totalorder %s33, 0
      %p359 = por %p357, %p358
      %s360 = ssub.s32 %s27, %s34
      %p361 = scmp.eq.s32.totalorder %s360, 0
      %s363 = sadd.s32 %s362, 1
      %s364 = scalar_select %p361, %s362, %s363
      %p367 = pneg %p361
      %p368 = scmp.eq.s32.totalorder %s27, 3
      %p369 = por %p367, %p368
      %p370 = scmp.ne.s32.totalorder %s362, %s365
      %p371 = scmp.eq.s32.totalorder %s27, 0
      %p372 = por %p370, %p371
      %p373 = scmp.ne.s32.totalorder %s362, %s365
      %p374 = scmp.eq.s32.totalorder %s32, 3
      %p375 = por %p373, %p374
      %p376 = scmp.ne.s32.totalorder %s365, %s366
      %p377 = scmp.eq.s32.totalorder %s32, 0
      %p378 = por %p376, %p377
      %p379 = scmp.ne.s32.totalorder %s365, %s366
      %p380 = scmp.eq.s32.totalorder %s33, 3
      %p381 = por %p379, %p380
      %p383 = scmp.ne.s32.totalorder %s366, %s382
      %p384 = scmp.eq.s32.totalorder %s33, 0
      %p385 = por %p383, %p384
      %s387 = sadd.s32 %s386, 1
      %p390 = scmp.eq.s32.totalorder %s27, 3
      %p391 = scmp.ne.s32.totalorder %s386, %s388
      %p392 = scmp.eq.s32.totalorder %s27, 0
      %p393 = por %p391, %p392
      %p394 = scmp.ne.s32.totalorder %s386, %s388
      %p395 = scmp.eq.s32.totalorder %s32, 3
      %p396 = por %p394, %p395
      %p397 = scmp.ne.s32.totalorder %s388, %s389
      %p398 = scmp.eq.s32.totalorder %s32, 0
      %p399 = por %p397, %p398
      %p400 = scmp.ne.s32.totalorder %s388, %s389
      %p401 = scmp.eq.s32.totalorder %s33, 3
      %p402 = por %p400, %p401
      %p404 = scmp.ne.s32.totalorder %s389, %s403
      %p405 = scmp.eq.s32.totalorder %s33, 0
      %p406 = por %p404, %p405
      %s408 = sadd.s32 %s407, 1
      %p411 = scmp.eq.s32.totalorder %s27, 3
      %p412 = scmp.ne.s32.totalorder %s407, %s409
      %p413 = scmp.eq.s32.totalorder %s27, 0
      %p414 = por %p412, %p413
      %p415 = scmp.ne.s32.totalorder %s407, %s409
      %p416 = scmp.eq.s32.totalorder %s32, 3
      %p417 = por %p415, %p416
      %p418 = scmp.ne.s32.totalorder %s409, %s410
      %p419 = scmp.eq.s32.totalorder %s32, 0
      %p420 = por %p418, %p419
      %p421 = scmp.ne.s32.totalorder %s409, %s410
      %p422 = scmp.eq.s32.totalorder %s33, 3
      %p423 = por %p421, %p422
      %p425 = scmp.ne.s32.totalorder %s410, %s424
      %p426 = scmp.eq.s32.totalorder %s33, 0
      %p427 = por %p425, %p426
      %s428 = ssub.s32 %s27, %s34
      %p429 = scmp.eq.s32.totalorder %s428, 0
      %s431 = sadd.s32 %s430, 1
      %s432 = scalar_select %p429, %s430, %s431
      %p435 = pneg %p429
      %p436 = scmp.eq.s32.totalorder %s27, 3
      %p437 = por %p435, %p436
      %p438 = scmp.ne.s32.totalorder %s430, %s433
      %p439 = scmp.eq.s32.totalorder %s27, 0
      %p440 = por %p438, %p439
      %p441 = scmp.ne.s32.totalorder %s430, %s433
      %p442 = scmp.eq.s32.totalorder %s32, 3
      %p443 = por %p441, %p442
      %p444 = scmp.ne.s32.totalorder %s433, %s434
      %p445 = scmp.eq.s32.totalorder %s32, 0
      %p446 = por %p444, %p445
      %p447 = scmp.ne.s32.totalorder %s433, %s434
      %p448 = scmp.eq.s32.totalorder %s33, 3
      %p449 = por %p447, %p448
      %p451 = scmp.ne.s32.totalorder %s434, %s450
      %p452 = scmp.eq.s32.totalorder %s33, 0
      %p453 = por %p451, %p452
      %p454 = scmp.le.s32.totalorder 1, %s27
      %p455 = scmp.lt.s32.totalorder %s27, 5
      %p456 = pnand %p454, %p455
      %p457 = pneg %p456
      // Predicated region
      $region9: #{decoder_forward.1} parent=5 // pred_check
        _
      $region10: #{decoder_forward.1} parent=5 // pred_check_branch
        %459 = sbr.rel (%p456) target = $region12
      $region11: #{decoder_forward.1} parent=5 // pred_region
        %s460 = ssub.s32 %s27, 1
        // Predicated region
        $region13: #{decoder_forward.1} parent=11 // pred_check
          %p461 = pneg %p74
        $region14: #{decoder_forward.1} parent=11 // pred_check_branch
          %463 = sbr.rel (%p461) target = $region16
        $region15: #{decoder_forward.1} parent=11 // pred_region
          _
        $region16: #{decoder_forward.1} parent=11 // pred_fallthru
          _
        // Predicated region
        $region17: #{decoder_forward.1} parent=11 // pred_check
          %p464 = pneg %p95
        $region18: #{decoder_forward.1} parent=11 // pred_check_branch
          %466 = sbr.rel (%p464) target = $region20
        $region19: #{decoder_forward.1} parent=11 // pred_region
          _
        $region20: #{decoder_forward.1} parent=11 // pred_fallthru
          _
        // Predicated region
        $region21: #{decoder_forward.1} parent=11 // pred_check
          %p467 = pneg %p116
        $region22: #{decoder_forward.1} parent=11 // pred_check_branch
          %469 = sbr.rel (%p467) target = $region24
        $region23: #{decoder_forward.1} parent=11 // pred_region
          _
        $region24: #{decoder_forward.1} parent=11 // pred_fallthru
          _
        // Predicated region
        $region25: #{decoder_forward.1} parent=11 // pred_check
          %p470 = pneg %p163
        $region26: #{decoder_forward.1} parent=11 // pred_check_branch
          %472 = sbr.rel (%p470) target = $region28
        $region27: #{decoder_forward.1} parent=11 // pred_region
          _
        $region28: #{decoder_forward.1} parent=11 // pred_fallthru
          _
        // Predicated region
        $region29: #{decoder_forward.1} parent=11 // pred_check
          %p473 = pneg %p184
        $region30: #{decoder_forward.1} parent=11 // pred_check_branch
          %475 = sbr.rel (%p473) target = $region32
        $region31: #{decoder_forward.1} parent=11 // pred_region
          _
        $region32: #{decoder_forward.1} parent=11 // pred_fallthru
          _
        // Predicated region
        $region33: #{decoder_forward.1} parent=11 // pred_check
          %p476 = pneg %p205
        $region34: #{decoder_forward.1} parent=11 // pred_check_branch
          %478 = sbr.rel (%p476) target = $region36
        $region35: #{decoder_forward.1} parent=11 // pred_region
          _
        $region36: #{decoder_forward.1} parent=11 // pred_fallthru
          _
        // Predicated region
        $region37: #{decoder_forward.1} parent=11 // pred_check
          %p479 = pneg %p226
        $region38: #{decoder_forward.1} parent=11 // pred_check_branch
          %481 = sbr.rel (%p479) target = $region40
        $region39: #{decoder_forward.1} parent=11 // pred_region
          _
        $region40: #{decoder_forward.1} parent=11 // pred_fallthru
          _
        // Predicated region
        $region41: #{decoder_forward.1} parent=11 // pred_check
          %p482 = pneg %p247
        $region42: #{decoder_forward.1} parent=11 // pred_check_branch
          %484 = sbr.rel (%p482) target = $region44
        $region43: #{decoder_forward.1} parent=11 // pred_region
          _
        $region44: #{decoder_forward.1} parent=11 // pred_fallthru
          _
        // Predicated region
        $region45: #{decoder_forward.1} parent=11 // pred_check
          %p485 = pneg %p268
        $region46: #{decoder_forward.1} parent=11 // pred_check_branch
          %487 = sbr.rel (%p485) target = $region48
        $region47: #{decoder_forward.1} parent=11 // pred_region
          _
        $region48: #{decoder_forward.1} parent=11 // pred_fallthru
          _
        // Predicated region
        $region49: #{decoder_forward.1} parent=11 // pred_check
          %p488 = pneg %p289
        $region50: #{decoder_forward.1} parent=11 // pred_check_branch
          %490 = sbr.rel (%p488) target = $region52
        $region51: #{decoder_forward.1} parent=11 // pred_region
          _
        $region52: #{decoder_forward.1} parent=11 // pred_fallthru
          _
        // Predicated region
        $region53: #{decoder_forward.1} parent=11 // pred_check
          %p491 = pneg %p310
        $region54: #{decoder_forward.1} parent=11 // pred_check_branch
          %493 = sbr.rel (%p491) target = $region56
        $region55: #{decoder_forward.1} parent=11 // pred_region
          _
        $region56: #{decoder_forward.1} parent=11 // pred_fallthru
          _
        // Predicated region
        $region57: #{decoder_forward.1} parent=11 // pred_check
          %p494 = pneg %p331
        $region58: #{decoder_forward.1} parent=11 // pred_check_branch
          %496 = sbr.rel (%p494) target = $region60
        $region59: #{decoder_forward.1} parent=11 // pred_region
          _
        $region60: #{decoder_forward.1} parent=11 // pred_fallthru
          _
        // Predicated region
        $region61: #{decoder_forward.1} parent=11 // pred_check
          %p497 = pneg %p352
        $region62: #{decoder_forward.1} parent=11 // pred_check_branch
          %499 = sbr.rel (%p497) target = $region64
        $region63: #{decoder_forward.1} parent=11 // pred_region
          _
        $region64: #{decoder_forward.1} parent=11 // pred_fallthru
          _
      $region12: #{decoder_forward.1} parent=5 // pred_fallthru
        _
      %p500 = scmp.lt.s32.totalorder %s27, 4
      // Predicated region
      $region65: #{decoder_forward.1} parent=5 // pred_check
        %p501 = pneg %p500
      $region66: #{decoder_forward.1} parent=5 // pred_check_branch
        %503 = sbr.rel (%p501) target = $region68
      $region67: #{decoder_forward.1} parent=5 // pred_region
        // Predicated region
        $region69: #{decoder_forward.1} parent=67 // pred_check
          %p504 = pneg %p47
        $region70: #{decoder_forward.1} parent=67 // pred_check_branch
          %506 = sbr.rel (%p504) target = $region72
        $region71: #{decoder_forward.1} parent=67 // pred_region
          %p507 = scmp.lt.s32.totalorder %s27, 3
          %s508 = scalar_select %p507, %s27, 3
          %s509 = smul.addr %s508, 2
          %s510 = scalar_lea.vmem %s0, %s509
        $region72: #{decoder_forward.1} parent=67 // pred_fallthru
          _
        // Predicated region
        $region73: #{decoder_forward.1} parent=67 // pred_check
          %p511 = pneg %p136
        $region74: #{decoder_forward.1} parent=67 // pred_check_branch
          %513 = sbr.rel (%p511) target = $region76
        $region75: #{decoder_forward.1} parent=67 // pred_region
          %p514 = scmp.lt.s32.totalorder %s27, 3
          %s515 = scalar_select %p514, %s27, 3
          %s516 = smul.addr %s515, 32
          %s517 = scalar_lea.vmem %s4, %s516
        $region76: #{decoder_forward.1} parent=67 // pred_fallthru
          _
      $region68: #{decoder_forward.1} parent=5 // pred_fallthru
        _
      %p518 = scmp.le.s32.totalorder 1, %s27
      %p519 = scmp.lt.s32.totalorder %s27, 5
      %p520 = pnand %p518, %p519
      %p521 = pneg %p520
      // Predicated region
      $region77: #{decoder_forward.1} parent=5 // pred_check
        _
      $region78: #{decoder_forward.1} parent=5 // pred_check_branch
        %523 = sbr.rel (%p520) target = $region80
      $region79: #{decoder_forward.1} parent=5 // pred_region
        %s524 = ssub.s32 %s27, 1
        %p525 = scmp.lt.s32.totalorder %s32, 3
        %s526 = scalar_select %p525, %s32, 3
        %s527 = smul.addr %s526, 2
        %s528 = scalar_lea.vmem %s0, %s527
        %p529 = pneg %p53
        %p530 = pneg %p50
        %p531 = pneg %p74
        %p532 = pneg %p71
        %p533 = pneg %p95
        %p534 = pneg %p92
        %p535 = pneg %p116
        %p536 = pneg %p113
        %p537 = scmp.lt.s32.totalorder %s32, 3
        %s538 = scalar_select %p537, %s32, 3
        %s539 = smul.addr %s538, 32
        %s540 = scalar_lea.vmem %s4, %s539
        %p541 = pneg %p142
        %p542 = pneg %p139
        %p543 = pneg %p163
        %p544 = pneg %p160
        %p545 = pneg %p184
        %p546 = pneg %p181
        %p547 = pneg %p205
        %p548 = pneg %p202
        %p549 = pneg %p226
        %p550 = pneg %p223
        %p551 = pneg %p247
        %p552 = pneg %p244
        %p553 = pneg %p268
        %p554 = pneg %p265
        %p555 = pneg %p289
        %p556 = pneg %p286
        %p557 = pneg %p310
        %p558 = pneg %p307
        %p559 = pneg %p331
        %p560 = pneg %p328
        %p561 = pneg %p352
        %p562 = pneg %p349
        %p563 = pneg %p378
        %p564 = pneg %p375
        %p565 = scmp.lt.s32.totalorder %s32, 3
        %s566 = scalar_select %p565, %s32, 3
        %s567 = smul.addr %s566, 2
        %s568 = scalar_lea.vmem %s15, %s567
        %p569 = pneg %p399
        %p570 = pneg %p396
        %p571 = pneg %p420
        %p572 = pneg %p417
        %p573 = pneg %p446
        %p574 = pneg %p443
        %p575 = scmp.lt.s32.totalorder %s32, 3
        %s576 = scalar_select %p575, %s32, 3
        %s577 = scalar_lea.vmem %s18, %s576
        %p578 = scmp.lt.s32.totalorder %s32, 3
        %s579 = scalar_select %p578, %s32, 3
        %s580 = smul.addr %s579, 2
        %s581 = scalar_lea.vmem %s0, %s580
        %p582 = scmp.lt.s32.totalorder %s32, 3
        %s583 = scalar_select %p582, %s32, 3
        %s584 = smul.addr %s583, 32
        %s585 = scalar_lea.vmem %s4, %s584
        %p586 = scmp.lt.s32.totalorder %s32, 3
        %s587 = scalar_select %p586, %s32, 3
        %s588 = smul.addr %s587, 2
        %s589 = scalar_lea.vmem %s15, %s588
        %p590 = scmp.lt.s32.totalorder %s32, 3
        %s591 = scalar_select %p590, %s32, 3
        %s592 = scalar_lea.vmem %s18, %s591
        %p594 = scmp.eq.s32.totalorder %s32, 0
        // Predicated region
        $region81: #{decoder_forward.1} parent=79 // pred_check
          %p595 = pneg %p594
        $region82: #{decoder_forward.1} parent=79 // pred_check_branch
          %597 = sbr.rel (%p595) target = $region84
        $region83: #{decoder_forward.1} parent=79 // pred_region
          %v598 = vld [vmem:[%s1] sm:$0x3]
          %v599 = vld [vmem:[%s1 + $0x2] sm:$0x3]
          %vm600 = vcmask 254976
          %601 = vst.msk [vmem:[#allocation2] sm:$0x3] %vm600, %v598
          %602 = vst.msk [vmem:[#allocation2 + $0x2] sm:$0x3] %vm600, %v599
          %v603 = vld [vmem:[%s2] sm:$0x3]
          %v604 = vld [vmem:[%s2 + $0x2] sm:$0x3]
          %605 = vst.msk [vmem:[#allocation3] sm:$0x3] %vm600, %v603
          %606 = vst.msk [vmem:[#allocation3 + $0x2] sm:$0x3] %vm600, %v604
        $region84: #{decoder_forward.1} parent=79 // pred_fallthru
          _
        %v607 = vld [vmem:[%s581] sm:$0x3]
        %v608 = vpack.c.bf16 %v607, %v607
        %v609 = vld [vmem:[#allocation2] sm:$0x3]
        %v610 = vld [vmem:[#allocation3] sm:$0x3]
        %v611 = vld [vmem:[%s5] sm:$0x7]
        %v612 = vpack.c.bf16 %v609, %v609
        %v613 = vld [vmem:[%s6] sm:$0xf]
        %v614 = vld [vmem:[%s6 + $0x4] sm:$0xf]
        %v615 = vld [vmem:[%s6 + $0x8] sm:$0xf]
        %v616 = vld [vmem:[%s6 + $0xc] sm:$0xf]
        %v621 = vunpack.c.l.b16 %v613
        %v622 = vunpack.c.l.b16 %v614
        %v623 = vunpack.c.l.b16 %v615
        %v624 = vunpack.c.l.b16 %v616
        %v625 = vpack.c.b16 %v622, %v621
        %v626 = vpack.c.b16 %v624, %v623
        %vm629 = vcmask 261120
        %v631 = vsel %vm629, %v612, 0
        %633 = vmatprep.subr.bf16.mxu0 0
        %634 = vmatpush1.bf16.msra.mxu0 %v625
        %635 = vmatprep.subr.bf16.mxu0 0
        %636 = vmatpush1.bf16.msra.mxu0 %v626
        %637 = vmatprep.subr.bf16.mxu0 0
        %638 = vmatpush1.bf16.msra.mxu0 0
        %639 = vmatprep.subr.bf16.mxu0 0
        %640 = vmatpush1.bf16.msra.mxu0 0
        %641 = vmatprep.subr.bf16.mxu0 0
        %642 = vmatpush1.bf16.msra.mxu0 0
        %643 = vmatprep.subr.bf16.mxu0 0
        %644 = vmatpush1.bf16.msra.mxu0 0
        %645 = vmatprep.subr.bf16.mxu0 0
        %646 = vmatpush1.bf16.msra.mxu0 0
        %647 = vmatprep.subr.bf16.mxu0 0
        %648 = vmatpush1.bf16.msra.mxu0 0
        %649 = vmatprep.subr.bf16.mxu0 0
        %650 = vmatpush1.bf16.msra.mxu0 0
        %651 = vmatprep.subr.bf16.mxu0 0
        %652 = vmatpush1.bf16.msra.mxu0 0
        %653 = vmatprep.subr.bf16.mxu0 0
        %654 = vmatpush1.bf16.msra.mxu0 0
        %655 = vmatprep.subr.bf16.mxu0 0
        %656 = vmatpush1.bf16.msra.mxu0 0
        %657 = vmatprep.subr.bf16.mxu0 0
        %658 = vmatpush1.bf16.msra.mxu0 0
        %659 = vmatprep.subr.bf16.mxu0 0
        %660 = vmatpush1.bf16.msra.mxu0 0
        %661 = vmatprep.subr.bf16.mxu0 0
        %662 = vmatpush1.bf16.msra.mxu0 0
        %663 = vmatprep.subr.bf16.mxu0 0
        %664 = vmatpush1.bf16.msra.mxu0 0
        %665 = vmatprep.mubr.bf16.mxu0 0
        %666 = vmatmul.mubr.bf16.gmra.mrb[0].mxu0 %v631
        %v667 = vpop.f32.mrb[0].mxu0
        %v668 = vadd.f32 0.0, %v667
        %v669 = vpop.f32.mrb[0].mxu0
        %v670 = vpop.f32.mrb[0].mxu0
        %v671 = vpop.f32.mrb[0].mxu0
        %672 = vdwg.mxu0
        %vm673 = vcmask 39936
        %v675 = vsel %vm673, %v608, 0
        %vm677 = vcmask 1041408
        %vm678 = vcmask 1042432
        %v679 = vsel %vm677, 4294967295, 65535
        %v680 = vsel %vm678, %v679, 0
        %v682 = vand.u32 %v611, %v680
        %684 = vmatprep.subr.bf16.mxu0 0
        %685 = vmatpush1.bf16.msra.mxu0 %v682
        %686 = vmatprep.subr.bf16.mxu0 0
        %687 = vmatpush1.bf16.msra.mxu0 0
        %688 = vmatprep.subr.bf16.mxu0 0
        %689 = vmatpush1.bf16.msra.mxu0 0
        %690 = vmatprep.subr.bf16.mxu0 0
        %691 = vmatpush1.bf16.msra.mxu0 0
        %692 = vmatprep.subr.bf16.mxu0 0
        %693 = vmatpush1.bf16.msra.mxu0 0
        %694 = vmatprep.subr.bf16.mxu0 0
        %695 = vmatpush1.bf16.msra.mxu0 0
        %696 = vmatprep.subr.bf16.mxu0 0
        %697 = vmatpush1.bf16.msra.mxu0 0
        %698 = vmatprep.subr.bf16.mxu0 0
        %699 = vmatpush1.bf16.msra.mxu0 0
        %700 = vmatprep.subr.bf16.mxu0 0
        %701 = vmatpush1.bf16.msra.mxu0 0
        %702 = vmatprep.subr.bf16.mxu0 0
        %703 = vmatpush1.bf16.msra.mxu0 0
        %704 = vmatprep.subr.bf16.mxu0 0
        %705 = vmatpush1.bf16.msra.mxu0 0
        %706 = vmatprep.subr.bf16.mxu0 0
        %707 = vmatpush1.bf16.msra.mxu0 0
        %708 = vmatprep.subr.bf16.mxu0 0
        %709 = vmatpush1.bf16.msra.mxu0 0
        %710 = vmatprep.subr.bf16.mxu0 0
        %711 = vmatpush1.bf16.msra.mxu0 0
        %712 = vmatprep.subr.bf16.mxu0 0
        %713 = vmatpush1.bf16.msra.mxu0 0
        %714 = vmatprep.subr.bf16.mxu0 0
        %715 = vmatpush1.bf16.msra.mxu0 0
        %716 = vmatprep.mubr.bf16.mxu0 0
        %717 = vmatmul.mubr.bf16.gmra.mrb[0].mxu0 %v675
        %v718 = vpop.f32.mrb[0].mxu0
        %v719 = vadd.f32 %v668, %v718
        %v720 = vpop.f32.mrb[0].mxu0
        %v721 = vpop.f32.mrb[0].mxu0
        %v722 = vpop.f32.mrb[0].mxu0
        %723 = vdwg.mxu0
        %v724 = vld [vmem:[%s7] sm:$0x1]
        %v726 = vlaneseq
        %v727 = vshrl.u32 %v726, 7
        %v728 = vsub.s32 0, %v727
        %v729 = vrot.slane %v724, %v728
        %v731 = vadd.f32 %v719, %v729
        %v732 = vxor.u32 %v731, 2147483648
        %v733 = vmul.f32 %v732, 1.442695
        %v734 = vpow.pop %v733
        %v735 = vadd.f32 %v734, 1.0
        %v736 = vrcp.pop %v735
        %v737 = vmul.f32 1.0, %v736
        %v738 = vtanh.pop %v731
        %740 = vrot.lane.b32.xlu0 %v610, 32
        %v741 = vpop.permute.xlu0 %740
        %v743 = vmul.f32 %v737, %v741
        %745 = vrot.lane.b32.xlu0 %v738, 64
        %v746 = vpop.permute.xlu0 %745
        %v748 = vmul.f32 %v737, %v746
        %750 = vrot.lane.b32.xlu0 %v748, 32
        %v751 = vpop.permute.xlu0 %750
        %v753 = vadd.f32 %v743, %v751
        %v754 = vtanh.pop %v753
        %756 = vrot.lane.b32.xlu0 %v754, 64
        %v757 = vpop.permute.xlu0 %756
        %v759 = vmul.f32 %v737, %v757
        %v760 = vpack.c.bf16 %v759, %v759
        %s761 = scalar_lea.vmem [#allocation2], 2
        %v762 = vld [vmem:[%s761] sm:$0x3]
        %s763 = scalar_lea.vmem [#allocation3], 2
        %v764 = vld [vmem:[%s763] sm:$0x3]
        %v765 = vld [vmem:[%s8] sm:$0xf]
        %v766 = vld [vmem:[%s8 + $0x4] sm:$0xf]
        %v767 = vld [vmem:[%s8 + $0x8] sm:$0xf]
        %v768 = vld [vmem:[%s8 + $0xc] sm:$0xf]
        %v769 = vpack.c.bf16 %v762, %v762
        %v770 = vld [vmem:[%s9] sm:$0xf]
        %v771 = vld [vmem:[%s9 + $0x4] sm:$0xf]
        %v772 = vld [vmem:[%s9 + $0x8] sm:$0xf]
        %v773 = vld [vmem:[%s9 + $0xc] sm:$0xf]
        %v778 = vunpack.c.l.b16 %v770
        %v779 = vunpack.c.l.b16 %v771
        %v780 = vunpack.c.l.b16 %v772
        %v781 = vunpack.c.l.b16 %v773
        %v782 = vpack.c.b16 %v779, %v778
        %v783 = vpack.c.b16 %v781, %v780
        %v787 = vsel %vm629, %v769, 0
        %789 = vmatprep.subr.bf16.mxu0 0
        %790 = vmatpush1.bf16.msra.mxu0 %v782
        %791 = vmatprep.subr.bf16.mxu0 0
        %792 = vmatpush1.bf16.msra.mxu0 %v783
        %793 = vmatprep.subr.bf16.mxu0 0
        %794 = vmatpush1.bf16.msra.mxu0 0
        %795 = vmatprep.subr.bf16.mxu0 0
        %796 = vmatpush1.bf16.msra.mxu0 0
        %797 = vmatprep.subr.bf16.mxu0 0
        %798 = vmatpush1.bf16.msra.mxu0 0
        %799 = vmatprep.subr.bf16.mxu0 0
        %800 = vmatpush1.bf16.msra.mxu0 0
        %801 = vmatprep.subr.bf16.mxu0 0
        %802 = vmatpush1.bf16.msra.mxu0 0
        %803 = vmatprep.subr.bf16.mxu0 0
        %804 = vmatpush1.bf16.msra.mxu0 0
        %805 = vmatprep.subr.bf16.mxu0 0
        %806 = vmatpush1.bf16.msra.mxu0 0
        %807 = vmatprep.subr.bf16.mxu0 0
        %808 = vmatpush1.bf16.msra.mxu0 0
        %809 = vmatprep.subr.bf16.mxu0 0
        %810 = vmatpush1.bf16.msra.mxu0 0
        %811 = vmatprep.subr.bf16.mxu0 0
        %812 = vmatpush1.bf16.msra.mxu0 0
        %813 = vmatprep.subr.bf16.mxu0 0
        %814 = vmatpush1.bf16.msra.mxu0 0
        %815 = vmatprep.subr.bf16.mxu0 0
        %816 = vmatpush1.bf16.msra.mxu0 0
        %817 = vmatprep.subr.bf16.mxu0 0
        %818 = vmatpush1.bf16.msra.mxu0 0
        %819 = vmatprep.subr.bf16.mxu0 0
        %820 = vmatpush1.bf16.msra.mxu0 0
        %821 = vmatprep.mubr.bf16.mxu0 0
        %822 = vmatmul.mubr.bf16.gmra.mrb[0].mxu0 %v787
        %v823 = vpop.f32.mrb[0].mxu0
        %v824 = vadd.f32 0.0, %v823
        %v825 = vpop.f32.mrb[0].mxu0
        %v826 = vpop.f32.mrb[0].mxu0
        %v827 = vpop.f32.mrb[0].mxu0
        %828 = vdwg.mxu0
        %830 = vrot.lane.b32.xlu0 %v760, 32
        %v831 = vpop.permute.xlu0 %830
        %v836 = vunpack.c.l.b16 %v765
        %v837 = vunpack.c.l.b16 %v766
        %v838 = vunpack.c.l.b16 %v767
        %v839 = vunpack.c.l.b16 %v768
        %v840 = vpack.c.b16 %v837, %v836
        %v841 = vpack.c.b16 %v839, %v838
        %v845 = vsel %vm629, %v831, 0
        %847 = vmatprep.subr.bf16.mxu0 0
        %848 = vmatpush1.bf16.msra.mxu0 %v840
        %849 = vmatprep.subr.bf16.mxu0 0
        %850 = vmatpush1.bf16.msra.mxu0 %v841
        %851 = vmatprep.subr.bf16.mxu0 0
        %852 = vmatpush1.bf16.msra.mxu0 0
        %853 = vmatprep.subr.bf16.mxu0 0
        %854 = vmatpush1.bf16.msra.mxu0 0
        %855 = vmatprep.subr.bf16.mxu0 0
        %856 = vmatpush1.bf16.msra.mxu0 0
        %857 = vmatprep.subr.bf16.mxu0 0
        %858 = vmatpush1.bf16.msra.mxu0 0
        %859 = vmatprep.subr.bf16.mxu0 0
        %860 = vmatpush1.bf16.msra.mxu0 0
        %861 = vmatprep.subr.bf16.mxu0 0
        %862 = vmatpush1.bf16.msra.mxu0 0
        %863 = vmatprep.subr.bf16.mxu0 0
        %864 = vmatpush1.bf16.msra.mxu0 0
        %865 = vmatprep.subr.bf16.mxu0 0
        %866 = vmatpush1.bf16.msra.mxu0 0
        %867 = vmatprep.subr.bf16.mxu0 0
        %868 = vmatpush1.bf16.msra.mxu0 0
        %869 = vmatprep.subr.bf16.mxu0 0
        %870 = vmatpush1.bf16.msra.mxu0 0
        %871 = vmatprep.subr.bf16.mxu0 0
        %872 = vmatpush1.bf16.msra.mxu0 0
        %873 = vmatprep.subr.bf16.mxu0 0
        %874 = vmatpush1.bf16.msra.mxu0 0
        %875 = vmatprep.subr.bf16.mxu0 0
        %876 = vmatpush1.bf16.msra.mxu0 0
        %877 = vmatprep.subr.bf16.mxu0 0
        %878 = vmatpush1.bf16.msra.mxu0 0
        %879 = vmatprep.mubr.bf16.mxu0 0
        %880 = vmatmul.mubr.bf16.gmra.mrb[0].mxu0 %v845
        %v881 = vpop.f32.mrb[0].mxu0
        %v882 = vadd.f32 %v824, %v881
        %v883 = vpop.f32.mrb[0].mxu0
        %v884 = vpop.f32.mrb[0].mxu0
        %v885 = vpop.f32.mrb[0].mxu0
        %886 = vdwg.mxu0
        %v887 = vld [vmem:[%s10] sm:$0x1]
        %v889 = vlaneseq
        %v890 = vshrl.u32 %v889, 7
        %v891 = vsub.s32 0, %v890
        %v892 = vrot.slane %v887, %v891
        %v894 = vadd.f32 %v882, %v892
        %v895 = vxor.u32 %v894, 2147483648
        %v896 = vmul.f32 %v895, 1.442695
        %v897 = vpow.pop %v896
        %v898 = vadd.f32 %v897, 1.0
        %v899 = vrcp.pop %v898
        %v900 = vmul.f32 1.0, %v899
        %v901 = vtanh.pop %v894
        %903 = vrot.lane.b32.xlu0 %v764, 32
        %v904 = vpop.permute.xlu0 %903
        %v906 = vmul.f32 %v900, %v904
        %908 = vrot.lane.b32.xlu0 %v901, 64
        %v909 = vpop.permute.xlu0 %908
        %v911 = vmul.f32 %v900, %v909
        %913 = vrot.lane.b32.xlu0 %v911, 32
        %v914 = vpop.permute.xlu0 %913
        %v916 = vadd.f32 %v906, %v914
        %v917 = vtanh.pop %v916
        %919 = vrot.lane.b32.xlu0 %v917, 64
        %v920 = vpop.permute.xlu0 %919
        %v922 = vmul.f32 %v900, %v920
        %924 = vrot.lane.b32.xlu0 %v759, 32
        %v925 = vpop.permute.xlu0 %924
        %vm927 = vcmask 254976
        %928 = vst.msk [vmem:[#allocation2] sm:$0x3] %vm927, %v925
        %930 = vrot.lane.b32.xlu0 %v922, 32
        %v931 = vpop.permute.xlu0 %930
        %933 = vst.msk [vmem:[%s761] sm:$0x3] %vm927, %v931
        %935 = vrot.lane.b32.xlu0 %v753, 96
        %v936 = vpop.permute.xlu0 %935
        %938 = vst.msk [vmem:[#allocation3] sm:$0x3] %vm927, %v936
        %940 = vrot.lane.b32.xlu0 %v916, 96
        %v941 = vpop.permute.xlu0 %940
        %943 = vst.msk [vmem:[%s763] sm:$0x3] %vm927, %v941
        %v944 = vld [vmem:[%s3] sm:$0xf]
        %v945 = vld [vmem:[%s3 + $0x4] sm:$0xf]
        %v946 = vld [vmem:[%s3 + $0x8] sm:$0xf]
        %v947 = vld [vmem:[%s3 + $0xc] sm:$0xf]
        %v948 = vld [vmem:[%s3 + $0x10] sm:$0xf]
        %v949 = vld [vmem:[%s3 + $0x14] sm:$0xf]
        %v950 = vld [vmem:[%s3 + $0x18] sm:$0xf]
        %v951 = vld [vmem:[%s3 + $0x1c] sm:$0xf]
        %v952 = vld [vmem:[%s3 + $0x20] sm:$0xf]
        %v953 = vld [vmem:[%s3 + $0x24] sm:$0xf]
        %v954 = vld [vmem:[%s3 + $0x28] sm:$0xf]
        %v955 = vld [vmem:[%s3 + $0x2c] sm:$0xf]
        %v956 = vld [vmem:[%s3 + $0x30] sm:$0xf]
        %v957 = vld [vmem:[%s3 + $0x34] sm:$0xf]
        %v958 = vld [vmem:[%s3 + $0x38] sm:$0xf]
        %v959 = vld [vmem:[%s3 + $0x3c] sm:$0xf]
        %v960 = vld [vmem:[%s3 + $0x40] sm:$0xf]
        %v961 = vld [vmem:[%s3 + $0x44] sm:$0xf]
        %v962 = vld [vmem:[%s3 + $0x48] sm:$0xf]
        %v963 = vld [vmem:[%s3 + $0x4c] sm:$0xf]
        %v964 = vld [vmem:[%s3 + $0x50] sm:$0xf]
        %v965 = vld [vmem:[%s3 + $0x54] sm:$0xf]
        %v966 = vld [vmem:[%s3 + $0x58] sm:$0xf]
        %v967 = vld [vmem:[%s3 + $0x5c] sm:$0xf]
        %v968 = vld [vmem:[%s3 + $0x60] sm:$0xf]
        %v969 = vld [vmem:[%s3 + $0x64] sm:$0xf]
        %v970 = vld [vmem:[%s3 + $0x68] sm:$0xf]
        %v971 = vld [vmem:[%s3 + $0x6c] sm:$0xf]
        %v972 = vld [vmem:[%s3 + $0x70] sm:$0xf]
        %v973 = vld [vmem:[%s3 + $0x74] sm:$0xf]
        %v974 = vld [vmem:[%s3 + $0x78] sm:$0xf]
        %v975 = vld [vmem:[%s3 + $0x7c] sm:$0xf]
        %v976 = vpack.c.bf16 %v922, %v922
        %v979 = vunpack.c.l.s4 1966171168
        %v980 = vunpack.c.0.s8 %v979
        %v981 = vlaneseq
        %v982 = vshrl.u32 %v981, 7
        %v983 = vsub.s32 %v980, %v982
        %v984 = vrot.slane %v976, %v983
        %v986 = vunpack.c.l.s4 1966171168
        %v987 = vunpack.c.0.s8 %v986
        %v988 = vlaneseq
        %v989 = vshrl.u32 %v988, 7
        %v990 = vsub.s32 %v987, %v989
        %v991 = vrot.slane %v984, %v990
        %v992 = vunpack.i.l.s16 %v991
        %v993 = vunpack.i.h.s16 %v991
        %v994 = vpack.i.b16 %v992, %v992
        %v995 = vlaneseq
        %v996 = vshrl.u32 %v995, 7
        %v997 = vsub.s32 0, %v996
        %v998 = vrot.slane %v994, %v997
        %999 = vrot.lane.b32.xlu0 %v998, 32
        %v1000 = vpop.permute.xlu0 %999
        %v1017 = vunpack.c.l.b16 %v944
        %v1018 = vunpack.c.l.b16 %v945
        %v1019 = vunpack.c.l.b16 %v946
        %v1020 = vunpack.c.l.b16 %v947
        %v1021 = vunpack.c.l.b16 %v948
        %v1022 = vunpack.c.l.b16 %v949
        %v1023 = vunpack.c.l.b16 %v950
        %v1024 = vunpack.c.l.b16 %v951
        %v1025 = vunpack.c.l.b16 %v952
        %v1026 = vunpack.c.l.b16 %v953
        %v1027 = vunpack.c.l.b16 %v954
        %v1028 = vunpack.c.l.b16 %v955
        %v1029 = vunpack.c.l.b16 %v956
        %v1030 = vunpack.c.l.b16 %v957
        %v1031 = vunpack.c.l.b16 %v958
        %v1032 = vunpack.c.l.b16 %v959
        %v1033 = vpack.c.b16 %v1018, %v1017
        %v1034 = vpack.c.b16 %v1020, %v1019
        %v1035 = vpack.c.b16 %v1022, %v1021
        %v1036 = vpack.c.b16 %v1024, %v1023
        %v1037 = vpack.c.b16 %v1026, %v1025
        %v1038 = vpack.c.b16 %v1028, %v1027
        %v1039 = vpack.c.b16 %v1030, %v1029
        %v1040 = vpack.c.b16 %v1032, %v1031
        %v1042 = vsel %vm629, %v1000, 0
        %v1045 = vsel %vm629, %v1033, 0
        %v1048 = vsel %vm629, %v1034, 0
        %v1051 = vsel %vm629, %v1035, 0
        %v1054 = vsel %vm629, %v1036, 0
        %v1057 = vsel %vm629, %v1037, 0
        %v1060 = vsel %vm629, %v1038, 0
        %v1063 = vsel %vm629, %v1039, 0
        %v1066 = vsel %vm629, %v1040, 0
        %1068 = vmatprep.subr.bf16.mxu0 0
        %1069 = vmatpush1.bf16.xpose.msra.mxu0 %v1045
        %1070 = vmatprep.subr.bf16.mxu0 0
        %1071 = vmatpush1.bf16.xpose.msra.mxu0 %v1048
        %1072 = vmatprep.subr.bf16.mxu0 0
        %1073 = vmatpush1.bf16.xpose.msra.mxu0 %v1051
        %1074 = vmatprep.subr.bf16.mxu0 0
        %1075 = vmatpush1.bf16.xpose.msra.mxu0 %v1054
        %1076 = vmatprep.subr.bf16.mxu0 0
        %1077 = vmatpush1.bf16.xpose.msra.mxu0 %v1057
        %1078 = vmatprep.subr.bf16.mxu0 0
        %1079 = vmatpush1.bf16.xpose.msra.mxu0 %v1060
        %1080 = vmatprep.subr.bf16.mxu0 0
        %1081 = vmatpush1.bf16.xpose.msra.mxu0 %v1063
        %1082 = vmatprep.subr.bf16.mxu0 0
        %1083 = vmatpush1.bf16.xpose.msra.mxu0 %v1066
        %1084 = vmatprep.subr.bf16.mxu0 0
        %1085 = vmatpush1.bf16.xpose.msra.mxu0 0
        %1086 = vmatprep.subr.bf16.mxu0 0
        %1087 = vmatpush1.bf16.xpose.msra.mxu0 0
        %1088 = vmatprep.subr.bf16.mxu0 0
        %1089 = vmatpush1.bf16.xpose.msra.mxu0 0
        %1090 = vmatprep.subr.bf16.mxu0 0
        %1091 = vmatpush1.bf16.xpose.msra.mxu0 0
        %1092 = vmatprep.subr.bf16.mxu0 0
        %1093 = vmatpush1.bf16.xpose.msra.mxu0 0
        %1094 = vmatprep.subr.bf16.mxu0 0
        %1095 = vmatpush1.bf16.xpose.msra.mxu0 0
        %1096 = vmatprep.subr.bf16.mxu0 0
        %1097 = vmatpush1.bf16.xpose.msra.mxu0 0
        %1098 = vmatprep.subr.bf16.mxu0 0
        %1099 = vmatpush1.bf16.xpose.msra.mxu0 0
        %1100 = vmatprep.mubr.bf16.mxu0 0
        %1101 = vmatmul.mubr.bf16.gmra.mrb[0].mxu0 %v1042
        %v1102 = vpop.f32.mrb[0].mxu0
        %v1103 = vadd.f32 0.0, %v1102
        %v1104 = vpop.f32.mrb[0].mxu0
        %v1105 = vpop.f32.mrb[0].mxu0
        %v1106 = vpop.f32.mrb[0].mxu0
        %1107 = vdwg.mxu0
        %v1108 = vpack.i.b16 %v993, %v993
        %v1109 = vlaneseq
        %v1110 = vshrl.u32 %v1109, 7
        %v1111 = vsub.s32 0, %v1110
        %v1112 = vrot.slane %v1108, %v1111
        %1113 = vrot.lane.b32.xlu0 %v1112, 32
        %v1114 = vpop.permute.xlu0 %1113
        %v1131 = vunpack.c.l.b16 %v960
        %v1132 = vunpack.c.l.b16 %v961
        %v1133 = vunpack.c.l.b16 %v962
        %v1134 = vunpack.c.l.b16 %v963
        %v1135 = vunpack.c.l.b16 %v964
        %v1136 = vunpack.c.l.b16 %v965
        %v1137 = vunpack.c.l.b16 %v966
        %v1138 = vunpack.c.l.b16 %v967
        %v1139 = vunpack.c.l.b16 %v968
        %v1140 = vunpack.c.l.b16 %v969
        %v1141 = vunpack.c.l.b16 %v970
        %v1142 = vunpack.c.l.b16 %v971
        %v1143 = vunpack.c.l.b16 %v972
        %v1144 = vunpack.c.l.b16 %v973
        %v1145 = vunpack.c.l.b16 %v974
        %v1146 = vunpack.c.l.b16 %v975
        %v1147 = vpack.c.b16 %v1132, %v1131
        %v1148 = vpack.c.b16 %v1134, %v1133
        %v1149 = vpack.c.b16 %v1136, %v1135
        %v1150 = vpack.c.b16 %v1138, %v1137
        %v1151 = vpack.c.b16 %v1140, %v1139
        %v1152 = vpack.c.b16 %v1142, %v1141
        %v1153 = vpack.c.b16 %v1144, %v1143
        %v1154 = vpack.c.b16 %v1146, %v1145
        %v1156 = vsel %vm629, %v1114, 0
        %v1159 = vsel %vm629, %v1147, 0
        %v1162 = vsel %vm629, %v1148, 0
        %v1165 = vsel %vm629, %v1149, 0
        %v1168 = vsel %vm629, %v1150, 0
        %v1171 = vsel %vm629, %v1151, 0
        %v1174 = vsel %vm629, %v1152, 0
        %v1177 = vsel %vm629, %v1153, 0
        %v1180 = vsel %vm629, %v1154, 0
        %1182 = vmatprep.subr.bf16.mxu0 0
        %1183 = vmatpush1.bf16.xpose.msra.mxu0 %v1159
        %1184 = vmatprep.subr.bf16.mxu0 0
        %1185 = vmatpush1.bf16.xpose.msra.mxu0 %v1162
        %1186 = vmatprep.subr.bf16.mxu0 0
        %1187 = vmatpush1.bf16.xpose.msra.mxu0 %v1165
        %1188 = vmatprep.subr.bf16.mxu0 0
        %1189 = vmatpush1.bf16.xpose.msra.mxu0 %v1168
        %1190 = vmatprep.subr.bf16.mxu0 0
        %1191 = vmatpush1.bf16.xpose.msra.mxu0 %v1171
        %1192 = vmatprep.subr.bf16.mxu0 0
        %1193 = vmatpush1.bf16.xpose.msra.mxu0 %v1174
        %1194 = vmatprep.subr.bf16.mxu0 0
        %1195 = vmatpush1.bf16.xpose.msra.mxu0 %v1177
        %1196 = vmatprep.subr.bf16.mxu0 0
        %1197 = vmatpush1.bf16.xpose.msra.mxu0 %v1180
        %1198 = vmatprep.subr.bf16.mxu0 0
        %1199 = vmatpush1.bf16.xpose.msra.mxu0 0
        %1200 = vmatprep.subr.bf16.mxu0 0
        %1201 = vmatpush1.bf16.xpose.msra.mxu0 0
        %1202 = vmatprep.subr.bf16.mxu0 0
        %1203 = vmatpush1.bf16.xpose.msra.mxu0 0
        %1204 = vmatprep.subr.bf16.mxu0 0
        %1205 = vmatpush1.bf16.xpose.msra.mxu0 0
        %1206 = vmatprep.subr.bf16.mxu0 0
        %1207 = vmatpush1.bf16.xpose.msra.mxu0 0
        %1208 = vmatprep.subr.bf16.mxu0 0
        %1209 = vmatpush1.bf16.xpose.msra.mxu0 0
        %1210 = vmatprep.subr.bf16.mxu0 0
        %1211 = vmatpush1.bf16.xpose.msra.mxu0 0
        %1212 = vmatprep.subr.bf16.mxu0 0
        %1213 = vmatpush1.bf16.xpose.msra.mxu0 0
        %1214 = vmatprep.mubr.bf16.mxu0 0
        %1215 = vmatmul.mubr.bf16.gmra.mrb[0].mxu0 %v1156
        %v1216 = vpop.f32.mrb[0].mxu0
        %v1217 = vadd.f32 0.0, %v1216
        %v1218 = vpop.f32.mrb[0].mxu0
        %v1219 = vpop.f32.mrb[0].mxu0
        %v1220 = vpop.f32.mrb[0].mxu0
        %1221 = vdwg.mxu0
        %v1222 = vlaneseq
        %v1223 = vand.u32 %v1222, 127
        %vm1224 = vcmp.lt.s32.totalorder %v1223, 8
        %v1225 = vsel %vm1224, %v1103, -1e+30
        %v1226 = vsel %vm1224, %v1217, -1e+30
        %vm1227 = vcmask 1040384
        %v1228 = vsel %vm1227, %v1225, -inf
        %1229 = vmax.xlane.f32.xlu0 %v1228
        %v1230 = vpop.xlane.xlu0 %1229
        %v1231 = vsel %vm1227, %v1226, -inf
        %1232 = vmax.xlane.f32.xlu0 %v1231
        %v1233 = vpop.xlane.xlu0 %1232
        %v1234 = vsub.f32 %v1225, %v1230
        %v1235 = vsub.f32 %v1226, %v1233
        %v1236 = vmul.f32 %v1234, 1.442695
        %v1237 = vpow.pop %v1236
        %v1238 = vmul.f32 %v1235, 1.442695
        %v1239 = vpow.pop %v1238
        %v1240 = vsel %vm1227, %v1237, 0.0
        %1241 = vadd.xlane.f32.xlu0 %v1240
        %v1242 = vpop.xlane.xlu0 %1241
        %v1243 = vsel %vm1227, %v1239, 0.0
        %1244 = vadd.xlane.f32.xlu0 %v1243
        %v1245 = vpop.xlane.xlu0 %1244
        %v1246 = vrcp.pop %v1242
        %v1247 = vrcp.pop %v1245
        %v1248 = vmul.f32 %v1237, %v1246
        %v1249 = vmul.f32 %v1239, %v1247
        %v1250 = vpack.c.bf16 %v1248, %v1248
        %v1251 = vpack.c.bf16 %v1249, %v1249
        %v1255 = vunpack.c.l.s4 1966171168
        %v1256 = vunpack.c.0.s8 %v1255
        %v1257 = vlaneseq
        %v1258 = vshrl.u32 %v1257, 7
        %v1259 = vsub.s32 %v1256, %v1258
        %v1260 = vrot.slane %v1250, %v1259
        %v1262 = vunpack.c.l.s4 1966171168
        %v1263 = vunpack.c.0.s8 %v1262
        %v1264 = vlaneseq
        %v1265 = vshrl.u32 %v1264, 7
        %v1266 = vsub.s32 %v1263, %v1265
        %v1267 = vrot.slane %v1260, %v1266
        %v1269 = vunpack.c.l.s4 1966171168
        %v1270 = vunpack.c.0.s8 %v1269
        %v1271 = vlaneseq
        %v1272 = vshrl.u32 %v1271, 7
        %v1273 = vsub.s32 %v1270, %v1272
        %v1274 = vrot.slane %v1251, %v1273
        %v1276 = vunpack.c.l.s4 1966171168
        %v1277 = vunpack.c.0.s8 %v1276
        %v1278 = vlaneseq
        %v1279 = vshrl.u32 %v1278, 7
        %v1280 = vsub.s32 %v1277, %v1279
        %v1281 = vrot.slane %v1274, %v1280
        %v1283 = vunpack.c.l.s4 1935823168
        %v1284 = vunpack.c.0.s8 %v1283
        %v1285 = vlaneseq
        %v1286 = vshrl.u32 %v1285, 7
        %v1287 = vsub.s32 %v1284, %v1286
        %v1288 = vrot.slane %v1267, %v1287
        %v1290 = vunpack.c.l.s4 1935823168
        %v1291 = vunpack.c.0.s8 %v1290
        %v1292 = vlaneseq
        %v1293 = vshrl.u32 %v1292, 7
        %v1294 = vsub.s32 %v1291, %v1293
        %v1295 = vrot.slane %v1288, %v1294
        %v1297 = vunpack.c.l.s4 1935823168
        %v1298 = vunpack.c.0.s8 %v1297
        %v1299 = vlaneseq
        %v1300 = vshrl.u32 %v1299, 7
        %v1301 = vsub.s32 %v1298, %v1300
        %v1302 = vrot.slane %v1281, %v1301
        %v1304 = vunpack.c.l.s4 1935823168
        %v1305 = vunpack.c.0.s8 %v1304
        %v1306 = vlaneseq
        %v1307 = vshrl.u32 %v1306, 7
        %v1308 = vsub.s32 %v1305, %v1307
        %v1309 = vrot.slane %v1302, %v1308
        %v1310 = vunpack.c.l.b16 %v1295
        %v1311 = vunpack.c.l.b16 %v1309
        %v1312 = vrot.slane %v1311, 7
        %vm1313 = vcmask 1041409
        %v1314 = vsel %vm1313, %v1312, %v1310
        %v1315 = vpack.c.b16 %v1314, %v1314
        %v1317 = vunpack.c.l.s4 1966171168
        %v1318 = vunpack.c.0.s8 %v1317
        %v1319 = vlaneseq
        %v1320 = vshrl.u32 %v1319, 7
        %v1321 = vsub.s32 %v1318, %v1320
        %v1322 = vrot.slane %v1315, %v1321
        %v1324 = vunpack.c.l.s4 1966171168
        %v1325 = vunpack.c.0.s8 %v1324
        %v1326 = vlaneseq
        %v1327 = vshrl.u32 %v1326, 7
        %v1328 = vsub.s32 %v1325, %v1327
        %v1329 = vrot.slane %v1322, %v1328
        %1331 = vst [vmem:[%s592] sm:$0x1] %v1329
        %1340 = vmatprep.subr.bf16.mxu0 0
        %1341 = vmatpush1.bf16.msra.mxu0 %v1033
        %1342 = vmatprep.subr.bf16.mxu0 0
        %1343 = vmatpush1.bf16.msra.mxu0 %v1034
        %1344 = vmatprep.subr.bf16.mxu0 0
        %1345 = vmatpush1.bf16.msra.mxu0 %v1035
        %1346 = vmatprep.subr.bf16.mxu0 0
        %1347 = vmatpush1.bf16.msra.mxu0 %v1036
        %1348 = vmatprep.subr.bf16.mxu0 0
        %1349 = vmatpush1.bf16.msra.mxu0 %v1037
        %1350 = vmatprep.subr.bf16.mxu0 0
        %1351 = vmatpush1.bf16.msra.mxu0 %v1038
        %1352 = vmatprep.subr.bf16.mxu0 0
        %1353 = vmatpush1.bf16.msra.mxu0 %v1039
        %1354 = vmatprep.subr.bf16.mxu0 0
        %1355 = vmatpush1.bf16.msra.mxu0 %v1040
        %1356 = vmatprep.subr.bf16.mxu0 0
        %1357 = vmatpush1.bf16.msra.mxu0 0
        %1358 = vmatprep.subr.bf16.mxu0 0
        %1359 = vmatpush1.bf16.msra.mxu0 0
        %1360 = vmatprep.subr.bf16.mxu0 0
        %1361 = vmatpush1.bf16.msra.mxu0 0
        %1362 = vmatprep.subr.bf16.mxu0 0
        %1363 = vmatpush1.bf16.msra.mxu0 0
        %1364 = vmatprep.subr.bf16.mxu0 0
        %1365 = vmatpush1.bf16.msra.mxu0 0
        %1366 = vmatprep.subr.bf16.mxu0 0
        %1367 = vmatpush1.bf16.msra.mxu0 0
        %1368 = vmatprep.subr.bf16.mxu0 0
        %1369 = vmatpush1.bf16.msra.mxu0 0
        %1370 = vmatprep.subr.bf16.mxu0 0
        %1371 = vmatpush1.bf16.msra.mxu0 0
        %1372 = vmatprep.mubr.bf16.mxu0 0
        %1373 = vmatmul.mubr.bf16.gmra.mrb[0].mxu0 %v1250
        %v1374 = vpop.f32.mrb[0].mxu0
        %v1375 = vadd.f32 0.0, %v1374
        %v1376 = vpop.f32.mrb[0].mxu0
        %v1377 = vpop.f32.mrb[0].mxu0
        %v1378 = vpop.f32.mrb[0].mxu0
        %1379 = vdwg.mxu0
        %1388 = vmatprep.subr.bf16.mxu0 0
        %1389 = vmatpush1.bf16.msra.mxu0 %v1147
        %1390 = vmatprep.subr.bf16.mxu0 0
        %1391 = vmatpush1.bf16.msra.mxu0 %v1148
        %1392 = vmatprep.subr.bf16.mxu0 0
        %1393 = vmatpush1.bf16.msra.mxu0 %v1149
        %1394 = vmatprep.subr.bf16.mxu0 0
        %1395 = vmatpush1.bf16.msra.mxu0 %v1150
        %1396 = vmatprep.subr.bf16.mxu0 0
        %1397 = vmatpush1.bf16.msra.mxu0 %v1151
        %1398 = vmatprep.subr.bf16.mxu0 0
        %1399 = vmatpush1.bf16.msra.mxu0 %v1152
        %1400 = vmatprep.subr.bf16.mxu0 0
        %1401 = vmatpush1.bf16.msra.mxu0 %v1153
        %1402 = vmatprep.subr.bf16.mxu0 0
        %1403 = vmatpush1.bf16.msra.mxu0 %v1154
        %1404 = vmatprep.subr.bf16.mxu0 0
        %1405 = vmatpush1.bf16.msra.mxu0 0
        %1406 = vmatprep.subr.bf16.mxu0 0
        %1407 = vmatpush1.bf16.msra.mxu0 0
        %1408 = vmatprep.subr.bf16.mxu0 0
        %1409 = vmatpush1.bf16.msra.mxu0 0
        %1410 = vmatprep.subr.bf16.mxu0 0
        %1411 = vmatpush1.bf16.msra.mxu0 0
        %1412 = vmatprep.subr.bf16.mxu0 0
        %1413 = vmatpush1.bf16.msra.mxu0 0
        %1414 = vmatprep.subr.bf16.mxu0 0
        %1415 = vmatpush1.bf16.msra.mxu0 0
        %1416 = vmatprep.subr.bf16.mxu0 0
        %1417 = vmatpush1.bf16.msra.mxu0 0
        %1418 = vmatprep.subr.bf16.mxu0 0
        %1419 = vmatpush1.bf16.msra.mxu0 0
        %1420 = vmatprep.mubr.bf16.mxu0 0
        %1421 = vmatmul.mubr.bf16.gmra.mrb[0].mxu0 %v1251
        %v1422 = vpop.f32.mrb[0].mxu0
        %v1423 = vadd.f32 0.0, %v1422
        %v1424 = vpop.f32.mrb[0].mxu0
        %v1425 = vpop.f32.mrb[0].mxu0
        %v1426 = vpop.f32.mrb[0].mxu0
        %1427 = vdwg.mxu0
        %v1428 = vld [vmem:[%s11] sm:$0xf]
        %v1429 = vld [vmem:[%s11 + $0x4] sm:$0xf]
        %v1430 = vld [vmem:[%s11 + $0x8] sm:$0xf]
        %v1431 = vld [vmem:[%s11 + $0xc] sm:$0xf]
        %v1432 = vpack.c.bf16 %v1375, %v1375
        %v1433 = vpack.c.bf16 %v1423, %v1423
        %v1434 = vld [vmem:[%s12] sm:$0xf]
        %v1435 = vld [vmem:[%s12 + $0x4] sm:$0xf]
        %v1436 = vld [vmem:[%s12 + $0x8] sm:$0xf]
        %v1437 = vld [vmem:[%s12 + $0xc] sm:$0xf]
        %v1440 = vunpack.c.l.b16 %v1432
        %v1441 = vunpack.c.l.b16 %v1433
        %v1442 = vrot.slane %v1441, 7
        %v1443 = vsel %vm1313, %v1442, %v1440
        %v1444 = vpack.c.b16 %v1443, %v1443
        %v1449 = vunpack.c.l.b16 %v1434
        %v1450 = vunpack.c.l.b16 %v1435
        %v1451 = vunpack.c.l.b16 %v1436
        %v1452 = vunpack.c.l.b16 %v1437
        %v1453 = vpack.c.b16 %v1450, %v1449
        %v1454 = vpack.c.b16 %v1452, %v1451
        %v1458 = vsel %vm629, %v1444, 0
        %1460 = vmatprep.subr.bf16.mxu0 0
        %1461 = vmatpush1.bf16.msra.mxu0 %v1453
        %1462 = vmatprep.subr.bf16.mxu0 0
        %1463 = vmatpush1.bf16.msra.mxu0 %v1454
        %1464 = vmatprep.subr.bf16.mxu0 0
        %1465 = vmatpush1.bf16.msra.mxu0 0
        %1466 = vmatprep.subr.bf16.mxu0 0
        %1467 = vmatpush1.bf16.msra.mxu0 0
        %1468 = vmatprep.subr.bf16.mxu0 0
        %1469 = vmatpush1.bf16.msra.mxu0 0
        %1470 = vmatprep.subr.bf16.mxu0 0
        %1471 = vmatpush1.bf16.msra.mxu0 0
        %1472 = vmatprep.subr.bf16.mxu0 0
        %1473 = vmatpush1.bf16.msra.mxu0 0
        %1474 = vmatprep.subr.bf16.mxu0 0
        %1475 = vmatpush1.bf16.msra.mxu0 0
        %1476 = vmatprep.subr.bf16.mxu0 0
        %1477 = vmatpush1.bf16.msra.mxu0 0
        %1478 = vmatprep.subr.bf16.mxu0 0
        %1479 = vmatpush1.bf16.msra.mxu0 0
        %1480 = vmatprep.subr.bf16.mxu0 0
        %1481 = vmatpush1.bf16.msra.mxu0 0
        %1482 = vmatprep.subr.bf16.mxu0 0
        %1483 = vmatpush1.bf16.msra.mxu0 0
        %1484 = vmatprep.subr.bf16.mxu0 0
        %1485 = vmatpush1.bf16.msra.mxu0 0
        %1486 = vmatprep.subr.bf16.mxu0 0
        %1487 = vmatpush1.bf16.msra.mxu0 0
        %1488 = vmatprep.subr.bf16.mxu0 0
        %1489 = vmatpush1.bf16.msra.mxu0 0
        %1490 = vmatprep.subr.bf16.mxu0 0
        %1491 = vmatpush1.bf16.msra.mxu0 0
        %1492 = vmatprep.mubr.bf16.mxu0 0
        %1493 = vmatmul.mubr.bf16.gmra.mrb[0].mxu0 %v1458
        %v1494 = vpop.f32.mrb[0].mxu0
        %v1495 = vadd.f32 0.0, %v1494
        %v1496 = vpop.f32.mrb[0].mxu0
        %v1497 = vpop.f32.mrb[0].mxu0
        %v1498 = vpop.f32.mrb[0].mxu0
        %1499 = vdwg.mxu0
        %1500 = vrot.lane.b32.xlu0 %v976, 32
        %v1501 = vpop.permute.xlu0 %1500
        %v1506 = vunpack.c.l.b16 %v1428
        %v1507 = vunpack.c.l.b16 %v1429
        %v1508 = vunpack.c.l.b16 %v1430
        %v1509 = vunpack.c.l.b16 %v1431
        %v1510 = vpack.c.b16 %v1507, %v1506
        %v1511 = vpack.c.b16 %v1509, %v1508
        %v1515 = vsel %vm629, %v1501, 0
        %1517 = vmatprep.subr.bf16.mxu0 0
        %1518 = vmatpush1.bf16.msra.mxu0 %v1510
        %1519 = vmatprep.subr.bf16.mxu0 0
        %1520 = vmatpush1.bf16.msra.mxu0 %v1511
        %1521 = vmatprep.subr.bf16.mxu0 0
        %1522 = vmatpush1.bf16.msra.mxu0 0
        %1523 = vmatprep.subr.bf16.mxu0 0
        %1524 = vmatpush1.bf16.msra.mxu0 0
        %1525 = vmatprep.subr.bf16.mxu0 0
        %1526 = vmatpush1.bf16.msra.mxu0 0
        %1527 = vmatprep.subr.bf16.mxu0 0
        %1528 = vmatpush1.bf16.msra.mxu0 0
        %1529 = vmatprep.subr.bf16.mxu0 0
        %1530 = vmatpush1.bf16.msra.mxu0 0
        %1531 = vmatprep.subr.bf16.mxu0 0
        %1532 = vmatpush1.bf16.msra.mxu0 0
        %1533 = vmatprep.subr.bf16.mxu0 0
        %1534 = vmatpush1.bf16.msra.mxu0 0
        %1535 = vmatprep.subr.bf16.mxu0 0
        %1536 = vmatpush1.bf16.msra.mxu0 0
        %1537 = vmatprep.subr.bf16.mxu0 0
        %1538 = vmatpush1.bf16.msra.mxu0 0
        %1539 = vmatprep.subr.bf16.mxu0 0
        %1540 = vmatpush1.bf16.msra.mxu0 0
        %1541 = vmatprep.subr.bf16.mxu0 0
        %1542 = vmatpush1.bf16.msra.mxu0 0
        %1543 = vmatprep.subr.bf16.mxu0 0
        %1544 = vmatpush1.bf16.msra.mxu0 0
        %1545 = vmatprep.subr.bf16.mxu0 0
        %1546 = vmatpush1.bf16.msra.mxu0 0
        %1547 = vmatprep.subr.bf16.mxu0 0
        %1548 = vmatpush1.bf16.msra.mxu0 0
        %1549 = vmatprep.mubr.bf16.mxu0 0
        %1550 = vmatmul.mubr.bf16.gmra.mrb[0].mxu0 %v1515
        %v1551 = vpop.f32.mrb[0].mxu0
        %v1552 = vadd.f32 %v1495, %v1551
        %v1553 = vpop.f32.mrb[0].mxu0
        %v1554 = vpop.f32.mrb[0].mxu0
        %v1555 = vpop.f32.mrb[0].mxu0
        %1556 = vdwg.mxu0
        %v1557 = vld [vmem:[%s585] sm:$0xff]
        %v1558 = vld [vmem:[%s585 + $0x8] sm:$0xff]
        %v1559 = vld [vmem:[%s585 + $0x10] sm:$0xff]
        %v1560 = vld [vmem:[%s585 + $0x18] sm:$0xff]
        %v1561 = vld [vmem:[%s13] sm:$0xf]
        %v1562 = vld [vmem:[%s13 + $0x4] sm:$0xf]
        %v1563 = vld [vmem:[%s13 + $0x8] sm:$0xf]
        %v1564 = vld [vmem:[%s13 + $0xc] sm:$0xf]
        %v1565 = vld [vmem:[%s13 + $0x10] sm:$0xf]
        %v1566 = vld [vmem:[%s13 + $0x14] sm:$0xf]
        %v1567 = vld [vmem:[%s13 + $0x18] sm:$0xf]
        %v1568 = vld [vmem:[%s13 + $0x1c] sm:$0xf]
        %v1569 = vld [vmem:[%s13 + $0x20] sm:$0xf]
        %v1570 = vld [vmem:[%s13 + $0x24] sm:$0xf]
        %v1571 = vld [vmem:[%s13 + $0x28] sm:$0xf]
        %v1572 = vld [vmem:[%s13 + $0x2c] sm:$0xf]
        %v1573 = vld [vmem:[%s13 + $0x30] sm:$0xf]
        %v1574 = vld [vmem:[%s13 + $0x34] sm:$0xf]
        %v1575 = vld [vmem:[%s13 + $0x38] sm:$0xf]
        %v1576 = vld [vmem:[%s13 + $0x3c] sm:$0xf]
        %v1577 = vld [vmem:[%s13 + $0x40] sm:$0xf]
        %v1578 = vld [vmem:[%s13 + $0x44] sm:$0xf]
        %v1579 = vld [vmem:[%s13 + $0x48] sm:$0xf]
        %v1580 = vld [vmem:[%s13 + $0x4c] sm:$0xf]
        %v1581 = vld [vmem:[%s13 + $0x50] sm:$0xf]
        %v1582 = vld [vmem:[%s13 + $0x54] sm:$0xf]
        %v1583 = vld [vmem:[%s13 + $0x58] sm:$0xf]
        %v1584 = vld [vmem:[%s13 + $0x5c] sm:$0xf]
        %v1585 = vld [vmem:[%s13 + $0x60] sm:$0xf]
        %v1586 = vld [vmem:[%s13 + $0x64] sm:$0xf]
        %v1587 = vld [vmem:[%s13 + $0x68] sm:$0xf]
        %v1588 = vld [vmem:[%s13 + $0x6c] sm:$0xf]
        %v1589 = vld [vmem:[%s13 + $0x70] sm:$0xf]
        %v1590 = vld [vmem:[%s13 + $0x74] sm:$0xf]
        %v1591 = vld [vmem:[%s13 + $0x78] sm:$0xf]
        %v1592 = vld [vmem:[%s13 + $0x7c] sm:$0xf]
        %v1593 = vld [vmem:[%s13 + $0x80] sm:$0xf]
        %v1594 = vld [vmem:[%s13 + $0x84] sm:$0xf]
        %v1595 = vld [vmem:[%s13 + $0x88] sm:$0xf]
        %v1596 = vld [vmem:[%s13 + $0x8c] sm:$0xf]
        %v1597 = vld [vmem:[%s13 + $0x90] sm:$0xf]
        %v1598 = vld [vmem:[%s13 + $0x94] sm:$0xf]
        %v1599 = vld [vmem:[%s13 + $0x98] sm:$0xf]
        %v1600 = vld [vmem:[%s13 + $0x9c] sm:$0xf]
        %v1601 = vld [vmem:[%s13 + $0xa0] sm:$0xf]
        %v1602 = vld [vmem:[%s13 + $0xa4] sm:$0xf]
        %v1603 = vld [vmem:[%s13 + $0xa8] sm:$0xf]
        %v1604 = vld [vmem:[%s13 + $0xac] sm:$0xf]
        %v1605 = vld [vmem:[%s13 + $0xb0] sm:$0xf]
        %v1606 = vld [vmem:[%s13 + $0xb4] sm:$0xf]
        %v1607 = vld [vmem:[%s13 + $0xb8] sm:$0xf]
        %v1608 = vld [vmem:[%s13 + $0xbc] sm:$0xf]
        %v1609 = vld [vmem:[%s13 + $0xc0] sm:$0xf]
        %v1610 = vld [vmem:[%s13 + $0xc4] sm:$0xf]
        %v1611 = vld [vmem:[%s13 + $0xc8] sm:$0xf]
        %v1612 = vld [vmem:[%s13 + $0xcc] sm:$0xf]
        %v1613 = vld [vmem:[%s13 + $0xd0] sm:$0xf]
        %v1614 = vld [vmem:[%s13 + $0xd4] sm:$0xf]
        %v1615 = vld [vmem:[%s13 + $0xd8] sm:$0xf]
        %v1616 = vld [vmem:[%s13 + $0xdc] sm:$0xf]
        %v1617 = vld [vmem:[%s13 + $0xe0] sm:$0xf]
        %v1618 = vld [vmem:[%s13 + $0xe4] sm:$0xf]
        %v1619 = vld [vmem:[%s13 + $0xe8] sm:$0xf]
        %v1620 = vld [vmem:[%s13 + $0xec] sm:$0xf]
        %v1621 = vld [vmem:[%s13 + $0xf0] sm:$0xf]
        %v1622 = vld [vmem:[%s13 + $0xf4] sm:$0xf]
        %v1623 = vld [vmem:[%s13 + $0xf8] sm:$0xf]
        %v1624 = vld [vmem:[%s13 + $0xfc] sm:$0xf]
        %v1625 = vld [vmem:[%s13 + $0x100] sm:$0xf]
        %v1626 = vld [vmem:[%s13 + $0x104] sm:$0xf]
        %v1627 = vld [vmem:[%s13 + $0x108] sm:$0xf]
        %v1628 = vld [vmem:[%s13 + $0x10c] sm:$0xf]
        %v1629 = vld [vmem:[%s13 + $0x110] sm:$0xf]
        %v1630 = vld [vmem:[%s13 + $0x114] sm:$0xf]
        %v1631 = vld [vmem:[%s13 + $0x118] sm:$0xf]
        %v1632 = vld [vmem:[%s13 + $0x11c] sm:$0xf]
        %v1633 = vld [vmem:[%s13 + $0x120] sm:$0xf]
        %v1634 = vld [vmem:[%s13 + $0x124] sm:$0xf]
        %v1635 = vld [vmem:[%s13 + $0x128] sm:$0xf]
        %v1636 = vld [vmem:[%s13 + $0x12c] sm:$0xf]
        %v1637 = vld [vmem:[%s13 + $0x130] sm:$0xf]
        %v1638 = vld [vmem:[%s13 + $0x134] sm:$0xf]
        %v1639 = vld [vmem:[%s13 + $0x138] sm:$0xf]
        %v1640 = vld [vmem:[%s13 + $0x13c] sm:$0xf]
        %v1641 = vld [vmem:[%s13 + $0x140] sm:$0xf]
        %v1642 = vld [vmem:[%s13 + $0x144] sm:$0xf]
        %v1643 = vld [vmem:[%s13 + $0x148] sm:$0xf]
        %v1644 = vld [vmem:[%s13 + $0x14c] sm:$0xf]
        %v1645 = vld [vmem:[%s13 + $0x150] sm:$0xf]
        %v1646 = vld [vmem:[%s13 + $0x154] sm:$0xf]
        %v1647 = vld [vmem:[%s13 + $0x158] sm:$0xf]
        %v1648 = vld [vmem:[%s13 + $0x15c] sm:$0xf]
        %v1649 = vld [vmem:[%s13 + $0x160] sm:$0xf]
        %v1650 = vld [vmem:[%s13 + $0x164] sm:$0xf]
        %v1651 = vld [vmem:[%s13 + $0x168] sm:$0xf]
        %v1652 = vld [vmem:[%s13 + $0x16c] sm:$0xf]
        %v1653 = vld [vmem:[%s13 + $0x170] sm:$0xf]
        %v1654 = vld [vmem:[%s13 + $0x174] sm:$0xf]
        %v1655 = vld [vmem:[%s13 + $0x178] sm:$0xf]
        %v1656 = vld [vmem:[%s13 + $0x17c] sm:$0xf]
        %v1657 = vld [vmem:[%s13 + $0x180] sm:$0xf]
        %v1658 = vld [vmem:[%s13 + $0x184] sm:$0xf]
        %v1659 = vld [vmem:[%s13 + $0x188] sm:$0xf]
        %v1660 = vld [vmem:[%s13 + $0x18c] sm:$0xf]
        %v1661 = vld [vmem:[%s13 + $0x190] sm:$0xf]
        %v1662 = vld [vmem:[%s13 + $0x194] sm:$0xf]
        %v1663 = vld [vmem:[%s13 + $0x198] sm:$0xf]
        %v1664 = vld [vmem:[%s13 + $0x19c] sm:$0xf]
        %v1665 = vld [vmem:[%s13 + $0x1a0] sm:$0xf]
        %v1666 = vld [vmem:[%s13 + $0x1a4] sm:$0xf]
        %v1667 = vld [vmem:[%s13 + $0x1a8] sm:$0xf]
        %v1668 = vld [vmem:[%s13 + $0x1ac] sm:$0xf]
        %v1669 = vld [vmem:[%s13 + $0x1b0] sm:$0xf]
        %v1670 = vld [vmem:[%s13 + $0x1b4] sm:$0xf]
        %v1671 = vld [vmem:[%s13 + $0x1b8] sm:$0xf]
        %v1672 = vld [vmem:[%s13 + $0x1bc] sm:$0xf]
        %v1673 = vld [vmem:[%s13 + $0x1c0] sm:$0xf]
        %v1674 = vld [vmem:[%s13 + $0x1c4] sm:$0xf]
        %v1675 = vld [vmem:[%s13 + $0x1c8] sm:$0xf]
        %v1676 = vld [vmem:[%s13 + $0x1cc] sm:$0xf]
        %v1677 = vld [vmem:[%s13 + $0x1d0] sm:$0xf]
        %v1678 = vld [vmem:[%s13 + $0x1d4] sm:$0xf]
        %v1679 = vld [vmem:[%s13 + $0x1d8] sm:$0xf]
        %v1680 = vld [vmem:[%s13 + $0x1dc] sm:$0xf]
        %v1681 = vld [vmem:[%s13 + $0x1e0] sm:$0xf]
        %v1682 = vld [vmem:[%s13 + $0x1e4] sm:$0xf]
        %v1683 = vld [vmem:[%s13 + $0x1e8] sm:$0xf]
        %v1684 = vld [vmem:[%s13 + $0x1ec] sm:$0xf]
        %v1685 = vld [vmem:[%s13 + $0x1f0] sm:$0xf]
        %v1686 = vld [vmem:[%s13 + $0x1f4] sm:$0xf]
        %v1687 = vld [vmem:[%s13 + $0x1f8] sm:$0xf]
        %v1688 = vld [vmem:[%s13 + $0x1fc] sm:$0xf]
        %v1689 = vld [vmem:[%s13 + $0x200] sm:$0xf]
        %v1690 = vld [vmem:[%s13 + $0x204] sm:$0xf]
        %v1691 = vld [vmem:[%s13 + $0x208] sm:$0xf]
        %v1692 = vld [vmem:[%s13 + $0x20c] sm:$0xf]
        %v1693 = vld [vmem:[%s13 + $0x210] sm:$0xf]
        %v1694 = vld [vmem:[%s13 + $0x214] sm:$0xf]
        %v1695 = vld [vmem:[%s13 + $0x218] sm:$0xf]
        %v1696 = vld [vmem:[%s13 + $0x21c] sm:$0xf]
        %v1697 = vld [vmem:[%s13 + $0x220] sm:$0xf]
        %v1698 = vld [vmem:[%s13 + $0x224] sm:$0xf]
        %v1699 = vld [vmem:[%s13 + $0x228] sm:$0xf]
        %v1700 = vld [vmem:[%s13 + $0x22c] sm:$0xf]
        %v1701 = vld [vmem:[%s13 + $0x230] sm:$0xf]
        %v1702 = vld [vmem:[%s13 + $0x234] sm:$0xf]
        %v1703 = vld [vmem:[%s13 + $0x238] sm:$0xf]
        %v1704 = vld [vmem:[%s13 + $0x23c] sm:$0xf]
        %v1705 = vld [vmem:[%s13 + $0x240] sm:$0xf]
        %v1706 = vld [vmem:[%s13 + $0x244] sm:$0xf]
        %v1707 = vld [vmem:[%s13 + $0x248] sm:$0xf]
        %v1708 = vld [vmem:[%s13 + $0x24c] sm:$0xf]
        %v1709 = vld [vmem:[%s13 + $0x250] sm:$0xf]
        %v1710 = vld [vmem:[%s13 + $0x254] sm:$0xf]
        %v1711 = vld [vmem:[%s13 + $0x258] sm:$0xf]
        %v1712 = vld [vmem:[%s13 + $0x25c] sm:$0xf]
        %v1713 = vld [vmem:[%s13 + $0x260] sm:$0xf]
        %v1714 = vld [vmem:[%s13 + $0x264] sm:$0xf]
        %v1715 = vld [vmem:[%s13 + $0x268] sm:$0xf]
        %v1716 = vld [vmem:[%s13 + $0x26c] sm:$0xf]
        %v1717 = vld [vmem:[%s13 + $0x270] sm:$0xf]
        %v1718 = vld [vmem:[%s13 + $0x274] sm:$0xf]
        %v1719 = vld [vmem:[%s13 + $0x278] sm:$0xf]
        %v1720 = vld [vmem:[%s13 + $0x27c] sm:$0xf]
        %v1721 = vld [vmem:[%s13 + $0x280] sm:$0xf]
        %v1722 = vld [vmem:[%s13 + $0x284] sm:$0xf]
        %v1723 = vld [vmem:[%s13 + $0x288] sm:$0xf]
        %v1724 = vld [vmem:[%s13 + $0x28c] sm:$0xf]
        %v1725 = vld [vmem:[%s13 + $0x290] sm:$0xf]
        %v1726 = vld [vmem:[%s13 + $0x294] sm:$0xf]
        %v1727 = vld [vmem:[%s13 + $0x298] sm:$0xf]
        %v1728 = vld [vmem:[%s13 + $0x29c] sm:$0xf]
        %v1729 = vld [vmem:[%s13 + $0x2a0] sm:$0xf]
        %v1730 = vld [vmem:[%s13 + $0x2a4] sm:$0xf]
        %v1731 = vld [vmem:[%s13 + $0x2a8] sm:$0xf]
        %v1732 = vld [vmem:[%s13 + $0x2ac] sm:$0xf]
        %v1733 = vld [vmem:[%s13 + $0x2b0] sm:$0xf]
        %v1734 = vld [vmem:[%s13 + $0x2b4] sm:$0xf]
        %v1735 = vld [vmem:[%s13 + $0x2b8] sm:$0xf]
        %v1736 = vld [vmem:[%s13 + $0x2bc] sm:$0xf]
        %v1737 = vld [vmem:[%s13 + $0x2c0] sm:$0xf]
        %v1738 = vld [vmem:[%s13 + $0x2c4] sm:$0xf]
        %v1739 = vld [vmem:[%s13 + $0x2c8] sm:$0xf]
        %v1740 = vld [vmem:[%s13 + $0x2cc] sm:$0xf]
        %v1741 = vld [vmem:[%s13 + $0x2d0] sm:$0xf]
        %v1742 = vld [vmem:[%s13 + $0x2d4] sm:$0xf]
        %v1743 = vld [vmem:[%s13 + $0x2d8] sm:$0xf]
        %v1744 = vld [vmem:[%s13 + $0x2dc] sm:$0xf]
        %v1745 = vld [vmem:[%s13 + $0x2e0] sm:$0xf]
        %v1746 = vld [vmem:[%s13 + $0x2e4] sm:$0xf]
        %v1747 = vld [vmem:[%s13 + $0x2e8] sm:$0xf]
        %v1748 = vld [vmem:[%s13 + $0x2ec] sm:$0xf]
        %v1749 = vld [vmem:[%s13 + $0x2f0] sm:$0xf]
        %v1750 = vld [vmem:[%s13 + $0x2f4] sm:$0xf]
        %v1751 = vld [vmem:[%s13 + $0x2f8] sm:$0xf]
        %v1752 = vld [vmem:[%s13 + $0x2fc] sm:$0xf]
        %v1753 = vld [vmem:[%s13 + $0x300] sm:$0xf]
        %v1754 = vld [vmem:[%s13 + $0x304] sm:$0xf]
        %v1755 = vld [vmem:[%s13 + $0x308] sm:$0xf]
        %v1756 = vld [vmem:[%s13 + $0x30c] sm:$0xf]
        %v1757 = vld [vmem:[%s13 + $0x310] sm:$0xf]
        %v1758 = vld [vmem:[%s13 + $0x314] sm:$0xf]
        %v1759 = vld [vmem:[%s13 + $0x318] sm:$0xf]
        %v1760 = vld [vmem:[%s13 + $0x31c] sm:$0xf]
        %v1761 = vld [vmem:[%s13 + $0x320] sm:$0xf]
        %v1762 = vld [vmem:[%s13 + $0x324] sm:$0xf]
        %v1763 = vld [vmem:[%s13 + $0x328] sm:$0xf]
        %v1764 = vld [vmem:[%s13 + $0x32c] sm:$0xf]
        %v1765 = vld [vmem:[%s13 + $0x330] sm:$0xf]
        %v1766 = vld [vmem:[%s13 + $0x334] sm:$0xf]
        %v1767 = vld [vmem:[%s13 + $0x338] sm:$0xf]
        %v1768 = vld [vmem:[%s13 + $0x33c] sm:$0xf]
        %v1769 = vld [vmem:[%s13 + $0x340] sm:$0xf]
        %v1770 = vld [vmem:[%s13 + $0x344] sm:$0xf]
        %v1771 = vld [vmem:[%s13 + $0x348] sm:$0xf]
        %v1772 = vld [vmem:[%s13 + $0x34c] sm:$0xf]
        %v1773 = vld [vmem:[%s13 + $0x350] sm:$0xf]
        %v1774 = vld [vmem:[%s13 + $0x354] sm:$0xf]
        %v1775 = vld [vmem:[%s13 + $0x358] sm:$0xf]
        %v1776 = vld [vmem:[%s13 + $0x35c] sm:$0xf]
        %v1777 = vld [vmem:[%s13 + $0x360] sm:$0xf]
        %v1778 = vld [vmem:[%s13 + $0x364] sm:$0xf]
        %v1779 = vld [vmem:[%s13 + $0x368] sm:$0xf]
        %v1780 = vld [vmem:[%s13 + $0x36c] sm:$0xf]
        %v1781 = vld [vmem:[%s13 + $0x370] sm:$0xf]
        %v1782 = vld [vmem:[%s13 + $0x374] sm:$0xf]
        %v1783 = vld [vmem:[%s13 + $0x378] sm:$0xf]
        %v1784 = vld [vmem:[%s13 + $0x37c] sm:$0xf]
        %v1785 = vld [vmem:[%s13 + $0x380] sm:$0xf]
        %v1786 = vld [vmem:[%s13 + $0x384] sm:$0xf]
        %v1787 = vld [vmem:[%s13 + $0x388] sm:$0xf]
        %v1788 = vld [vmem:[%s13 + $0x38c] sm:$0xf]
        %v1789 = vld [vmem:[%s13 + $0x390] sm:$0xf]
        %v1790 = vld [vmem:[%s13 + $0x394] sm:$0xf]
        %v1791 = vld [vmem:[%s13 + $0x398] sm:$0xf]
        %v1792 = vld [vmem:[%s13 + $0x39c] sm:$0xf]
        %v1793 = vld [vmem:[%s13 + $0x3a0] sm:$0xf]
        %v1794 = vld [vmem:[%s13 + $0x3a4] sm:$0xf]
        %v1795 = vld [vmem:[%s13 + $0x3a8] sm:$0xf]
        %v1796 = vld [vmem:[%s13 + $0x3ac] sm:$0xf]
        %v1797 = vld [vmem:[%s13 + $0x3b0] sm:$0xf]
        %v1798 = vld [vmem:[%s13 + $0x3b4] sm:$0xf]
        %v1799 = vld [vmem:[%s13 + $0x3b8] sm:$0xf]
        %v1800 = vld [vmem:[%s13 + $0x3bc] sm:$0xf]
        %v1801 = vld [vmem:[%s13 + $0x3c0] sm:$0xf]
        %v1802 = vld [vmem:[%s13 + $0x3c4] sm:$0xf]
        %v1803 = vld [vmem:[%s13 + $0x3c8] sm:$0xf]
        %v1804 = vld [vmem:[%s13 + $0x3cc] sm:$0xf]
        %v1805 = vld [vmem:[%s13 + $0x3d0] sm:$0xf]
        %v1806 = vld [vmem:[%s13 + $0x3d4] sm:$0xf]
        %v1807 = vld [vmem:[%s13 + $0x3d8] sm:$0xf]
        %v1808 = vld [vmem:[%s13 + $0x3dc] sm:$0xf]
        %v1809 = vld [vmem:[%s13 + $0x3e0] sm:$0xf]
        %v1810 = vld [vmem:[%s13 + $0x3e4] sm:$0xf]
        %v1811 = vld [vmem:[%s13 + $0x3e8] sm:$0xf]
        %v1812 = vld [vmem:[%s13 + $0x3ec] sm:$0xf]
        %v1813 = vld [vmem:[%s13 + $0x3f0] sm:$0xf]
        %v1814 = vld [vmem:[%s13 + $0x3f4] sm:$0xf]
        %v1815 = vld [vmem:[%s13 + $0x3f8] sm:$0xf]
        %v1816 = vld [vmem:[%s13 + $0x3fc] sm:$0xf]
        %v1817 = vld [vmem:[%s13 + $0x400] sm:$0xf]
        %v1818 = vld [vmem:[%s13 + $0x404] sm:$0xf]
        %v1819 = vld [vmem:[%s13 + $0x408] sm:$0xf]
        %v1820 = vld [vmem:[%s13 + $0x40c] sm:$0xf]
        %v1821 = vld [vmem:[%s13 + $0x410] sm:$0xf]
        %v1822 = vld [vmem:[%s13 + $0x414] sm:$0xf]
        %v1823 = vld [vmem:[%s13 + $0x418] sm:$0xf]
        %v1824 = vld [vmem:[%s13 + $0x41c] sm:$0xf]
        %v1825 = vld [vmem:[%s13 + $0x420] sm:$0xf]
        %v1826 = vld [vmem:[%s13 + $0x424] sm:$0xf]
        %v1827 = vld [vmem:[%s13 + $0x428] sm:$0xf]
        %v1828 = vld [vmem:[%s13 + $0x42c] sm:$0xf]
        %v1829 = vld [vmem:[%s13 + $0x430] sm:$0xf]
        %v1830 = vld [vmem:[%s13 + $0x434] sm:$0xf]
        %v1831 = vld [vmem:[%s13 + $0x438] sm:$0xf]
        %v1832 = vld [vmem:[%s13 + $0x43c] sm:$0xf]
        %v1833 = vld [vmem:[%s13 + $0x440] sm:$0xf]
        %v1834 = vld [vmem:[%s13 + $0x444] sm:$0xf]
        %v1835 = vld [vmem:[%s13 + $0x448] sm:$0xf]
        %v1836 = vld [vmem:[%s13 + $0x44c] sm:$0xf]
        %v1837 = vld [vmem:[%s13 + $0x450] sm:$0xf]
        %v1838 = vld [vmem:[%s13 + $0x454] sm:$0xf]
        %v1839 = vld [vmem:[%s13 + $0x458] sm:$0xf]
        %v1840 = vld [vmem:[%s13 + $0x45c] sm:$0xf]
        %v1841 = vld [vmem:[%s13 + $0x460] sm:$0xf]
        %v1842 = vld [vmem:[%s13 + $0x464] sm:$0xf]
        %v1843 = vld [vmem:[%s13 + $0x468] sm:$0xf]
        %v1844 = vld [vmem:[%s13 + $0x46c] sm:$0xf]
        %v1845 = vld [vmem:[%s13 + $0x470] sm:$0xf]
        %v1846 = vld [vmem:[%s13 + $0x474] sm:$0xf]
        %v1847 = vld [vmem:[%s13 + $0x478] sm:$0xf]
        %v1848 = vld [vmem:[%s13 + $0x47c] sm:$0xf]
        %v1849 = vld [vmem:[%s13 + $0x480] sm:$0xf]
        %v1850 = vld [vmem:[%s13 + $0x484] sm:$0xf]
        %v1851 = vld [vmem:[%s13 + $0x488] sm:$0xf]
        %v1852 = vld [vmem:[%s13 + $0x48c] sm:$0xf]
        %v1853 = vld [vmem:[%s13 + $0x490] sm:$0xf]
        %v1854 = vld [vmem:[%s13 + $0x494] sm:$0xf]
        %v1855 = vld [vmem:[%s13 + $0x498] sm:$0xf]
        %v1856 = vld [vmem:[%s13 + $0x49c] sm:$0xf]
        %v1857 = vld [vmem:[%s13 + $0x4a0] sm:$0xf]
        %v1858 = vld [vmem:[%s13 + $0x4a4] sm:$0xf]
        %v1859 = vld [vmem:[%s13 + $0x4a8] sm:$0xf]
        %v1860 = vld [vmem:[%s13 + $0x4ac] sm:$0xf]
        %v1861 = vld [vmem:[%s13 + $0x4b0] sm:$0xf]
        %v1862 = vld [vmem:[%s13 + $0x4b4] sm:$0xf]
        %v1863 = vld [vmem:[%s13 + $0x4b8] sm:$0xf]
        %v1864 = vld [vmem:[%s13 + $0x4bc] sm:$0xf]
        %v1865 = vld [vmem:[%s13 + $0x4c0] sm:$0xf]
        %v1866 = vld [vmem:[%s13 + $0x4c4] sm:$0xf]
        %v1867 = vld [vmem:[%s13 + $0x4c8] sm:$0xf]
        %v1868 = vld [vmem:[%s13 + $0x4cc] sm:$0xf]
        %v1869 = vld [vmem:[%s13 + $0x4d0] sm:$0xf]
        %v1870 = vld [vmem:[%s13 + $0x4d4] sm:$0xf]
        %v1871 = vld [vmem:[%s13 + $0x4d8] sm:$0xf]
        %v1872 = vld [vmem:[%s13 + $0x4dc] sm:$0xf]
        %v1873 = vld [vmem:[%s13 + $0x4e0] sm:$0xf]
        %v1874 = vld [vmem:[%s13 + $0x4e4] sm:$0xf]
        %v1875 = vld [vmem:[%s13 + $0x4e8] sm:$0xf]
        %v1876 = vld [vmem:[%s13 + $0x4ec] sm:$0xf]
        %v1877 = vld [vmem:[%s13 + $0x4f0] sm:$0xf]
        %v1878 = vld [vmem:[%s13 + $0x4f4] sm:$0xf]
        %v1879 = vld [vmem:[%s13 + $0x4f8] sm:$0xf]
        %v1880 = vld [vmem:[%s13 + $0x4fc] sm:$0xf]
        %v1881 = vld [vmem:[%s13 + $0x500] sm:$0xf]
        %v1882 = vld [vmem:[%s13 + $0x504] sm:$0xf]
        %v1883 = vld [vmem:[%s13 + $0x508] sm:$0xf]
        %v1884 = vld [vmem:[%s13 + $0x50c] sm:$0xf]
        %v1885 = vld [vmem:[%s13 + $0x510] sm:$0xf]
        %v1886 = vld [vmem:[%s13 + $0x514] sm:$0xf]
        %v1887 = vld [vmem:[%s13 + $0x518] sm:$0xf]
        %v1888 = vld [vmem:[%s13 + $0x51c] sm:$0xf]
        %v1889 = vld [vmem:[%s13 + $0x520] sm:$0xf]
        %v1890 = vld [vmem:[%s13 + $0x524] sm:$0xf]
        %v1891 = vld [vmem:[%s13 + $0x528] sm:$0xf]
        %v1892 = vld [vmem:[%s13 + $0x52c] sm:$0xf]
        %v1893 = vld [vmem:[%s13 + $0x530] sm:$0xf]
        %v1894 = vld [vmem:[%s13 + $0x534] sm:$0xf]
        %v1895 = vld [vmem:[%s13 + $0x538] sm:$0xf]
        %v1896 = vld [vmem:[%s13 + $0x53c] sm:$0xf]
        %v1897 = vld [vmem:[%s13 + $0x540] sm:$0xf]
        %v1898 = vld [vmem:[%s13 + $0x544] sm:$0xf]
        %v1899 = vld [vmem:[%s13 + $0x548] sm:$0xf]
        %v1900 = vld [vmem:[%s13 + $0x54c] sm:$0xf]
        %v1901 = vld [vmem:[%s13 + $0x550] sm:$0xf]
        %v1902 = vld [vmem:[%s13 + $0x554] sm:$0xf]
        %v1903 = vld [vmem:[%s13 + $0x558] sm:$0xf]
        %v1904 = vld [vmem:[%s13 + $0x55c] sm:$0xf]
        %v1905 = vld [vmem:[%s13 + $0x560] sm:$0xf]
        %v1906 = vld [vmem:[%s13 + $0x564] sm:$0xf]
        %v1907 = vld [vmem:[%s13 + $0x568] sm:$0xf]
        %v1908 = vld [vmem:[%s13 + $0x56c] sm:$0xf]
        %v1909 = vld [vmem:[%s13 + $0x570] sm:$0xf]
        %v1910 = vld [vmem:[%s13 + $0x574] sm:$0xf]
        %v1911 = vld [vmem:[%s13 + $0x578] sm:$0xf]
        %v1912 = vld [vmem:[%s13 + $0x57c] sm:$0xf]
        %v1913 = vld [vmem:[%s13 + $0x580] sm:$0xf]
        %v1914 = vld [vmem:[%s13 + $0x584] sm:$0xf]
        %v1915 = vld [vmem:[%s13 + $0x588] sm:$0xf]
        %v1916 = vld [vmem:[%s13 + $0x58c] sm:$0xf]
        %v1917 = vld [vmem:[%s13 + $0x590] sm:$0xf]
        %v1918 = vld [vmem:[%s13 + $0x594] sm:$0xf]
        %v1919 = vld [vmem:[%s13 + $0x598] sm:$0xf]
        %v1920 = vld [vmem:[%s13 + $0x59c] sm:$0xf]
        %v1921 = vld [vmem:[%s13 + $0x5a0] sm:$0xf]
        %v1922 = vld [vmem:[%s13 + $0x5a4] sm:$0xf]
        %v1923 = vld [vmem:[%s13 + $0x5a8] sm:$0xf]
        %v1924 = vld [vmem:[%s13 + $0x5ac] sm:$0xf]
        %v1925 = vld [vmem:[%s13 + $0x5b0] sm:$0xf]
        %v1926 = vld [vmem:[%s13 + $0x5b4] sm:$0xf]
        %v1927 = vld [vmem:[%s13 + $0x5b8] sm:$0xf]
        %v1928 = vld [vmem:[%s13 + $0x5bc] sm:$0xf]
        %v1929 = vld [vmem:[%s13 + $0x5c0] sm:$0xf]
        %v1930 = vld [vmem:[%s13 + $0x5c4] sm:$0xf]
        %v1931 = vld [vmem:[%s13 + $0x5c8] sm:$0xf]
        %v1932 = vld [vmem:[%s13 + $0x5cc] sm:$0xf]
        %v1933 = vld [vmem:[%s13 + $0x5d0] sm:$0xf]
        %v1934 = vld [vmem:[%s13 + $0x5d4] sm:$0xf]
        %v1935 = vld [vmem:[%s13 + $0x5d8] sm:$0xf]
        %v1936 = vld [vmem:[%s13 + $0x5dc] sm:$0xf]
        %v1937 = vld [vmem:[%s13 + $0x5e0] sm:$0xf]
        %v1938 = vld [vmem:[%s13 + $0x5e4] sm:$0xf]
        %v1939 = vld [vmem:[%s13 + $0x5e8] sm:$0xf]
        %v1940 = vld [vmem:[%s13 + $0x5ec] sm:$0xf]
        %v1941 = vld [vmem:[%s13 + $0x5f0] sm:$0xf]
        %v1942 = vld [vmem:[%s13 + $0x5f4] sm:$0xf]
        %v1943 = vld [vmem:[%s13 + $0x5f8] sm:$0xf]
        %v1944 = vld [vmem:[%s13 + $0x5fc] sm:$0xf]
        %v1945 = vld [vmem:[%s13 + $0x600] sm:$0xf]
        %v1946 = vld [vmem:[%s13 + $0x604] sm:$0xf]
        %v1947 = vld [vmem:[%s13 + $0x608] sm:$0xf]
        %v1948 = vld [vmem:[%s13 + $0x60c] sm:$0xf]
        %v1949 = vld [vmem:[%s13 + $0x610] sm:$0xf]
        %v1950 = vld [vmem:[%s13 + $0x614] sm:$0xf]
        %v1951 = vld [vmem:[%s13 + $0x618] sm:$0xf]
        %v1952 = vld [vmem:[%s13 + $0x61c] sm:$0xf]
        %v1953 = vld [vmem:[%s13 + $0x620] sm:$0xf]
        %v1954 = vld [vmem:[%s13 + $0x624] sm:$0xf]
        %v1955 = vld [vmem:[%s13 + $0x628] sm:$0xf]
        %v1956 = vld [vmem:[%s13 + $0x62c] sm:$0xf]
        %v1957 = vld [vmem:[%s13 + $0x630] sm:$0xf]
        %v1958 = vld [vmem:[%s13 + $0x634] sm:$0xf]
        %v1959 = vld [vmem:[%s13 + $0x638] sm:$0xf]
        %v1960 = vld [vmem:[%s13 + $0x63c] sm:$0xf]
        %v1961 = vld [vmem:[%s13 + $0x640] sm:$0xf]
        %v1962 = vld [vmem:[%s13 + $0x644] sm:$0xf]
        %v1963 = vld [vmem:[%s13 + $0x648] sm:$0xf]
        %v1964 = vld [vmem:[%s13 + $0x64c] sm:$0xf]
        %v1965 = vld [vmem:[%s13 + $0x650] sm:$0xf]
        %v1966 = vld [vmem:[%s13 + $0x654] sm:$0xf]
        %v1967 = vld [vmem:[%s13 + $0x658] sm:$0xf]
        %v1968 = vld [vmem:[%s13 + $0x65c] sm:$0xf]
        %v1969 = vld [vmem:[%s13 + $0x660] sm:$0xf]
        %v1970 = vld [vmem:[%s13 + $0x664] sm:$0xf]
        %v1971 = vld [vmem:[%s13 + $0x668] sm:$0xf]
        %v1972 = vld [vmem:[%s13 + $0x66c] sm:$0xf]
        %v1973 = vld [vmem:[%s13 + $0x670] sm:$0xf]
        %v1974 = vld [vmem:[%s13 + $0x674] sm:$0xf]
        %v1975 = vld [vmem:[%s13 + $0x678] sm:$0xf]
        %v1976 = vld [vmem:[%s13 + $0x67c] sm:$0xf]
        %v1977 = vld [vmem:[%s13 + $0x680] sm:$0xf]
        %v1978 = vld [vmem:[%s13 + $0x684] sm:$0xf]
        %v1979 = vld [vmem:[%s13 + $0x688] sm:$0xf]
        %v1980 = vld [vmem:[%s13 + $0x68c] sm:$0xf]
        %v1981 = vld [vmem:[%s13 + $0x690] sm:$0xf]
        %v1982 = vld [vmem:[%s13 + $0x694] sm:$0xf]
        %v1983 = vld [vmem:[%s13 + $0x698] sm:$0xf]
        %v1984 = vld [vmem:[%s13 + $0x69c] sm:$0xf]
        %v1985 = vld [vmem:[%s13 + $0x6a0] sm:$0xf]
        %v1986 = vld [vmem:[%s13 + $0x6a4] sm:$0xf]
        %v1987 = vld [vmem:[%s13 + $0x6a8] sm:$0xf]
        %v1988 = vld [vmem:[%s13 + $0x6ac] sm:$0xf]
        %v1989 = vld [vmem:[%s13 + $0x6b0] sm:$0xf]
        %v1990 = vld [vmem:[%s13 + $0x6b4] sm:$0xf]
        %v1991 = vld [vmem:[%s13 + $0x6b8] sm:$0xf]
        %v1992 = vld [vmem:[%s13 + $0x6bc] sm:$0xf]
        %v1993 = vld [vmem:[%s13 + $0x6c0] sm:$0xf]
        %v1994 = vld [vmem:[%s13 + $0x6c4] sm:$0xf]
        %v1995 = vld [vmem:[%s13 + $0x6c8] sm:$0xf]
        %v1996 = vld [vmem:[%s13 + $0x6cc] sm:$0xf]
        %v1997 = vld [vmem:[%s13 + $0x6d0] sm:$0xf]
        %v1998 = vld [vmem:[%s13 + $0x6d4] sm:$0xf]
        %v1999 = vld [vmem:[%s13 + $0x6d8] sm:$0xf]
        %v2000 = vld [vmem:[%s13 + $0x6dc] sm:$0xf]
        %v2001 = vld [vmem:[%s13 + $0x6e0] sm:$0xf]
        %v2002 = vld [vmem:[%s13 + $0x6e4] sm:$0xf]
        %v2003 = vld [vmem:[%s13 + $0x6e8] sm:$0xf]
        %v2004 = vld [vmem:[%s13 + $0x6ec] sm:$0xf]
        %v2005 = vld [vmem:[%s13 + $0x6f0] sm:$0xf]
        %v2006 = vld [vmem:[%s13 + $0x6f4] sm:$0xf]
        %v2007 = vld [vmem:[%s13 + $0x6f8] sm:$0xf]
        %v2008 = vld [vmem:[%s13 + $0x6fc] sm:$0xf]
        %v2009 = vld [vmem:[%s13 + $0x700] sm:$0xf]
        %v2010 = vld [vmem:[%s13 + $0x704] sm:$0xf]
        %v2011 = vld [vmem:[%s13 + $0x708] sm:$0xf]
        %v2012 = vld [vmem:[%s13 + $0x70c] sm:$0xf]
        %v2013 = vld [vmem:[%s13 + $0x710] sm:$0xf]
        %v2014 = vld [vmem:[%s13 + $0x714] sm:$0xf]
        %v2015 = vld [vmem:[%s13 + $0x718] sm:$0xf]
        %v2016 = vld [vmem:[%s13 + $0x71c] sm:$0xf]
        %v2017 = vld [vmem:[%s13 + $0x720] sm:$0xf]
        %v2018 = vld [vmem:[%s13 + $0x724] sm:$0xf]
        %v2019 = vld [vmem:[%s13 + $0x728] sm:$0xf]
        %v2020 = vld [vmem:[%s13 + $0x72c] sm:$0xf]
        %v2021 = vld [vmem:[%s13 + $0x730] sm:$0xf]
        %v2022 = vld [vmem:[%s13 + $0x734] sm:$0xf]
        %v2023 = vld [vmem:[%s13 + $0x738] sm:$0xf]
        %v2024 = vld [vmem:[%s13 + $0x73c] sm:$0xf]
        %v2025 = vld [vmem:[%s13 + $0x740] sm:$0xf]
        %v2026 = vld [vmem:[%s13 + $0x744] sm:$0xf]
        %v2027 = vld [vmem:[%s13 + $0x748] sm:$0xf]
        %v2028 = vld [vmem:[%s13 + $0x74c] sm:$0xf]
        %v2029 = vld [vmem:[%s13 + $0x750] sm:$0xf]
        %v2030 = vld [vmem:[%s13 + $0x754] sm:$0xf]
        %v2031 = vld [vmem:[%s13 + $0x758] sm:$0xf]
        %v2032 = vld [vmem:[%s13 + $0x75c] sm:$0xf]
        %v2033 = vld [vmem:[%s13 + $0x760] sm:$0xf]
        %v2034 = vld [vmem:[%s13 + $0x764] sm:$0xf]
        %v2035 = vld [vmem:[%s13 + $0x768] sm:$0xf]
        %v2036 = vld [vmem:[%s13 + $0x76c] sm:$0xf]
        %v2037 = vld [vmem:[%s13 + $0x770] sm:$0xf]
        %v2038 = vld [vmem:[%s13 + $0x774] sm:$0xf]
        %v2039 = vld [vmem:[%s13 + $0x778] sm:$0xf]
        %v2040 = vld [vmem:[%s13 + $0x77c] sm:$0xf]
        %v2041 = vld [vmem:[%s13 + $0x780] sm:$0xf]
        %v2042 = vld [vmem:[%s13 + $0x784] sm:$0xf]
        %v2043 = vld [vmem:[%s13 + $0x788] sm:$0xf]
        %v2044 = vld [vmem:[%s13 + $0x78c] sm:$0xf]
        %v2045 = vld [vmem:[%s13 + $0x790] sm:$0xf]
        %v2046 = vld [vmem:[%s13 + $0x794] sm:$0xf]
        %v2047 = vld [vmem:[%s13 + $0x798] sm:$0xf]
        %v2048 = vld [vmem:[%s13 + $0x79c] sm:$0xf]
        %v2049 = vld [vmem:[%s13 + $0x7a0] sm:$0xf]
        %v2050 = vld [vmem:[%s13 + $0x7a4] sm:$0xf]
        %v2051 = vld [vmem:[%s13 + $0x7a8] sm:$0xf]
        %v2052 = vld [vmem:[%s13 + $0x7ac] sm:$0xf]
        %v2053 = vld [vmem:[%s13 + $0x7b0] sm:$0xf]
        %v2054 = vld [vmem:[%s13 + $0x7b4] sm:$0xf]
        %v2055 = vld [vmem:[%s13 + $0x7b8] sm:$0xf]
        %v2056 = vld [vmem:[%s13 + $0x7bc] sm:$0xf]
        %v2057 = vld [vmem:[%s13 + $0x7c0] sm:$0xf]
        %v2058 = vld [vmem:[%s13 + $0x7c4] sm:$0xf]
        %v2059 = vld [vmem:[%s13 + $0x7c8] sm:$0xf]
        %v2060 = vld [vmem:[%s13 + $0x7cc] sm:$0xf]
        %v2061 = vld [vmem:[%s13 + $0x7d0] sm:$0xf]
        %v2062 = vld [vmem:[%s13 + $0x7d4] sm:$0xf]
        %v2063 = vld [vmem:[%s13 + $0x7d8] sm:$0xf]
        %v2064 = vld [vmem:[%s13 + $0x7dc] sm:$0xf]
        %v2065 = vld [vmem:[%s13 + $0x7e0] sm:$0xf]
        %v2066 = vld [vmem:[%s13 + $0x7e4] sm:$0xf]
        %v2067 = vld [vmem:[%s13 + $0x7e8] sm:$0xf]
        %v2068 = vld [vmem:[%s13 + $0x7ec] sm:$0xf]
        %v2069 = vld [vmem:[%s13 + $0x7f0] sm:$0xf]
        %v2070 = vld [vmem:[%s13 + $0x7f4] sm:$0xf]
        %v2071 = vld [vmem:[%s13 + $0x7f8] sm:$0xf]
        %v2072 = vld [vmem:[%s13 + $0x7fc] sm:$0xf]
        %v2077 = vcombine.high %v1557, %v1557
        %v2079 = vunpack.c.l.s4 1966171168
        %v2080 = vunpack.c.0.s8 %v2079
        %v2081 = vlaneseq
        %v2082 = vshrl.u32 %v2081, 7
        %v2083 = vsub.s32 %v2080, %v2082
        %v2084 = vrot.slane %v1557, %v2083
        %v2086 = vunpack.c.l.s4 1966171168
        %v2087 = vunpack.c.0.s8 %v2086
        %v2088 = vlaneseq
        %v2089 = vshrl.u32 %v2088, 7
        %v2090 = vsub.s32 %v2087, %v2089
        %v2091 = vrot.slane %v2077, %v2090
        %v2092 = vcombine.high %v2084, %v2084
        %v2093 = vcombine.high %v2091, %v2091
        %v2095 = vunpack.c.l.s4 1966171168
        %v2096 = vunpack.c.0.s8 %v2095
        %v2097 = vlaneseq
        %v2098 = vshrl.u32 %v2097, 7
        %v2099 = vsub.s32 %v2096, %v2098
        %v2100 = vrot.slane %v2084, %v2099
        %v2102 = vunpack.c.l.s4 1966171168
        %v2103 = vunpack.c.0.s8 %v2102
        %v2104 = vlaneseq
        %v2105 = vshrl.u32 %v2104, 7
        %v2106 = vsub.s32 %v2103, %v2105
        %v2107 = vrot.slane %v2091, %v2106
        %v2109 = vunpack.c.l.s4 1966171168
        %v2110 = vunpack.c.0.s8 %v2109
        %v2111 = vlaneseq
        %v2112 = vshrl.u32 %v2111, 7
        %v2113 = vsub.s32 %v2110, %v2112
        %v2114 = vrot.slane %v2092, %v2113
        %v2116 = vunpack.c.l.s4 1966171168
        %v2117 = vunpack.c.0.s8 %v2116
        %v2118 = vlaneseq
        %v2119 = vshrl.u32 %v2118, 7
        %v2120 = vsub.s32 %v2117, %v2119
        %v2121 = vrot.slane %v2093, %v2120
        %v2122 = vcombine.high %v2100, %v2100
        %v2123 = vcombine.high %v2107, %v2107
        %v2124 = vcombine.high %v2114, %v2114
        %v2125 = vcombine.high %v2121, %v2121
        %v2126 = vcombine.high %v1558, %v1558
        %v2128 = vunpack.c.l.s4 1966171168
        %v2129 = vunpack.c.0.s8 %v2128
        %v2130 = vlaneseq
        %v2131 = vshrl.u32 %v2130, 7
        %v2132 = vsub.s32 %v2129, %v2131
        %v2133 = vrot.slane %v1558, %v2132
        %v2135 = vunpack.c.l.s4 1966171168
        %v2136 = vunpack.c.0.s8 %v2135
        %v2137 = vlaneseq
        %v2138 = vshrl.u32 %v2137, 7
        %v2139 = vsub.s32 %v2136, %v2138
        %v2140 = vrot.slane %v2126, %v2139
        %v2141 = vcombine.high %v2133, %v2133
        %v2142 = vcombine.high %v2140, %v2140
        %v2144 = vunpack.c.l.s4 1966171168
        %v2145 = vunpack.c.0.s8 %v2144
        %v2146 = vlaneseq
        %v2147 = vshrl.u32 %v2146, 7
        %v2148 = vsub.s32 %v2145, %v2147
        %v2149 = vrot.slane %v2133, %v2148
        %v2151 = vunpack.c.l.s4 1966171168
        %v2152 = vunpack.c.0.s8 %v2151
        %v2153 = vlaneseq
        %v2154 = vshrl.u32 %v2153, 7
        %v2155 = vsub.s32 %v2152, %v2154
        %v2156 = vrot.slane %v2140, %v2155
        %v2158 = vunpack.c.l.s4 1966171168
        %v2159 = vunpack.c.0.s8 %v2158
        %v2160 = vlaneseq
        %v2161 = vshrl.u32 %v2160, 7
        %v2162 = vsub.s32 %v2159, %v2161
        %v2163 = vrot.slane %v2141, %v2162
        %v2165 = vunpack.c.l.s4 1966171168
        %v2166 = vunpack.c.0.s8 %v2165
        %v2167 = vlaneseq
        %v2168 = vshrl.u32 %v2167, 7
        %v2169 = vsub.s32 %v2166, %v2168
        %v2170 = vrot.slane %v2142, %v2169
        %v2171 = vcombine.high %v2149, %v2149
        %v2172 = vcombine.high %v2156, %v2156
        %v2173 = vcombine.high %v2163, %v2163
        %v2174 = vcombine.high %v2170, %v2170
        %v2175 = vcombine.high %v1559, %v1559
        %v2177 = vunpack.c.l.s4 1966171168
        %v2178 = vunpack.c.0.s8 %v2177
        %v2179 = vlaneseq
        %v2180 = vshrl.u32 %v2179, 7
        %v2181 = vsub.s32 %v2178, %v2180
        %v2182 = vrot.slane %v1559, %v2181
        %v2184 = vunpack.c.l.s4 1966171168
        %v2185 = vunpack.c.0.s8 %v2184
        %v2186 = vlaneseq
        %v2187 = vshrl.u32 %v2186, 7
        %v2188 = vsub.s32 %v2185, %v2187
        %v2189 = vrot.slane %v2175, %v2188
        %v2190 = vcombine.high %v2182, %v2182
        %v2191 = vcombine.high %v2189, %v2189
        %v2193 = vunpack.c.l.s4 1966171168
        %v2194 = vunpack.c.0.s8 %v2193
        %v2195 = vlaneseq
        %v2196 = vshrl.u32 %v2195, 7
        %v2197 = vsub.s32 %v2194, %v2196
        %v2198 = vrot.slane %v2182, %v2197
        %v2200 = vunpack.c.l.s4 1966171168
        %v2201 = vunpack.c.0.s8 %v2200
        %v2202 = vlaneseq
        %v2203 = vshrl.u32 %v2202, 7
        %v2204 = vsub.s32 %v2201, %v2203
        %v2205 = vrot.slane %v2189, %v2204
        %v2207 = vunpack.c.l.s4 1966171168
        %v2208 = vunpack.c.0.s8 %v2207
        %v2209 = vlaneseq
        %v2210 = vshrl.u32 %v2209, 7
        %v2211 = vsub.s32 %v2208, %v2210
        %v2212 = vrot.slane %v2190, %v2211
        %v2214 = vunpack.c.l.s4 1966171168
        %v2215 = vunpack.c.0.s8 %v2214
        %v2216 = vlaneseq
        %v2217 = vshrl.u32 %v2216, 7
        %v2218 = vsub.s32 %v2215, %v2217
        %v2219 = vrot.slane %v2191, %v2218
        %v2220 = vcombine.high %v2198, %v2198
        %v2221 = vcombine.high %v2205, %v2205
        %v2222 = vcombine.high %v2212, %v2212
        %v2223 = vcombine.high %v2219, %v2219
        %v2224 = vcombine.high %v1560, %v1560
        %v2226 = vunpack.c.l.s4 1966171168
        %v2227 = vunpack.c.0.s8 %v2226
        %v2228 = vlaneseq
        %v2229 = vshrl.u32 %v2228, 7
        %v2230 = vsub.s32 %v2227, %v2229
        %v2231 = vrot.slane %v1560, %v2230
        %v2233 = vunpack.c.l.s4 1966171168
        %v2234 = vunpack.c.0.s8 %v2233
        %v2235 = vlaneseq
        %v2236 = vshrl.u32 %v2235, 7
        %v2237 = vsub.s32 %v2234, %v2236
        %v2238 = vrot.slane %v2224, %v2237
        %v2239 = vcombine.high %v2231, %v2231
        %v2240 = vcombine.high %v2238, %v2238
        %v2242 = vunpack.c.l.s4 1966171168
        %v2243 = vunpack.c.0.s8 %v2242
        %v2244 = vlaneseq
        %v2245 = vshrl.u32 %v2244, 7
        %v2246 = vsub.s32 %v2243, %v2245
        %v2247 = vrot.slane %v2231, %v2246
        %v2249 = vunpack.c.l.s4 1966171168
        %v2250 = vunpack.c.0.s8 %v2249
        %v2251 = vlaneseq
        %v2252 = vshrl.u32 %v2251, 7
        %v2253 = vsub.s32 %v2250, %v2252
        %v2254 = vrot.slane %v2238, %v2253
        %v2256 = vunpack.c.l.s4 1966171168
        %v2257 = vunpack.c.0.s8 %v2256
        %v2258 = vlaneseq
        %v2259 = vshrl.u32 %v2258, 7
        %v2260 = vsub.s32 %v2257, %v2259
        %v2261 = vrot.slane %v2239, %v2260
        %v2263 = vunpack.c.l.s4 1966171168
        %v2264 = vunpack.c.0.s8 %v2263
        %v2265 = vlaneseq
        %v2266 = vshrl.u32 %v2265, 7
        %v2267 = vsub.s32 %v2264, %v2266
        %v2268 = vrot.slane %v2240, %v2267
        %v2269 = vcombine.high %v2247, %v2247
        %v2270 = vcombine.high %v2254, %v2254
        %v2271 = vcombine.high %v2261, %v2261
        %v2272 = vcombine.high %v2268, %v2268
        %v2817 = vunpack.c.l.b16 %v1561
        %v2818 = vunpack.c.l.b16 %v1562
        %v2819 = vunpack.c.l.b16 %v1563
        %v2820 = vunpack.c.l.b16 %v1564
        %v2821 = vunpack.c.l.b16 %v1565
        %v2822 = vunpack.c.l.b16 %v1566
        %v2823 = vunpack.c.l.b16 %v1567
        %v2824 = vunpack.c.l.b16 %v1568
        %v2825 = vunpack.c.l.b16 %v1569
        %v2826 = vunpack.c.l.b16 %v1570
        %v2827 = vunpack.c.l.b16 %v1571
        %v2828 = vunpack.c.l.b16 %v1572
        %v2829 = vunpack.c.l.b16 %v1573
        %v2830 = vunpack.c.l.b16 %v1574
        %v2831 = vunpack.c.l.b16 %v1575
        %v2832 = vunpack.c.l.b16 %v1576
        %v2833 = vunpack.c.l.b16 %v1577
        %v2834 = vunpack.c.l.b16 %v1578
        %v2835 = vunpack.c.l.b16 %v1579
        %v2836 = vunpack.c.l.b16 %v1580
        %v2837 = vunpack.c.l.b16 %v1581
        %v2838 = vunpack.c.l.b16 %v1582
        %v2839 = vunpack.c.l.b16 %v1583
        %v2840 = vunpack.c.l.b16 %v1584
        %v2841 = vunpack.c.l.b16 %v1585
        %v2842 = vunpack.c.l.b16 %v1586
        %v2843 = vunpack.c.l.b16 %v1587
        %v2844 = vunpack.c.l.b16 %v1588
        %v2845 = vunpack.c.l.b16 %v1589
        %v2846 = vunpack.c.l.b16 %v1590
        %v2847 = vunpack.c.l.b16 %v1591
        %v2848 = vunpack.c.l.b16 %v1592
        %v2849 = vunpack.c.l.b16 %v1593
        %v2850 = vunpack.c.l.b16 %v1594
        %v2851 = vunpack.c.l.b16 %v1595
        %v2852 = vunpack.c.l.b16 %v1596
        %v2853 = vunpack.c.l.b16 %v1597
        %v2854 = vunpack.c.l.b16 %v1598
        %v2855 = vunpack.c.l.b16 %v1599
        %v2856 = vunpack.c.l.b16 %v1600
        %v2857 = vunpack.c.l.b16 %v1601
        %v2858 = vunpack.c.l.b16 %v1602
        %v2859 = vunpack.c.l.b16 %v1603
        %v2860 = vunpack.c.l.b16 %v1604
        %v2861 = vunpack.c.l.b16 %v1605
        %v2862 = vunpack.c.l.b16 %v1606
        %v2863 = vunpack.c.l.b16 %v1607
        %v2864 = vunpack.c.l.b16 %v1608
        %v2865 = vunpack.c.l.b16 %v1609
        %v2866 = vunpack.c.l.b16 %v1610
        %v2867 = vunpack.c.l.b16 %v1611
        %v2868 = vunpack.c.l.b16 %v1612
        %v2869 = vunpack.c.l.b16 %v1613
        %v2870 = vunpack.c.l.b16 %v1614
        %v2871 = vunpack.c.l.b16 %v1615
        %v2872 = vunpack.c.l.b16 %v1616
        %v2873 = vunpack.c.l.b16 %v1617
        %v2874 = vunpack.c.l.b16 %v1618
        %v2875 = vunpack.c.l.b16 %v1619
        %v2876 = vunpack.c.l.b16 %v1620
        %v2877 = vunpack.c.l.b16 %v1621
        %v2878 = vunpack.c.l.b16 %v1622
        %v2879 = vunpack.c.l.b16 %v1623
        %v2880 = vunpack.c.l.b16 %v1624
        %v2881 = vunpack.c.l.b16 %v1625
        %v2882 = vunpack.c.l.b16 %v1626
        %v2883 = vunpack.c.l.b16 %v1627
        %v2884 = vunpack.c.l.b16 %v1628
        %v2885 = vunpack.c.l.b16 %v1629
        %v2886 = vunpack.c.l.b16 %v1630
        %v2887 = vunpack.c.l.b16 %v1631
        %v2888 = vunpack.c.l.b16 %v1632
        %v2889 = vunpack.c.l.b16 %v1633
        %v2890 = vunpack.c.l.b16 %v1634
        %v2891 = vunpack.c.l.b16 %v1635
        %v2892 = vunpack.c.l.b16 %v1636
        %v2893 = vunpack.c.l.b16 %v1637
        %v2894 = vunpack.c.l.b16 %v1638
        %v2895 = vunpack.c.l.b16 %v1639
        %v2896 = vunpack.c.l.b16 %v1640
        %v2897 = vunpack.c.l.b16 %v1641
        %v2898 = vunpack.c.l.b16 %v1642
        %v2899 = vunpack.c.l.b16 %v1643
        %v2900 = vunpack.c.l.b16 %v1644
        %v2901 = vunpack.c.l.b16 %v1645
        %v2902 = vunpack.c.l.b16 %v1646
        %v2903 = vunpack.c.l.b16 %v1647
        %v2904 = vunpack.c.l.b16 %v1648
        %v2905 = vunpack.c.l.b16 %v1649
        %v2906 = vunpack.c.l.b16 %v1650
        %v2907 = vunpack.c.l.b16 %v1651
        %v2908 = vunpack.c.l.b16 %v1652
        %v2909 = vunpack.c.l.b16 %v1653
        %v2910 = vunpack.c.l.b16 %v1654
        %v2911 = vunpack.c.l.b16 %v1655
        %v2912 = vunpack.c.l.b16 %v1656
        %v2913 = vunpack.c.l.b16 %v1657
        %v2914 = vunpack.c.l.b16 %v1658
        %v2915 = vunpack.c.l.b16 %v1659
        %v2916 = vunpack.c.l.b16 %v1660
        %v2917 = vunpack.c.l.b16 %v1661
        %v2918 = vunpack.c.l.b16 %v1662
        %v2919 = vunpack.c.l.b16 %v1663
        %v2920 = vunpack.c.l.b16 %v1664
        %v2921 = vunpack.c.l.b16 %v1665
        %v2922 = vunpack.c.l.b16 %v1666
        %v2923 = vunpack.c.l.b16 %v1667
        %v2924 = vunpack.c.l.b16 %v1668
        %v2925 = vunpack.c.l.b16 %v1669
        %v2926 = vunpack.c.l.b16 %v1670
        %v2927 = vunpack.c.l.b16 %v1671
        %v2928 = vunpack.c.l.b16 %v1672
        %v2929 = vunpack.c.l.b16 %v1673
        %v2930 = vunpack.c.l.b16 %v1674
        %v2931 = vunpack.c.l.b16 %v1675
        %v2932 = vunpack.c.l.b16 %v1676
        %v2933 = vunpack.c.l.b16 %v1677
        %v2934 = vunpack.c.l.b16 %v1678
        %v2935 = vunpack.c.l.b16 %v1679
        %v2936 = vunpack.c.l.b16 %v1680
        %v2937 = vunpack.c.l.b16 %v1681
        %v2938 = vunpack.c.l.b16 %v1682
        %v2939 = vunpack.c.l.b16 %v1683
        %v2940 = vunpack.c.l.b16 %v1684
        %v2941 = vunpack.c.l.b16 %v1685
        %v2942 = vunpack.c.l.b16 %v1686
        %v2943 = vunpack.c.l.b16 %v1687
        %v2944 = vunpack.c.l.b16 %v1688
        %v2945 = vunpack.c.l.b16 %v1689
        %v2946 = vunpack.c.l.b16 %v1690
        %v2947 = vunpack.c.l.b16 %v1691
        %v2948 = vunpack.c.l.b16 %v1692
        %v2949 = vunpack.c.l.b16 %v1693
        %v2950 = vunpack.c.l.b16 %v1694
        %v2951 = vunpack.c.l.b16 %v1695
        %v2952 = vunpack.c.l.b16 %v1696
        %v2953 = vunpack.c.l.b16 %v1697
        %v2954 = vunpack.c.l.b16 %v1698
        %v2955 = vunpack.c.l.b16 %v1699
        %v2956 = vunpack.c.l.b16 %v1700
        %v2957 = vunpack.c.l.b16 %v1701
        %v2958 = vunpack.c.l.b16 %v1702
        %v2959 = vunpack.c.l.b16 %v1703
        %v2960 = vunpack.c.l.b16 %v1704
        %v2961 = vunpack.c.l.b16 %v1705
        %v2962 = vunpack.c.l.b16 %v1706
        %v2963 = vunpack.c.l.b16 %v1707
        %v2964 = vunpack.c.l.b16 %v1708
        %v2965 = vunpack.c.l.b16 %v1709
        %v2966 = vunpack.c.l.b16 %v1710
        %v2967 = vunpack.c.l.b16 %v1711
        %v2968 = vunpack.c.l.b16 %v1712
        %v2969 = vunpack.c.l.b16 %v1713
        %v2970 = vunpack.c.l.b16 %v1714
        %v2971 = vunpack.c.l.b16 %v1715
        %v2972 = vunpack.c.l.b16 %v1716
        %v2973 = vunpack.c.l.b16 %v1717
        %v2974 = vunpack.c.l.b16 %v1718
        %v2975 = vunpack.c.l.b16 %v1719
        %v2976 = vunpack.c.l.b16 %v1720
        %v2977 = vunpack.c.l.b16 %v1721
        %v2978 = vunpack.c.l.b16 %v1722
        %v2979 = vunpack.c.l.b16 %v1723
        %v2980 = vunpack.c.l.b16 %v1724
        %v2981 = vunpack.c.l.b16 %v1725
        %v2982 = vunpack.c.l.b16 %v1726
        %v2983 = vunpack.c.l.b16 %v1727
        %v2984 = vunpack.c.l.b16 %v1728
        %v2985 = vunpack.c.l.b16 %v1729
        %v2986 = vunpack.c.l.b16 %v1730
        %v2987 = vunpack.c.l.b16 %v1731
        %v2988 = vunpack.c.l.b16 %v1732
        %v2989 = vunpack.c.l.b16 %v1733
        %v2990 = vunpack.c.l.b16 %v1734
        %v2991 = vunpack.c.l.b16 %v1735
        %v2992 = vunpack.c.l.b16 %v1736
        %v2993 = vunpack.c.l.b16 %v1737
        %v2994 = vunpack.c.l.b16 %v1738
        %v2995 = vunpack.c.l.b16 %v1739
        %v2996 = vunpack.c.l.b16 %v1740
        %v2997 = vunpack.c.l.b16 %v1741
        %v2998 = vunpack.c.l.b16 %v1742
        %v2999 = vunpack.c.l.b16 %v1743
        %v3000 = vunpack.c.l.b16 %v1744
        %v3001 = vunpack.c.l.b16 %v1745
        %v3002 = vunpack.c.l.b16 %v1746
        %v3003 = vunpack.c.l.b16 %v1747
        %v3004 = vunpack.c.l.b16 %v1748
        %v3005 = vunpack.c.l.b16 %v1749
        %v3006 = vunpack.c.l.b16 %v1750
        %v3007 = vunpack.c.l.b16 %v1751
        %v3008 = vunpack.c.l.b16 %v1752
        %v3009 = vunpack.c.l.b16 %v1753
        %v3010 = vunpack.c.l.b16 %v1754
        %v3011 = vunpack.c.l.b16 %v1755
        %v3012 = vunpack.c.l.b16 %v1756
        %v3013 = vunpack.c.l.b16 %v1757
        %v3014 = vunpack.c.l.b16 %v1758
        %v3015 = vunpack.c.l.b16 %v1759
        %v3016 = vunpack.c.l.b16 %v1760
        %v3017 = vunpack.c.l.b16 %v1761
        %v3018 = vunpack.c.l.b16 %v1762
        %v3019 = vunpack.c.l.b16 %v1763
        %v3020 = vunpack.c.l.b16 %v1764
        %v3021 = vunpack.c.l.b16 %v1765
        %v3022 = vunpack.c.l.b16 %v1766
        %v3023 = vunpack.c.l.b16 %v1767
        %v3024 = vunpack.c.l.b16 %v1768
        %v3025 = vunpack.c.l.b16 %v1769
        %v3026 = vunpack.c.l.b16 %v1770
        %v3027 = vunpack.c.l.b16 %v1771
        %v3028 = vunpack.c.l.b16 %v1772
        %v3029 = vunpack.c.l.b16 %v1773
        %v3030 = vunpack.c.l.b16 %v1774
        %v3031 = vunpack.c.l.b16 %v1775
        %v3032 = vunpack.c.l.b16 %v1776
        %v3033 = vunpack.c.l.b16 %v1777
        %v3034 = vunpack.c.l.b16 %v1778
        %v3035 = vunpack.c.l.b16 %v1779
        %v3036 = vunpack.c.l.b16 %v1780
        %v3037 = vunpack.c.l.b16 %v1781
        %v3038 = vunpack.c.l.b16 %v1782
        %v3039 = vunpack.c.l.b16 %v1783
        %v3040 = vunpack.c.l.b16 %v1784
        %v3041 = vunpack.c.l.b16 %v1785
        %v3042 = vunpack.c.l.b16 %v1786
        %v3043 = vunpack.c.l.b16 %v1787
        %v3044 = vunpack.c.l.b16 %v1788
        %v3045 = vunpack.c.l.b16 %v1789
        %v3046 = vunpack.c.l.b16 %v1790
        %v3047 = vunpack.c.l.b16 %v1791
        %v3048 = vunpack.c.l.b16 %v1792
        %v3049 = vunpack.c.l.b16 %v1793
        %v3050 = vunpack.c.l.b16 %v1794
        %v3051 = vunpack.c.l.b16 %v1795
        %v3052 = vunpack.c.l.b16 %v1796
        %v3053 = vunpack.c.l.b16 %v1797
        %v3054 = vunpack.c.l.b16 %v1798
        %v3055 = vunpack.c.l.b16 %v1799
        %v3056 = vunpack.c.l.b16 %v1800
        %v3057 = vunpack.c.l.b16 %v1801
        %v3058 = vunpack.c.l.b16 %v1802
        %v3059 = vunpack.c.l.b16 %v1803
        %v3060 = vunpack.c.l.b16 %v1804
        %v3061 = vunpack.c.l.b16 %v1805
        %v3062 = vunpack.c.l.b16 %v1806
        %v3063 = vunpack.c.l.b16 %v1807
        %v3064 = vunpack.c.l.b16 %v1808
        %v3065 = vunpack.c.l.b16 %v1809
        %v3066 = vunpack.c.l.b16 %v1810
        %v3067 = vunpack.c.l.b16 %v1811
        %v3068 = vunpack.c.l.b16 %v1812
        %v3069 = vunpack.c.l.b16 %v1813
        %v3070 = vunpack.c.l.b16 %v1814
        %v3071 = vunpack.c.l.b16 %v1815
        %v3072 = vunpack.c.l.b16 %v1816
        %v3073 = vunpack.c.l.b16 %v1817
        %v3074 = vunpack.c.l.b16 %v1818
        %v3075 = vunpack.c.l.b16 %v1819
        %v3076 = vunpack.c.l.b16 %v1820
        %v3077 = vunpack.c.l.b16 %v1821
        %v3078 = vunpack.c.l.b16 %v1822
        %v3079 = vunpack.c.l.b16 %v1823
        %v3080 = vunpack.c.l.b16 %v1824
        %v3081 = vunpack.c.l.b16 %v1825
        %v3082 = vunpack.c.l.b16 %v1826
        %v3083 = vunpack.c.l.b16 %v1827
        %v3084 = vunpack.c.l.b16 %v1828
        %v3085 = vunpack.c.l.b16 %v1829
        %v3086 = vunpack.c.l.b16 %v1830
        %v3087 = vunpack.c.l.b16 %v1831
        %v3088 = vunpack.c.l.b16 %v1832
        %v3089 = vunpack.c.l.b16 %v1833
        %v3090 = vunpack.c.l.b16 %v1834
        %v3091 = vunpack.c.l.b16 %v1835
        %v3092 = vunpack.c.l.b16 %v1836
        %v3093 = vunpack.c.l.b16 %v1837
        %v3094 = vunpack.c.l.b16 %v1838
        %v3095 = vunpack.c.l.b16 %v1839
        %v3096 = vunpack.c.l.b16 %v1840
        %v3097 = vunpack.c.l.b16 %v1841
        %v3098 = vunpack.c.l.b16 %v1842
        %v3099 = vunpack.c.l.b16 %v1843
        %v3100 = vunpack.c.l.b16 %v1844
        %v3101 = vunpack.c.l.b16 %v1845
        %v3102 = vunpack.c.l.b16 %v1846
        %v3103 = vunpack.c.l.b16 %v1847
        %v3104 = vunpack.c.l.b16 %v1848
        %v3105 = vunpack.c.l.b16 %v1849
        %v3106 = vunpack.c.l.b16 %v1850
        %v3107 = vunpack.c.l.b16 %v1851
        %v3108 = vunpack.c.l.b16 %v1852
        %v3109 = vunpack.c.l.b16 %v1853
        %v3110 = vunpack.c.l.b16 %v1854
        %v3111 = vunpack.c.l.b16 %v1855
        %v3112 = vunpack.c.l.b16 %v1856
        %v3113 = vunpack.c.l.b16 %v1857
        %v3114 = vunpack.c.l.b16 %v1858
        %v3115 = vunpack.c.l.b16 %v1859
        %v3116 = vunpack.c.l.b16 %v1860
        %v3117 = vunpack.c.l.b16 %v1861
        %v3118 = vunpack.c.l.b16 %v1862
        %v3119 = vunpack.c.l.b16 %v1863
        %v3120 = vunpack.c.l.b16 %v1864
        %v3121 = vunpack.c.l.b16 %v1865
        %v3122 = vunpack.c.l.b16 %v1866
        %v3123 = vunpack.c.l.b16 %v1867
        %v3124 = vunpack.c.l.b16 %v1868
        %v3125 = vunpack.c.l.b16 %v1869
        %v3126 = vunpack.c.l.b16 %v1870
        %v3127 = vunpack.c.l.b16 %v1871
        %v3128 = vunpack.c.l.b16 %v1872
        %v3129 = vunpack.c.l.b16 %v1873
        %v3130 = vunpack.c.l.b16 %v1874
        %v3131 = vunpack.c.l.b16 %v1875
        %v3132 = vunpack.c.l.b16 %v1876
        %v3133 = vunpack.c.l.b16 %v1877
        %v3134 = vunpack.c.l.b16 %v1878
        %v3135 = vunpack.c.l.b16 %v1879
        %v3136 = vunpack.c.l.b16 %v1880
        %v3137 = vunpack.c.l.b16 %v1881
        %v3138 = vunpack.c.l.b16 %v1882
        %v3139 = vunpack.c.l.b16 %v1883
        %v3140 = vunpack.c.l.b16 %v1884
        %v3141 = vunpack.c.l.b16 %v1885
        %v3142 = vunpack.c.l.b16 %v1886
        %v3143 = vunpack.c.l.b16 %v1887
        %v3144 = vunpack.c.l.b16 %v1888
        %v3145 = vunpack.c.l.b16 %v1889
        %v3146 = vunpack.c.l.b16 %v1890
        %v3147 = vunpack.c.l.b16 %v1891
        %v3148 = vunpack.c.l.b16 %v1892
        %v3149 = vunpack.c.l.b16 %v1893
        %v3150 = vunpack.c.l.b16 %v1894
        %v3151 = vunpack.c.l.b16 %v1895
        %v3152 = vunpack.c.l.b16 %v1896
        %v3153 = vunpack.c.l.b16 %v1897
        %v3154 = vunpack.c.l.b16 %v1898
        %v3155 = vunpack.c.l.b16 %v1899
        %v3156 = vunpack.c.l.b16 %v1900
        %v3157 = vunpack.c.l.b16 %v1901
        %v3158 = vunpack.c.l.b16 %v1902
        %v3159 = vunpack.c.l.b16 %v1903
        %v3160 = vunpack.c.l.b16 %v1904
        %v3161 = vunpack.c.l.b16 %v1905
        %v3162 = vunpack.c.l.b16 %v1906
        %v3163 = vunpack.c.l.b16 %v1907
        %v3164 = vunpack.c.l.b16 %v1908
        %v3165 = vunpack.c.l.b16 %v1909
        %v3166 = vunpack.c.l.b16 %v1910
        %v3167 = vunpack.c.l.b16 %v1911
        %v3168 = vunpack.c.l.b16 %v1912
        %v3169 = vunpack.c.l.b16 %v1913
        %v3170 = vunpack.c.l.b16 %v1914
        %v3171 = vunpack.c.l.b16 %v1915
        %v3172 = vunpack.c.l.b16 %v1916
        %v3173 = vunpack.c.l.b16 %v1917
        %v3174 = vunpack.c.l.b16 %v1918
        %v3175 = vunpack.c.l.b16 %v1919
        %v3176 = vunpack.c.l.b16 %v1920
        %v3177 = vunpack.c.l.b16 %v1921
        %v3178 = vunpack.c.l.b16 %v1922
        %v3179 = vunpack.c.l.b16 %v1923
        %v3180 = vunpack.c.l.b16 %v1924
        %v3181 = vunpack.c.l.b16 %v1925
        %v3182 = vunpack.c.l.b16 %v1926
        %v3183 = vunpack.c.l.b16 %v1927
        %v3184 = vunpack.c.l.b16 %v1928
        %v3185 = vunpack.c.l.b16 %v1929
        %v3186 = vunpack.c.l.b16 %v1930
        %v3187 = vunpack.c.l.b16 %v1931
        %v3188 = vunpack.c.l.b16 %v1932
        %v3189 = vunpack.c.l.b16 %v1933
        %v3190 = vunpack.c.l.b16 %v1934
        %v3191 = vunpack.c.l.b16 %v1935
        %v3192 = vunpack.c.l.b16 %v1936
        %v3193 = vunpack.c.l.b16 %v1937
        %v3194 = vunpack.c.l.b16 %v1938
        %v3195 = vunpack.c.l.b16 %v1939
        %v3196 = vunpack.c.l.b16 %v1940
        %v3197 = vunpack.c.l.b16 %v1941
        %v3198 = vunpack.c.l.b16 %v1942
        %v3199 = vunpack.c.l.b16 %v1943
        %v3200 = vunpack.c.l.b16 %v1944
        %v3201 = vunpack.c.l.b16 %v1945
        %v3202 = vunpack.c.l.b16 %v1946
        %v3203 = vunpack.c.l.b16 %v1947
        %v3204 = vunpack.c.l.b16 %v1948
        %v3205 = vunpack.c.l.b16 %v1949
        %v3206 = vunpack.c.l.b16 %v1950
        %v3207 = vunpack.c.l.b16 %v1951
        %v3208 = vunpack.c.l.b16 %v1952
        %v3209 = vunpack.c.l.b16 %v1953
        %v3210 = vunpack.c.l.b16 %v1954
        %v3211 = vunpack.c.l.b16 %v1955
        %v3212 = vunpack.c.l.b16 %v1956
        %v3213 = vunpack.c.l.b16 %v1957
        %v3214 = vunpack.c.l.b16 %v1958
        %v3215 = vunpack.c.l.b16 %v1959
        %v3216 = vunpack.c.l.b16 %v1960
        %v3217 = vunpack.c.l.b16 %v1961
        %v3218 = vunpack.c.l.b16 %v1962
        %v3219 = vunpack.c.l.b16 %v1963
        %v3220 = vunpack.c.l.b16 %v1964
        %v3221 = vunpack.c.l.b16 %v1965
        %v3222 = vunpack.c.l.b16 %v1966
        %v3223 = vunpack.c.l.b16 %v1967
        %v3224 = vunpack.c.l.b16 %v1968
        %v3225 = vunpack.c.l.b16 %v1969
        %v3226 = vunpack.c.l.b16 %v1970
        %v3227 = vunpack.c.l.b16 %v1971
        %v3228 = vunpack.c.l.b16 %v1972
        %v3229 = vunpack.c.l.b16 %v1973
        %v3230 = vunpack.c.l.b16 %v1974
        %v3231 = vunpack.c.l.b16 %v1975
        %v3232 = vunpack.c.l.b16 %v1976
        %v3233 = vunpack.c.l.b16 %v1977
        %v3234 = vunpack.c.l.b16 %v1978
        %v3235 = vunpack.c.l.b16 %v1979
        %v3236 = vunpack.c.l.b16 %v1980
        %v3237 = vunpack.c.l.b16 %v1981
        %v3238 = vunpack.c.l.b16 %v1982
        %v3239 = vunpack.c.l.b16 %v1983
        %v3240 = vunpack.c.l.b16 %v1984
        %v3241 = vunpack.c.l.b16 %v1985
        %v3242 = vunpack.c.l.b16 %v1986
        %v3243 = vunpack.c.l.b16 %v1987
        %v3244 = vunpack.c.l.b16 %v1988
        %v3245 = vunpack.c.l.b16 %v1989
        %v3246 = vunpack.c.l.b16 %v1990
        %v3247 = vunpack.c.l.b16 %v1991
        %v3248 = vunpack.c.l.b16 %v1992
        %v3249 = vunpack.c.l.b16 %v1993
        %v3250 = vunpack.c.l.b16 %v1994
        %v3251 = vunpack.c.l.b16 %v1995
        %v3252 = vunpack.c.l.b16 %v1996
        %v3253 = vunpack.c.l.b16 %v1997
        %v3254 = vunpack.c.l.b16 %v1998
        %v3255 = vunpack.c.l.b16 %v1999
        %v3256 = vunpack.c.l.b16 %v2000
        %v3257 = vunpack.c.l.b16 %v2001
        %v3258 = vunpack.c.l.b16 %v2002
        %v3259 = vunpack.c.l.b16 %v2003
        %v3260 = vunpack.c.l.b16 %v2004
        %v3261 = vunpack.c.l.b16 %v2005
        %v3262 = vunpack.c.l.b16 %v2006
        %v3263 = vunpack.c.l.b16 %v2007
        %v3264 = vunpack.c.l.b16 %v2008
        %v3265 = vunpack.c.l.b16 %v2009
        %v3266 = vunpack.c.l.b16 %v2010
        %v3267 = vunpack.c.l.b16 %v2011
        %v3268 = vunpack.c.l.b16 %v2012
        %v3269 = vunpack.c.l.b16 %v2013
        %v3270 = vunpack.c.l.b16 %v2014
        %v3271 = vunpack.c.l.b16 %v2015
        %v3272 = vunpack.c.l.b16 %v2016
        %v3273 = vunpack.c.l.b16 %v2017
        %v3274 = vunpack.c.l.b16 %v2018
        %v3275 = vunpack.c.l.b16 %v2019
        %v3276 = vunpack.c.l.b16 %v2020
        %v3277 = vunpack.c.l.b16 %v2021
        %v3278 = vunpack.c.l.b16 %v2022
        %v3279 = vunpack.c.l.b16 %v2023
        %v3280 = vunpack.c.l.b16 %v2024
        %v3281 = vunpack.c.l.b16 %v2025
        %v3282 = vunpack.c.l.b16 %v2026
        %v3283 = vunpack.c.l.b16 %v2027
        %v3284 = vunpack.c.l.b16 %v2028
        %v3285 = vunpack.c.l.b16 %v2029
        %v3286 = vunpack.c.l.b16 %v2030
        %v3287 = vunpack.c.l.b16 %v2031
        %v3288 = vunpack.c.l.b16 %v2032
        %v3289 = vunpack.c.l.b16 %v2033
        %v3290 = vunpack.c.l.b16 %v2034
        %v3291 = vunpack.c.l.b16 %v2035
        %v3292 = vunpack.c.l.b16 %v2036
        %v3293 = vunpack.c.l.b16 %v2037
        %v3294 = vunpack.c.l.b16 %v2038
        %v3295 = vunpack.c.l.b16 %v2039
        %v3296 = vunpack.c.l.b16 %v2040
        %v3297 = vunpack.c.l.b16 %v2041
        %v3298 = vunpack.c.l.b16 %v2042
        %v3299 = vunpack.c.l.b16 %v2043
        %v3300 = vunpack.c.l.b16 %v2044
        %v3301 = vunpack.c.l.b16 %v2045
        %v3302 = vunpack.c.l.b16 %v2046
        %v3303 = vunpack.c.l.b16 %v2047
        %v3304 = vunpack.c.l.b16 %v2048
        %v3305 = vunpack.c.l.b16 %v2049
        %v3306 = vunpack.c.l.b16 %v2050
        %v3307 = vunpack.c.l.b16 %v2051
        %v3308 = vunpack.c.l.b16 %v2052
        %v3309 = vunpack.c.l.b16 %v2053
        %v3310 = vunpack.c.l.b16 %v2054
        %v3311 = vunpack.c.l.b16 %v2055
        %v3312 = vunpack.c.l.b16 %v2056
        %v3313 = vunpack.c.l.b16 %v2057
        %v3314 = vunpack.c.l.b16 %v2058
        %v3315 = vunpack.c.l.b16 %v2059
        %v3316 = vunpack.c.l.b16 %v2060
        %v3317 = vunpack.c.l.b16 %v2061
        %v3318 = vunpack.c.l.b16 %v2062
        %v3319 = vunpack.c.l.b16 %v2063
        %v3320 = vunpack.c.l.b16 %v2064
        %v3321 = vunpack.c.l.b16 %v2065
        %v3322 = vunpack.c.l.b16 %v2066
        %v3323 = vunpack.c.l.b16 %v2067
        %v3324 = vunpack.c.l.b16 %v2068
        %v3325 = vunpack.c.l.b16 %v2069
        %v3326 = vunpack.c.l.b16 %v2070
        %v3327 = vunpack.c.l.b16 %v2071
        %v3328 = vunpack.c.l.b16 %v2072
        %v3329 = vpack.c.b16 %v2818, %v2817
        %v3330 = vpack.c.b16 %v2820, %v2819
        %v3331 = vpack.c.b16 %v2822, %v2821
        %v3332 = vpack.c.b16 %v2824, %v2823
        %v3333 = vpack.c.b16 %v2826, %v2825
        %v3334 = vpack.c.b16 %v2828, %v2827
        %v3335 = vpack.c.b16 %v2830, %v2829
        %v3336 = vpack.c.b16 %v2832, %v2831
        %v3337 = vpack.c.b16 %v2834, %v2833
        %v3338 = vpack.c.b16 %v2836, %v2835
        %v3339 = vpack.c.b16 %v2838, %v2837
        %v3340 = vpack.c.b16 %v2840, %v2839
        %v3341 = vpack.c.b16 %v2842, %v2841
        %v3342 = vpack.c.b16 %v2844, %v2843
        %v3343 = vpack.c.b16 %v2846, %v2845
        %v3344 = vpack.c.b16 %v2848, %v2847
        %v3345 = vpack.c.b16 %v2850, %v2849
        %v3346 = vpack.c.b16 %v2852, %v2851
        %v3347 = vpack.c.b16 %v2854, %v2853
        %v3348 = vpack.c.b16 %v2856, %v2855
        %v3349 = vpack.c.b16 %v2858, %v2857
        %v3350 = vpack.c.b16 %v2860, %v2859
        %v3351 = vpack.c.b16 %v2862, %v2861
        %v3352 = vpack.c.b16 %v2864, %v2863
        %v3353 = vpack.c.b16 %v2866, %v2865
        %v3354 = vpack.c.b16 %v2868, %v2867
        %v3355 = vpack.c.b16 %v2870, %v2869
        %v3356 = vpack.c.b16 %v2872, %v2871
        %v3357 = vpack.c.b16 %v2874, %v2873
        %v3358 = vpack.c.b16 %v2876, %v2875
        %v3359 = vpack.c.b16 %v2878, %v2877
        %v3360 = vpack.c.b16 %v2880, %v2879
        %v3361 = vpack.c.b16 %v2882, %v2881
        %v3362 = vpack.c.b16 %v2884, %v2883
        %v3363 = vpack.c.b16 %v2886, %v2885
        %v3364 = vpack.c.b16 %v2888, %v2887
        %v3365 = vpack.c.b16 %v2890, %v2889
        %v3366 = vpack.c.b16 %v2892, %v2891
        %v3367 = vpack.c.b16 %v2894, %v2893
        %v3368 = vpack.c.b16 %v2896, %v2895
        %v3369 = vpack.c.b16 %v2898, %v2897
        %v3370 = vpack.c.b16 %v2900, %v2899
        %v3371 = vpack.c.b16 %v2902, %v2901
        %v3372 = vpack.c.b16 %v2904, %v2903
        %v3373 = vpack.c.b16 %v2906, %v2905
        %v3374 = vpack.c.b16 %v2908, %v2907
        %v3375 = vpack.c.b16 %v2910, %v2909
        %v3376 = vpack.c.b16 %v2912, %v2911
        %v3377 = vpack.c.b16 %v2914, %v2913
        %v3378 = vpack.c.b16 %v2916, %v2915
        %v3379 = vpack.c.b16 %v2918, %v2917
        %v3380 = vpack.c.b16 %v2920, %v2919
        %v3381 = vpack.c.b16 %v2922, %v2921
        %v3382 = vpack.c.b16 %v2924, %v2923
        %v3383 = vpack.c.b16 %v2926, %v2925
        %v3384 = vpack.c.b16 %v2928, %v2927
        %v3385 = vpack.c.b16 %v2930, %v2929
        %v3386 = vpack.c.b16 %v2932, %v2931
        %v3387 = vpack.c.b16 %v2934, %v2933
        %v3388 = vpack.c.b16 %v2936, %v2935
        %v3389 = vpack.c.b16 %v2938, %v2937
        %v3390 = vpack.c.b16 %v2940, %v2939
        %v3391 = vpack.c.b16 %v2942, %v2941
        %v3392 = vpack.c.b16 %v2944, %v2943
        %v3393 = vpack.c.b16 %v2946, %v2945
        %v3394 = vpack.c.b16 %v2948, %v2947
        %v3395 = vpack.c.b16 %v2950, %v2949
        %v3396 = vpack.c.b16 %v2952, %v2951
        %v3397 = vpack.c.b16 %v2954, %v2953
        %v3398 = vpack.c.b16 %v2956, %v2955
        %v3399 = vpack.c.b16 %v2958, %v2957
        %v3400 = vpack.c.b16 %v2960, %v2959
        %v3401 = vpack.c.b16 %v2962, %v2961
        %v3402 = vpack.c.b16 %v2964, %v2963
        %v3403 = vpack.c.b16 %v2966, %v2965
        %v3404 = vpack.c.b16 %v2968, %v2967
        %v3405 = vpack.c.b16 %v2970, %v2969
        %v3406 = vpack.c.b16 %v2972, %v2971
        %v3407 = vpack.c.b16 %v2974, %v2973
        %v3408 = vpack.c.b16 %v2976, %v2975
        %v3409 = vpack.c.b16 %v2978, %v2977
        %v3410 = vpack.c.b16 %v2980, %v2979
        %v3411 = vpack.c.b16 %v2982, %v2981
        %v3412 = vpack.c.b16 %v2984, %v2983
        %v3413 = vpack.c.b16 %v2986, %v2985
        %v3414 = vpack.c.b16 %v2988, %v2987
        %v3415 = vpack.c.b16 %v2990, %v2989
        %v3416 = vpack.c.b16 %v2992, %v2991
        %v3417 = vpack.c.b16 %v2994, %v2993
        %v3418 = vpack.c.b16 %v2996, %v2995
        %v3419 = vpack.c.b16 %v2998, %v2997
        %v3420 = vpack.c.b16 %v3000, %v2999
        %v3421 = vpack.c.b16 %v3002, %v3001
        %v3422 = vpack.c.b16 %v3004, %v3003
        %v3423 = vpack.c.b16 %v3006, %v3005
        %v3424 = vpack.c.b16 %v3008, %v3007
        %v3425 = vpack.c.b16 %v3010, %v3009
        %v3426 = vpack.c.b16 %v3012, %v3011
        %v3427 = vpack.c.b16 %v3014, %v3013
        %v3428 = vpack.c.b16 %v3016, %v3015
        %v3429 = vpack.c.b16 %v3018, %v3017
        %v3430 = vpack.c.b16 %v3020, %v3019
        %v3431 = vpack.c.b16 %v3022, %v3021
        %v3432 = vpack.c.b16 %v3024, %v3023
        %v3433 = vpack.c.b16 %v3026, %v3025
        %v3434 = vpack.c.b16 %v3028, %v3027
        %v3435 = vpack.c.b16 %v3030, %v3029
        %v3436 = vpack.c.b16 %v3032, %v3031
        %v3437 = vpack.c.b16 %v3034, %v3033
        %v3438 = vpack.c.b16 %v3036, %v3035
        %v3439 = vpack.c.b16 %v3038, %v3037
        %v3440 = vpack.c.b16 %v3040, %v3039
        %v3441 = vpack.c.b16 %v3042, %v3041
        %v3442 = vpack.c.b16 %v3044, %v3043
        %v3443 = vpack.c.b16 %v3046, %v3045
        %v3444 = vpack.c.b16 %v3048, %v3047
        %v3445 = vpack.c.b16 %v3050, %v3049
        %v3446 = vpack.c.b16 %v3052, %v3051
        %v3447 = vpack.c.b16 %v3054, %v3053
        %v3448 = vpack.c.b16 %v3056, %v3055
        %v3449 = vpack.c.b16 %v3058, %v3057
        %v3450 = vpack.c.b16 %v3060, %v3059
        %v3451 = vpack.c.b16 %v3062, %v3061
        %v3452 = vpack.c.b16 %v3064, %v3063
        %v3453 = vpack.c.b16 %v3066, %v3065
        %v3454 = vpack.c.b16 %v3068, %v3067
        %v3455 = vpack.c.b16 %v3070, %v3069
        %v3456 = vpack.c.b16 %v3072, %v3071
        %v3457 = vpack.c.b16 %v3074, %v3073
        %v3458 = vpack.c.b16 %v3076, %v3075
        %v3459 = vpack.c.b16 %v3078, %v3077
        %v3460 = vpack.c.b16 %v3080, %v3079
        %v3461 = vpack.c.b16 %v3082, %v3081
        %v3462 = vpack.c.b16 %v3084, %v3083
        %v3463 = vpack.c.b16 %v3086, %v3085
        %v3464 = vpack.c.b16 %v3088, %v3087
        %v3465 = vpack.c.b16 %v3090, %v3089
        %v3466 = vpack.c.b16 %v3092, %v3091
        %v3467 = vpack.c.b16 %v3094, %v3093
        %v3468 = vpack.c.b16 %v3096, %v3095
        %v3469 = vpack.c.b16 %v3098, %v3097
        %v3470 = vpack.c.b16 %v3100, %v3099
        %v3471 = vpack.c.b16 %v3102, %v3101
        %v3472 = vpack.c.b16 %v3104, %v3103
        %v3473 = vpack.c.b16 %v3106, %v3105
        %v3474 = vpack.c.b16 %v3108, %v3107
        %v3475 = vpack.c.b16 %v3110, %v3109
        %v3476 = vpack.c.b16 %v3112, %v3111
        %v3477 = vpack.c.b16 %v3114, %v3113
        %v3478 = vpack.c.b16 %v3116, %v3115
        %v3479 = vpack.c.b16 %v3118, %v3117
        %v3480 = vpack.c.b16 %v3120, %v3119
        %v3481 = vpack.c.b16 %v3122, %v3121
        %v3482 = vpack.c.b16 %v3124, %v3123
        %v3483 = vpack.c.b16 %v3126, %v3125
        %v3484 = vpack.c.b16 %v3128, %v3127
        %v3485 = vpack.c.b16 %v3130, %v3129
        %v3486 = vpack.c.b16 %v3132, %v3131
        %v3487 = vpack.c.b16 %v3134, %v3133
        %v3488 = vpack.c.b16 %v3136, %v3135
        %v3489 = vpack.c.b16 %v3138, %v3137
        %v3490 = vpack.c.b16 %v3140, %v3139
        %v3491 = vpack.c.b16 %v3142, %v3141
        %v3492 = vpack.c.b16 %v3144, %v3143
        %v3493 = vpack.c.b16 %v3146, %v3145
        %v3494 = vpack.c.b16 %v3148, %v3147
        %v3495 = vpack.c.b16 %v3150, %v3149
        %v3496 = vpack.c.b16 %v3152, %v3151
        %v3497 = vpack.c.b16 %v3154, %v3153
        %v3498 = vpack.c.b16 %v3156, %v3155
        %v3499 = vpack.c.b16 %v3158, %v3157
        %v3500 = vpack.c.b16 %v3160, %v3159
        %v3501 = vpack.c.b16 %v3162, %v3161
        %v3502 = vpack.c.b16 %v3164, %v3163
        %v3503 = vpack.c.b16 %v3166, %v3165
        %v3504 = vpack.c.b16 %v3168, %v3167
        %v3505 = vpack.c.b16 %v3170, %v3169
        %v3506 = vpack.c.b16 %v3172, %v3171
        %v3507 = vpack.c.b16 %v3174, %v3173
        %v3508 = vpack.c.b16 %v3176, %v3175
        %v3509 = vpack.c.b16 %v3178, %v3177
        %v3510 = vpack.c.b16 %v3180, %v3179
        %v3511 = vpack.c.b16 %v3182, %v3181
        %v3512 = vpack.c.b16 %v3184, %v3183
        %v3513 = vpack.c.b16 %v3186, %v3185
        %v3514 = vpack.c.b16 %v3188, %v3187
        %v3515 = vpack.c.b16 %v3190, %v3189
        %v3516 = vpack.c.b16 %v3192, %v3191
        %v3517 = vpack.c.b16 %v3194, %v3193
        %v3518 = vpack.c.b16 %v3196, %v3195
        %v3519 = vpack.c.b16 %v3198, %v3197
        %v3520 = vpack.c.b16 %v3200, %v3199
        %v3521 = vpack.c.b16 %v3202, %v3201
        %v3522 = vpack.c.b16 %v3204, %v3203
        %v3523 = vpack.c.b16 %v3206, %v3205
        %v3524 = vpack.c.b16 %v3208, %v3207
        %v3525 = vpack.c.b16 %v3210, %v3209
        %v3526 = vpack.c.b16 %v3212, %v3211
        %v3527 = vpack.c.b16 %v3214, %v3213
        %v3528 = vpack.c.b16 %v3216, %v3215
        %v3529 = vpack.c.b16 %v3218, %v3217
        %v3530 = vpack.c.b16 %v3220, %v3219
        %v3531 = vpack.c.b16 %v3222, %v3221
        %v3532 = vpack.c.b16 %v3224, %v3223
        %v3533 = vpack.c.b16 %v3226, %v3225
        %v3534 = vpack.c.b16 %v3228, %v3227
        %v3535 = vpack.c.b16 %v3230, %v3229
        %v3536 = vpack.c.b16 %v3232, %v3231
        %v3537 = vpack.c.b16 %v3234, %v3233
        %v3538 = vpack.c.b16 %v3236, %v3235
        %v3539 = vpack.c.b16 %v3238, %v3237
        %v3540 = vpack.c.b16 %v3240, %v3239
        %v3541 = vpack.c.b16 %v3242, %v3241
        %v3542 = vpack.c.b16 %v3244, %v3243
        %v3543 = vpack.c.b16 %v3246, %v3245
        %v3544 = vpack.c.b16 %v3248, %v3247
        %v3545 = vpack.c.b16 %v3250, %v3249
        %v3546 = vpack.c.b16 %v3252, %v3251
        %v3547 = vpack.c.b16 %v3254, %v3253
        %v3548 = vpack.c.b16 %v3256, %v3255
        %v3549 = vpack.c.b16 %v3258, %v3257
        %v3550 = vpack.c.b16 %v3260, %v3259
        %v3551 = vpack.c.b16 %v3262, %v3261
        %v3552 = vpack.c.b16 %v3264, %v3263
        %v3553 = vpack.c.b16 %v3266, %v3265
        %v3554 = vpack.c.b16 %v3268, %v3267
        %v3555 = vpack.c.b16 %v3270, %v3269
        %v3556 = vpack.c.b16 %v3272, %v3271
        %v3557 = vpack.c.b16 %v3274, %v3273
        %v3558 = vpack.c.b16 %v3276, %v3275
        %v3559 = vpack.c.b16 %v3278, %v3277
        %v3560 = vpack.c.b16 %v3280, %v3279
        %v3561 = vpack.c.b16 %v3282, %v3281
        %v3562 = vpack.c.b16 %v3284, %v3283
        %v3563 = vpack.c.b16 %v3286, %v3285
        %v3564 = vpack.c.b16 %v3288, %v3287
        %v3565 = vpack.c.b16 %v3290, %v3289
        %v3566 = vpack.c.b16 %v3292, %v3291
        %v3567 = vpack.c.b16 %v3294, %v3293
        %v3568 = vpack.c.b16 %v3296, %v3295
        %v3569 = vpack.c.b16 %v3298, %v3297
        %v3570 = vpack.c.b16 %v3300, %v3299
        %v3571 = vpack.c.b16 %v3302, %v3301
        %v3572 = vpack.c.b16 %v3304, %v3303
        %v3573 = vpack.c.b16 %v3306, %v3305
        %v3574 = vpack.c.b16 %v3308, %v3307
        %v3575 = vpack.c.b16 %v3310, %v3309
        %v3576 = vpack.c.b16 %v3312, %v3311
        %v3577 = vpack.c.b16 %v3314, %v3313
        %v3578 = vpack.c.b16 %v3316, %v3315
        %v3579 = vpack.c.b16 %v3318, %v3317
        %v3580 = vpack.c.b16 %v3320, %v3319
        %v3581 = vpack.c.b16 %v3322, %v3321
        %v3582 = vpack.c.b16 %v3324, %v3323
        %v3583 = vpack.c.b16 %v3326, %v3325
        %v3584 = vpack.c.b16 %v3328, %v3327
        %3841 = vmatprep.subr.bf16.mxu0 0
        %3842 = vmatpush1.bf16.msra.mxu0 %v3329
        %3843 = vmatprep.subr.bf16.mxu0 0
        %3844 = vmatpush1.bf16.msra.mxu0 %v3330
        %3845 = vmatprep.subr.bf16.mxu0 0
        %3846 = vmatpush1.bf16.msra.mxu0 %v3331
        %3847 = vmatprep.subr.bf16.mxu0 0
        %3848 = vmatpush1.bf16.msra.mxu0 %v3332
        %3849 = vmatprep.subr.bf16.mxu0 0
        %3850 = vmatpush1.bf16.msra.mxu0 %v3333
        %3851 = vmatprep.subr.bf16.mxu0 0
        %3852 = vmatpush1.bf16.msra.mxu0 %v3334
        %3853 = vmatprep.subr.bf16.mxu0 0
        %3854 = vmatpush1.bf16.msra.mxu0 %v3335
        %3855 = vmatprep.subr.bf16.mxu0 0
        %3856 = vmatpush1.bf16.msra.mxu0 %v3336
        %3857 = vmatprep.subr.bf16.mxu0 0
        %3858 = vmatpush1.bf16.msra.mxu0 %v3337
        %3859 = vmatprep.subr.bf16.mxu0 0
        %3860 = vmatpush1.bf16.msra.mxu0 %v3338
        %3861 = vmatprep.subr.bf16.mxu0 0
        %3862 = vmatpush1.bf16.msra.mxu0 %v3339
        %3863 = vmatprep.subr.bf16.mxu0 0
        %3864 = vmatpush1.bf16.msra.mxu0 %v3340
        %3865 = vmatprep.subr.bf16.mxu0 0
        %3866 = vmatpush1.bf16.msra.mxu0 %v3341
        %3867 = vmatprep.subr.bf16.mxu0 0
        %3868 = vmatpush1.bf16.msra.mxu0 %v3342
        %3869 = vmatprep.subr.bf16.mxu0 0
        %3870 = vmatpush1.bf16.msra.mxu0 %v3343
        %3871 = vmatprep.subr.bf16.mxu0 0
        %3872 = vmatpush1.bf16.msra.mxu0 %v3344
        %3873 = vmatprep.mubr.bf16.mxu0 %v2114
        %3874 = vmatmul.mubr.bf16.gmra.mrb[0].mxu0 %v2100
        %v3875 = vpop.f32.mrb[0].mxu0
        %v3876 = vadd.f32 0.0, %v3875
        %v3877 = vpop.f32.mrb[0].mxu0
        %v3878 = vpop.f32.mrb[0].mxu0
        %v3879 = vpop.f32.mrb[0].mxu0
        %3880 = vdwg.mxu0
        %3881 = vmatprep.subr.bf16.mxu0 0
        %3882 = vmatpush1.bf16.msra.mxu0 %v3345
        %3883 = vmatprep.subr.bf16.mxu0 0
        %3884 = vmatpush1.bf16.msra.mxu0 %v3346
        %3885 = vmatprep.subr.bf16.mxu0 0
        %3886 = vmatpush1.bf16.msra.mxu0 %v3347
        %3887 = vmatprep.subr.bf16.mxu0 0
        %3888 = vmatpush1.bf16.msra.mxu0 %v3348
        %3889 = vmatprep.subr.bf16.mxu0 0
        %3890 = vmatpush1.bf16.msra.mxu0 %v3349
        %3891 = vmatprep.subr.bf16.mxu0 0
        %3892 = vmatpush1.bf16.msra.mxu0 %v3350
        %3893 = vmatprep.subr.bf16.mxu0 0
        %3894 = vmatpush1.bf16.msra.mxu0 %v3351
        %3895 = vmatprep.subr.bf16.mxu0 0
        %3896 = vmatpush1.bf16.msra.mxu0 %v3352
        %3897 = vmatprep.subr.bf16.mxu0 0
        %3898 = vmatpush1.bf16.msra.mxu0 %v3353
        %3899 = vmatprep.subr.bf16.mxu0 0
        %3900 = vmatpush1.bf16.msra.mxu0 %v3354
        %3901 = vmatprep.subr.bf16.mxu0 0
        %3902 = vmatpush1.bf16.msra.mxu0 %v3355
        %3903 = vmatprep.subr.bf16.mxu0 0
        %3904 = vmatpush1.bf16.msra.mxu0 %v3356
        %3905 = vmatprep.subr.bf16.mxu0 0
        %3906 = vmatpush1.bf16.msra.mxu0 %v3357
        %3907 = vmatprep.subr.bf16.mxu0 0
        %3908 = vmatpush1.bf16.msra.mxu0 %v3358
        %3909 = vmatprep.subr.bf16.mxu0 0
        %3910 = vmatpush1.bf16.msra.mxu0 %v3359
        %3911 = vmatprep.subr.bf16.mxu0 0
        %3912 = vmatpush1.bf16.msra.mxu0 %v3360
        %3913 = vmatprep.mubr.bf16.mxu0 %v2124
        %3914 = vmatmul.mubr.bf16.gmra.mrb[0].mxu0 %v2122
        %v3915 = vpop.f32.mrb[0].mxu0
        %v3916 = vadd.f32 %v3876, %v3915
        %v3917 = vpop.f32.mrb[0].mxu0
        %v3918 = vpop.f32.mrb[0].mxu0
        %v3919 = vpop.f32.mrb[0].mxu0
        %3920 = vdwg.mxu0
        %3921 = vmatprep.subr.bf16.mxu0 0
        %3922 = vmatpush1.bf16.msra.mxu0 %v3361
        %3923 = vmatprep.subr.bf16.mxu0 0
        %3924 = vmatpush1.bf16.msra.mxu0 %v3362
        %3925 = vmatprep.subr.bf16.mxu0 0
        %3926 = vmatpush1.bf16.msra.mxu0 %v3363
        %3927 = vmatprep.subr.bf16.mxu0 0
        %3928 = vmatpush1.bf16.msra.mxu0 %v3364
        %3929 = vmatprep.subr.bf16.mxu0 0
        %3930 = vmatpush1.bf16.msra.mxu0 %v3365
        %3931 = vmatprep.subr.bf16.mxu0 0
        %3932 = vmatpush1.bf16.msra.mxu0 %v3366
        %3933 = vmatprep.subr.bf16.mxu0 0
        %3934 = vmatpush1.bf16.msra.mxu0 %v3367
        %3935 = vmatprep.subr.bf16.mxu0 0
        %3936 = vmatpush1.bf16.msra.mxu0 %v3368
        %3937 = vmatprep.subr.bf16.mxu0 0
        %3938 = vmatpush1.bf16.msra.mxu0 %v3369
        %3939 = vmatprep.subr.bf16.mxu0 0
        %3940 = vmatpush1.bf16.msra.mxu0 %v3370
        %3941 = vmatprep.subr.bf16.mxu0 0
        %3942 = vmatpush1.bf16.msra.mxu0 %v3371
        %3943 = vmatprep.subr.bf16.mxu0 0
        %3944 = vmatpush1.bf16.msra.mxu0 %v3372
        %3945 = vmatprep.subr.bf16.mxu0 0
        %3946 = vmatpush1.bf16.msra.mxu0 %v3373
        %3947 = vmatprep.subr.bf16.mxu0 0
        %3948 = vmatpush1.bf16.msra.mxu0 %v3374
        %3949 = vmatprep.subr.bf16.mxu0 0
        %3950 = vmatpush1.bf16.msra.mxu0 %v3375
        %3951 = vmatprep.subr.bf16.mxu0 0
        %3952 = vmatpush1.bf16.msra.mxu0 %v3376
        %3953 = vmatprep.mubr.bf16.mxu0 %v2121
        %3954 = vmatmul.mubr.bf16.gmra.mrb[0].mxu0 %v2107
        %v3955 = vpop.f32.mrb[0].mxu0
        %v3956 = vadd.f32 %v3916, %v3955
        %v3957 = vpop.f32.mrb[0].mxu0
        %v3958 = vpop.f32.mrb[0].mxu0
        %v3959 = vpop.f32.mrb[0].mxu0
        %3960 = vdwg.mxu0
        %3961 = vmatprep.subr.bf16.mxu0 0
        %3962 = vmatpush1.bf16.msra.mxu0 %v3377
        %3963 = vmatprep.subr.bf16.mxu0 0
        %3964 = vmatpush1.bf16.msra.mxu0 %v3378
        %3965 = vmatprep.subr.bf16.mxu0 0
        %3966 = vmatpush1.bf16.msra.mxu0 %v3379
        %3967 = vmatprep.subr.bf16.mxu0 0
        %3968 = vmatpush1.bf16.msra.mxu0 %v3380
        %3969 = vmatprep.subr.bf16.mxu0 0
        %3970 = vmatpush1.bf16.msra.mxu0 %v3381
        %3971 = vmatprep.subr.bf16.mxu0 0
        %3972 = vmatpush1.bf16.msra.mxu0 %v3382
        %3973 = vmatprep.subr.bf16.mxu0 0
        %3974 = vmatpush1.bf16.msra.mxu0 %v3383
        %3975 = vmatprep.subr.bf16.mxu0 0
        %3976 = vmatpush1.bf16.msra.mxu0 %v3384
        %3977 = vmatprep.subr.bf16.mxu0 0
        %3978 = vmatpush1.bf16.msra.mxu0 %v3385
        %3979 = vmatprep.subr.bf16.mxu0 0
        %3980 = vmatpush1.bf16.msra.mxu0 %v3386
        %3981 = vmatprep.subr.bf16.mxu0 0
        %3982 = vmatpush1.bf16.msra.mxu0 %v3387
        %3983 = vmatprep.subr.bf16.mxu0 0
        %3984 = vmatpush1.bf16.msra.mxu0 %v3388
        %3985 = vmatprep.subr.bf16.mxu0 0
        %3986 = vmatpush1.bf16.msra.mxu0 %v3389
        %3987 = vmatprep.subr.bf16.mxu0 0
        %3988 = vmatpush1.bf16.msra.mxu0 %v3390
        %3989 = vmatprep.subr.bf16.mxu0 0
        %3990 = vmatpush1.bf16.msra.mxu0 %v3391
        %3991 = vmatprep.subr.bf16.mxu0 0
        %3992 = vmatpush1.bf16.msra.mxu0 %v3392
        %3993 = vmatprep.mubr.bf16.mxu0 %v2125
        %3994 = vmatmul.mubr.bf16.gmra.mrb[0].mxu0 %v2123
        %v3995 = vpop.f32.mrb[0].mxu0
        %v3996 = vadd.f32 %v3956, %v3995
        %v3997 = vpop.f32.mrb[0].mxu0
        %v3998 = vpop.f32.mrb[0].mxu0
        %v3999 = vpop.f32.mrb[0].mxu0
        %4000 = vdwg.mxu0
        %4001 = vmatprep.subr.bf16.mxu0 0
        %4002 = vmatpush1.bf16.msra.mxu0 %v3393
        %4003 = vmatprep.subr.bf16.mxu0 0
        %4004 = vmatpush1.bf16.msra.mxu0 %v3394
        %4005 = vmatprep.subr.bf16.mxu0 0
        %4006 = vmatpush1.bf16.msra.mxu0 %v3395
        %4007 = vmatprep.subr.bf16.mxu0 0
        %4008 = vmatpush1.bf16.msra.mxu0 %v3396
        %4009 = vmatprep.subr.bf16.mxu0 0
        %4010 = vmatpush1.bf16.msra.mxu0 %v3397
        %4011 = vmatprep.subr.bf16.mxu0 0
        %4012 = vmatpush1.bf16.msra.mxu0 %v3398
        %4013 = vmatprep.subr.bf16.mxu0 0
        %4014 = vmatpush1.bf16.msra.mxu0 %v3399
        %4015 = vmatprep.subr.bf16.mxu0 0
        %4016 = vmatpush1.bf16.msra.mxu0 %v3400
        %4017 = vmatprep.subr.bf16.mxu0 0
        %4018 = vmatpush1.bf16.msra.mxu0 %v3401
        %4019 = vmatprep.subr.bf16.mxu0 0
        %4020 = vmatpush1.bf16.msra.mxu0 %v3402
        %4021 = vmatprep.subr.bf16.mxu0 0
        %4022 = vmatpush1.bf16.msra.mxu0 %v3403
        %4023 = vmatprep.subr.bf16.mxu0 0
        %4024 = vmatpush1.bf16.msra.mxu0 %v3404
        %4025 = vmatprep.subr.bf16.mxu0 0
        %4026 = vmatpush1.bf16.msra.mxu0 %v3405
        %4027 = vmatprep.subr.bf16.mxu0 0
        %4028 = vmatpush1.bf16.msra.mxu0 %v3406
        %4029 = vmatprep.subr.bf16.mxu0 0
        %4030 = vmatpush1.bf16.msra.mxu0 %v3407
        %4031 = vmatprep.subr.bf16.mxu0 0
        %4032 = vmatpush1.bf16.msra.mxu0 %v3408
        %4033 = vmatprep.mubr.bf16.mxu0 %v2163
        %4034 = vmatmul.mubr.bf16.gmra.mrb[0].mxu0 %v2149
        %v4035 = vpop.f32.mrb[0].mxu0
        %v4036 = vadd.f32 %v3996, %v4035
        %v4037 = vpop.f32.mrb[0].mxu0
        %v4038 = vpop.f32.mrb[0].mxu0
        %v4039 = vpop.f32.mrb[0].mxu0
        %4040 = vdwg.mxu0
        %4041 = vmatprep.subr.bf16.mxu0 0
        %4042 = vmatpush1.bf16.msra.mxu0 %v3409
        %4043 = vmatprep.subr.bf16.mxu0 0
        %4044 = vmatpush1.bf16.msra.mxu0 %v3410
        %4045 = vmatprep.subr.bf16.mxu0 0
        %4046 = vmatpush1.bf16.msra.mxu0 %v3411
        %4047 = vmatprep.subr.bf16.mxu0 0
        %4048 = vmatpush1.bf16.msra.mxu0 %v3412
        %4049 = vmatprep.subr.bf16.mxu0 0
        %4050 = vmatpush1.bf16.msra.mxu0 %v3413
        %4051 = vmatprep.subr.bf16.mxu0 0
        %4052 = vmatpush1.bf16.msra.mxu0 %v3414
        %4053 = vmatprep.subr.bf16.mxu0 0
        %4054 = vmatpush1.bf16.msra.mxu0 %v3415
        %4055 = vmatprep.subr.bf16.mxu0 0
        %4056 = vmatpush1.bf16.msra.mxu0 %v3416
        %4057 = vmatprep.subr.bf16.mxu0 0
        %4058 = vmatpush1.bf16.msra.mxu0 %v3417
        %4059 = vmatprep.subr.bf16.mxu0 0
        %4060 = vmatpush1.bf16.msra.mxu0 %v3418
        %4061 = vmatprep.subr.bf16.mxu0 0
        %4062 = vmatpush1.bf16.msra.mxu0 %v3419
        %4063 = vmatprep.subr.bf16.mxu0 0
        %4064 = vmatpush1.bf16.msra.mxu0 %v3420
        %4065 = vmatprep.subr.bf16.mxu0 0
        %4066 = vmatpush1.bf16.msra.mxu0 %v3421
        %4067 = vmatprep.subr.bf16.mxu0 0
        %4068 = vmatpush1.bf16.msra.mxu0 %v3422
        %4069 = vmatprep.subr.bf16.mxu0 0
        %4070 = vmatpush1.bf16.msra.mxu0 %v3423
        %4071 = vmatprep.subr.bf16.mxu0 0
        %4072 = vmatpush1.bf16.msra.mxu0 %v3424
        %4073 = vmatprep.mubr.bf16.mxu0 %v2173
        %4074 = vmatmul.mubr.bf16.gmra.mrb[0].mxu0 %v2171
        %v4075 = vpop.f32.mrb[0].mxu0
        %v4076 = vadd.f32 %v4036, %v4075
        %v4077 = vpop.f32.mrb[0].mxu0
        %v4078 = vpop.f32.mrb[0].mxu0
        %v4079 = vpop.f32.mrb[0].mxu0
        %4080 = vdwg.mxu0
        %4081 = vmatprep.subr.bf16.mxu0 0
        %4082 = vmatpush1.bf16.msra.mxu0 %v3425
        %4083 = vmatprep.subr.bf16.mxu0 0
        %4084 = vmatpush1.bf16.msra.mxu0 %v3426
        %4085 = vmatprep.subr.bf16.mxu0 0
        %4086 = vmatpush1.bf16.msra.mxu0 %v3427
        %4087 = vmatprep.subr.bf16.mxu0 0
        %4088 = vmatpush1.bf16.msra.mxu0 %v3428
        %4089 = vmatprep.subr.bf16.mxu0 0
        %4090 = vmatpush1.bf16.msra.mxu0 %v3429
        %4091 = vmatprep.subr.bf16.mxu0 0
        %4092 = vmatpush1.bf16.msra.mxu0 %v3430
        %4093 = vmatprep.subr.bf16.mxu0 0
        %4094 = vmatpush1.bf16.msra.mxu0 %v3431
        %4095 = vmatprep.subr.bf16.mxu0 0
        %4096 = vmatpush1.bf16.msra.mxu0 %v3432
        %4097 = vmatprep.subr.bf16.mxu0 0
        %4098 = vmatpush1.bf16.msra.mxu0 %v3433
        %4099 = vmatprep.subr.bf16.mxu0 0
        %4100 = vmatpush1.bf16.msra.mxu0 %v3434
        %4101 = vmatprep.subr.bf16.mxu0 0
        %4102 = vmatpush1.bf16.msra.mxu0 %v3435
        %4103 = vmatprep.subr.bf16.mxu0 0
        %4104 = vmatpush1.bf16.msra.mxu0 %v3436
        %4105 = vmatprep.subr.bf16.mxu0 0
        %4106 = vmatpush1.bf16.msra.mxu0 %v3437
        %4107 = vmatprep.subr.bf16.mxu0 0
        %4108 = vmatpush1.bf16.msra.mxu0 %v3438
        %4109 = vmatprep.subr.bf16.mxu0 0
        %4110 = vmatpush1.bf16.msra.mxu0 %v3439
        %4111 = vmatprep.subr.bf16.mxu0 0
        %4112 = vmatpush1.bf16.msra.mxu0 %v3440
        %4113 = vmatprep.mubr.bf16.mxu0 %v2170
        %4114 = vmatmul.mubr.bf16.gmra.mrb[0].mxu0 %v2156
        %v4115 = vpop.f32.mrb[0].mxu0
        %v4116 = vadd.f32 %v4076, %v4115
        %v4117 = vpop.f32.mrb[0].mxu0
        %v4118 = vpop.f32.mrb[0].mxu0
        %v4119 = vpop.f32.mrb[0].mxu0
        %4120 = vdwg.mxu0
        %4121 = vmatprep.subr.bf16.mxu0 0
        %4122 = vmatpush1.bf16.msra.mxu0 %v3441
        %4123 = vmatprep.subr.bf16.mxu0 0
        %4124 = vmatpush1.bf16.msra.mxu0 %v3442
        %4125 = vmatprep.subr.bf16.mxu0 0
        %4126 = vmatpush1.bf16.msra.mxu0 %v3443
        %4127 = vmatprep.subr.bf16.mxu0 0
        %4128 = vmatpush1.bf16.msra.mxu0 %v3444
        %4129 = vmatprep.subr.bf16.mxu0 0
        %4130 = vmatpush1.bf16.msra.mxu0 %v3445
        %4131 = vmatprep.subr.bf16.mxu0 0
        %4132 = vmatpush1.bf16.msra.mxu0 %v3446
        %4133 = vmatprep.subr.bf16.mxu0 0
        %4134 = vmatpush1.bf16.msra.mxu0 %v3447
        %4135 = vmatprep.subr.bf16.mxu0 0
        %4136 = vmatpush1.bf16.msra.mxu0 %v3448
        %4137 = vmatprep.subr.bf16.mxu0 0
        %4138 = vmatpush1.bf16.msra.mxu0 %v3449
        %4139 = vmatprep.subr.bf16.mxu0 0
        %4140 = vmatpush1.bf16.msra.mxu0 %v3450
        %4141 = vmatprep.subr.bf16.mxu0 0
        %4142 = vmatpush1.bf16.msra.mxu0 %v3451
        %4143 = vmatprep.subr.bf16.mxu0 0
        %4144 = vmatpush1.bf16.msra.mxu0 %v3452
        %4145 = vmatprep.subr.bf16.mxu0 0
        %4146 = vmatpush1.bf16.msra.mxu0 %v3453
        %4147 = vmatprep.subr.bf16.mxu0 0
        %4148 = vmatpush1.bf16.msra.mxu0 %v3454
        %4149 = vmatprep.subr.bf16.mxu0 0
        %4150 = vmatpush1.bf16.msra.mxu0 %v3455
        %4151 = vmatprep.subr.bf16.mxu0 0
        %4152 = vmatpush1.bf16.msra.mxu0 %v3456
        %4153 = vmatprep.mubr.bf16.mxu0 %v2174
        %4154 = vmatmul.mubr.bf16.gmra.mrb[0].mxu0 %v2172
        %v4155 = vpop.f32.mrb[0].mxu0
        %v4156 = vadd.f32 %v4116, %v4155
        %v4157 = vpop.f32.mrb[0].mxu0
        %v4158 = vpop.f32.mrb[0].mxu0
        %v4159 = vpop.f32.mrb[0].mxu0
        %4160 = vdwg.mxu0
        %4161 = vmatprep.subr.bf16.mxu0 0
        %4162 = vmatpush1.bf16.msra.mxu0 %v3457
        %4163 = vmatprep.subr.bf16.mxu0 0
        %4164 = vmatpush1.bf16.msra.mxu0 %v3458
        %4165 = vmatprep.subr.bf16.mxu0 0
        %4166 = vmatpush1.bf16.msra.mxu0 %v3459
        %4167 = vmatprep.subr.bf16.mxu0 0
        %4168 = vmatpush1.bf16.msra.mxu0 %v3460
        %4169 = vmatprep.subr.bf16.mxu0 0
        %4170 = vmatpush1.bf16.msra.mxu0 %v3461
        %4171 = vmatprep.subr.bf16.mxu0 0
        %4172 = vmatpush1.bf16.msra.mxu0 %v3462
        %4173 = vmatprep.subr.bf16.mxu0 0
        %4174 = vmatpush1.bf16.msra.mxu0 %v3463
        %4175 = vmatprep.subr.bf16.mxu0 0
        %4176 = vmatpush1.bf16.msra.mxu0 %v3464
        %4177 = vmatprep.subr.bf16.mxu0 0
        %4178 = vmatpush1.bf16.msra.mxu0 %v3465
        %4179 = vmatprep.subr.bf16.mxu0 0
        %4180 = vmatpush1.bf16.msra.mxu0 %v3466
        %4181 = vmatprep.subr.bf16.mxu0 0
        %4182 = vmatpush1.bf16.msra.mxu0 %v3467
        %4183 = vmatprep.subr.bf16.mxu0 0
        %4184 = vmatpush1.bf16.msra.mxu0 %v3468
        %4185 = vmatprep.subr.bf16.mxu0 0
        %4186 = vmatpush1.bf16.msra.mxu0 %v3469
        %4187 = vmatprep.subr.bf16.mxu0 0
        %4188 = vmatpush1.bf16.msra.mxu0 %v3470
        %4189 = vmatprep.subr.bf16.mxu0 0
        %4190 = vmatpush1.bf16.msra.mxu0 %v3471
        %4191 = vmatprep.subr.bf16.mxu0 0
        %4192 = vmatpush1.bf16.msra.mxu0 %v3472
        %4193 = vmatprep.mubr.bf16.mxu0 %v2212
        %4194 = vmatmul.mubr.bf16.gmra.mrb[0].mxu0 %v2198
        %v4195 = vpop.f32.mrb[0].mxu0
        %v4196 = vadd.f32 %v4156, %v4195
        %v4197 = vpop.f32.mrb[0].mxu0
        %v4198 = vpop.f32.mrb[0].mxu0
        %v4199 = vpop.f32.mrb[0].mxu0
        %4200 = vdwg.mxu0
        %4201 = vmatprep.subr.bf16.mxu0 0
        %4202 = vmatpush1.bf16.msra.mxu0 %v3473
        %4203 = vmatprep.subr.bf16.mxu0 0
        %4204 = vmatpush1.bf16.msra.mxu0 %v3474
        %4205 = vmatprep.subr.bf16.mxu0 0
        %4206 = vmatpush1.bf16.msra.mxu0 %v3475
        %4207 = vmatprep.subr.bf16.mxu0 0
        %4208 = vmatpush1.bf16.msra.mxu0 %v3476
        %4209 = vmatprep.subr.bf16.mxu0 0
        %4210 = vmatpush1.bf16.msra.mxu0 %v3477
        %4211 = vmatprep.subr.bf16.mxu0 0
        %4212 = vmatpush1.bf16.msra.mxu0 %v3478
        %4213 = vmatprep.subr.bf16.mxu0 0
        %4214 = vmatpush1.bf16.msra.mxu0 %v3479
        %4215 = vmatprep.subr.bf16.mxu0 0
        %4216 = vmatpush1.bf16.msra.mxu0 %v3480
        %4217 = vmatprep.subr.bf16.mxu0 0
        %4218 = vmatpush1.bf16.msra.mxu0 %v3481
        %4219 = vmatprep.subr.bf16.mxu0 0
        %4220 = vmatpush1.bf16.msra.mxu0 %v3482
        %4221 = vmatprep.subr.bf16.mxu0 0
        %4222 = vmatpush1.bf16.msra.mxu0 %v3483
        %4223 = vmatprep.subr.bf16.mxu0 0
        %4224 = vmatpush1.bf16.msra.mxu0 %v3484
        %4225 = vmatprep.subr.bf16.mxu0 0
        %4226 = vmatpush1.bf16.msra.mxu0 %v3485
        %4227 = vmatprep.subr.bf16.mxu0 0
        %4228 = vmatpush1.bf16.msra.mxu0 %v3486
        %4229 = vmatprep.subr.bf16.mxu0 0
        %4230 = vmatpush1.bf16.msra.mxu0 %v3487
        %4231 = vmatprep.subr.bf16.mxu0 0
        %4232 = vmatpush1.bf16.msra.mxu0 %v3488
        %4233 = vmatprep.mubr.bf16.mxu0 %v2222
        %4234 = vmatmul.mubr.bf16.gmra.mrb[0].mxu0 %v2220
        %v4235 = vpop.f32.mrb[0].mxu0
        %v4236 = vadd.f32 %v4196, %v4235
        %v4237 = vpop.f32.mrb[0].mxu0
        %v4238 = vpop.f32.mrb[0].mxu0
        %v4239 = vpop.f32.mrb[0].mxu0
        %4240 = vdwg.mxu0
        %4241 = vmatprep.subr.bf16.mxu0 0
        %4242 = vmatpush1.bf16.msra.mxu0 %v3489
        %4243 = vmatprep.subr.bf16.mxu0 0
        %4244 = vmatpush1.bf16.msra.mxu0 %v3490
        %4245 = vmatprep.subr.bf16.mxu0 0
        %4246 = vmatpush1.bf16.msra.mxu0 %v3491
        %4247 = vmatprep.subr.bf16.mxu0 0
        %4248 = vmatpush1.bf16.msra.mxu0 %v3492
        %4249 = vmatprep.subr.bf16.mxu0 0
        %4250 = vmatpush1.bf16.msra.mxu0 %v3493
        %4251 = vmatprep.subr.bf16.mxu0 0
        %4252 = vmatpush1.bf16.msra.mxu0 %v3494
        %4253 = vmatprep.subr.bf16.mxu0 0
        %4254 = vmatpush1.bf16.msra.mxu0 %v3495
        %4255 = vmatprep.subr.bf16.mxu0 0
        %4256 = vmatpush1.bf16.msra.mxu0 %v3496
        %4257 = vmatprep.subr.bf16.mxu0 0
        %4258 = vmatpush1.bf16.msra.mxu0 %v3497
        %4259 = vmatprep.subr.bf16.mxu0 0
        %4260 = vmatpush1.bf16.msra.mxu0 %v3498
        %4261 = vmatprep.subr.bf16.mxu0 0
        %4262 = vmatpush1.bf16.msra.mxu0 %v3499
        %4263 = vmatprep.subr.bf16.mxu0 0
        %4264 = vmatpush1.bf16.msra.mxu0 %v3500
        %4265 = vmatprep.subr.bf16.mxu0 0
        %4266 = vmatpush1.bf16.msra.mxu0 %v3501
        %4267 = vmatprep.subr.bf16.mxu0 0
        %4268 = vmatpush1.bf16.msra.mxu0 %v3502
        %4269 = vmatprep.subr.bf16.mxu0 0
        %4270 = vmatpush1.bf16.msra.mxu0 %v3503
        %4271 = vmatprep.subr.bf16.mxu0 0
        %4272 = vmatpush1.bf16.msra.mxu0 %v3504
        %4273 = vmatprep.mubr.bf16.mxu0 %v2219
        %4274 = vmatmul.mubr.bf16.gmra.mrb[0].mxu0 %v2205
        %v4275 = vpop.f32.mrb[0].mxu0
        %v4276 = vadd.f32 %v4236, %v4275
        %v4277 = vpop.f32.mrb[0].mxu0
        %v4278 = vpop.f32.mrb[0].mxu0
        %v4279 = vpop.f32.mrb[0].mxu0
        %4280 = vdwg.mxu0
        %4281 = vmatprep.subr.bf16.mxu0 0
        %4282 = vmatpush1.bf16.msra.mxu0 %v3505
        %4283 = vmatprep.subr.bf16.mxu0 0
        %4284 = vmatpush1.bf16.msra.mxu0 %v3506
        %4285 = vmatprep.subr.bf16.mxu0 0
        %4286 = vmatpush1.bf16.msra.mxu0 %v3507
        %4287 = vmatprep.subr.bf16.mxu0 0
        %4288 = vmatpush1.bf16.msra.mxu0 %v3508
        %4289 = vmatprep.subr.bf16.mxu0 0
        %4290 = vmatpush1.bf16.msra.mxu0 %v3509
        %4291 = vmatprep.subr.bf16.mxu0 0
        %4292 = vmatpush1.bf16.msra.mxu0 %v3510
        %4293 = vmatprep.subr.bf16.mxu0 0
        %4294 = vmatpush1.bf16.msra.mxu0 %v3511
        %4295 = vmatprep.subr.bf16.mxu0 0
        %4296 = vmatpush1.bf16.msra.mxu0 %v3512
        %4297 = vmatprep.subr.bf16.mxu0 0
        %4298 = vmatpush1.bf16.msra.mxu0 %v3513
        %4299 = vmatprep.subr.bf16.mxu0 0
        %4300 = vmatpush1.bf16.msra.mxu0 %v3514
        %4301 = vmatprep.subr.bf16.mxu0 0
        %4302 = vmatpush1.bf16.msra.mxu0 %v3515
        %4303 = vmatprep.subr.bf16.mxu0 0
        %4304 = vmatpush1.bf16.msra.mxu0 %v3516
        %4305 = vmatprep.subr.bf16.mxu0 0
        %4306 = vmatpush1.bf16.msra.mxu0 %v3517
        %4307 = vmatprep.subr.bf16.mxu0 0
        %4308 = vmatpush1.bf16.msra.mxu0 %v3518
        %4309 = vmatprep.subr.bf16.mxu0 0
        %4310 = vmatpush1.bf16.msra.mxu0 %v3519
        %4311 = vmatprep.subr.bf16.mxu0 0
        %4312 = vmatpush1.bf16.msra.mxu0 %v3520
        %4313 = vmatprep.mubr.bf16.mxu0 %v2223
        %4314 = vmatmul.mubr.bf16.gmra.mrb[0].mxu0 %v2221
        %v4315 = vpop.f32.mrb[0].mxu0
        %v4316 = vadd.f32 %v4276, %v4315
        %v4317 = vpop.f32.mrb[0].mxu0
        %v4318 = vpop.f32.mrb[0].mxu0
        %v4319 = vpop.f32.mrb[0].mxu0
        %4320 = vdwg.mxu0
        %4321 = vmatprep.subr.bf16.mxu0 0
        %4322 = vmatpush1.bf16.msra.mxu0 %v3521
        %4323 = vmatprep.subr.bf16.mxu0 0
        %4324 = vmatpush1.bf16.msra.mxu0 %v3522
        %4325 = vmatprep.subr.bf16.mxu0 0
        %4326 = vmatpush1.bf16.msra.mxu0 %v3523
        %4327 = vmatprep.subr.bf16.mxu0 0
        %4328 = vmatpush1.bf16.msra.mxu0 %v3524
        %4329 = vmatprep.subr.bf16.mxu0 0
        %4330 = vmatpush1.bf16.msra.mxu0 %v3525
        %4331 = vmatprep.subr.bf16.mxu0 0
        %4332 = vmatpush1.bf16.msra.mxu0 %v3526
        %4333 = vmatprep.subr.bf16.mxu0 0
        %4334 = vmatpush1.bf16.msra.mxu0 %v3527
        %4335 = vmatprep.subr.bf16.mxu0 0
        %4336 = vmatpush1.bf16.msra.mxu0 %v3528
        %4337 = vmatprep.subr.bf16.mxu0 0
        %4338 = vmatpush1.bf16.msra.mxu0 %v3529
        %4339 = vmatprep.subr.bf16.mxu0 0
        %4340 = vmatpush1.bf16.msra.mxu0 %v3530
        %4341 = vmatprep.subr.bf16.mxu0 0
        %4342 = vmatpush1.bf16.msra.mxu0 %v3531
        %4343 = vmatprep.subr.bf16.mxu0 0
        %4344 = vmatpush1.bf16.msra.mxu0 %v3532
        %4345 = vmatprep.subr.bf16.mxu0 0
        %4346 = vmatpush1.bf16.msra.mxu0 %v3533
        %4347 = vmatprep.subr.bf16.mxu0 0
        %4348 = vmatpush1.bf16.msra.mxu0 %v3534
        %4349 = vmatprep.subr.bf16.mxu0 0
        %4350 = vmatpush1.bf16.msra.mxu0 %v3535
        %4351 = vmatprep.subr.bf16.mxu0 0
        %4352 = vmatpush1.bf16.msra.mxu0 %v3536
        %4353 = vmatprep.mubr.bf16.mxu0 %v2261
        %4354 = vmatmul.mubr.bf16.gmra.mrb[0].mxu0 %v2247
        %v4355 = vpop.f32.mrb[0].mxu0
        %v4356 = vadd.f32 %v4316, %v4355
        %v4357 = vpop.f32.mrb[0].mxu0
        %v4358 = vpop.f32.mrb[0].mxu0
        %v4359 = vpop.f32.mrb[0].mxu0
        %4360 = vdwg.mxu0
        %4361 = vmatprep.subr.bf16.mxu0 0
        %4362 = vmatpush1.bf16.msra.mxu0 %v3537
        %4363 = vmatprep.subr.bf16.mxu0 0
        %4364 = vmatpush1.bf16.msra.mxu0 %v3538
        %4365 = vmatprep.subr.bf16.mxu0 0
        %4366 = vmatpush1.bf16.msra.mxu0 %v3539
        %4367 = vmatprep.subr.bf16.mxu0 0
        %4368 = vmatpush1.bf16.msra.mxu0 %v3540
        %4369 = vmatprep.subr.bf16.mxu0 0
        %4370 = vmatpush1.bf16.msra.mxu0 %v3541
        %4371 = vmatprep.subr.bf16.mxu0 0
        %4372 = vmatpush1.bf16.msra.mxu0 %v3542
        %4373 = vmatprep.subr.bf16.mxu0 0
        %4374 = vmatpush1.bf16.msra.mxu0 %v3543
        %4375 = vmatprep.subr.bf16.mxu0 0
        %4376 = vmatpush1.bf16.msra.mxu0 %v3544
        %4377 = vmatprep.subr.bf16.mxu0 0
        %4378 = vmatpush1.bf16.msra.mxu0 %v3545
        %4379 = vmatprep.subr.bf16.mxu0 0
        %4380 = vmatpush1.bf16.msra.mxu0 %v3546
        %4381 = vmatprep.subr.bf16.mxu0 0
        %4382 = vmatpush1.bf16.msra.mxu0 %v3547
        %4383 = vmatprep.subr.bf16.mxu0 0
        %4384 = vmatpush1.bf16.msra.mxu0 %v3548
        %4385 = vmatprep.subr.bf16.mxu0 0
        %4386 = vmatpush1.bf16.msra.mxu0 %v3549
        %4387 = vmatprep.subr.bf16.mxu0 0
        %4388 = vmatpush1.bf16.msra.mxu0 %v3550
        %4389 = vmatprep.subr.bf16.mxu0 0
        %4390 = vmatpush1.bf16.msra.mxu0 %v3551
        %4391 = vmatprep.subr.bf16.mxu0 0
        %4392 = vmatpush1.bf16.msra.mxu0 %v3552
        %4393 = vmatprep.mubr.bf16.mxu0 %v2271
        %4394 = vmatmul.mubr.bf16.gmra.mrb[0].mxu0 %v2269
        %v4395 = vpop.f32.mrb[0].mxu0
        %v4396 = vadd.f32 %v4356, %v4395
        %v4397 = vpop.f32.mrb[0].mxu0
        %v4398 = vpop.f32.mrb[0].mxu0
        %v4399 = vpop.f32.mrb[0].mxu0
        %4400 = vdwg.mxu0
        %4401 = vmatprep.subr.bf16.mxu0 0
        %4402 = vmatpush1.bf16.msra.mxu0 %v3553
        %4403 = vmatprep.subr.bf16.mxu0 0
        %4404 = vmatpush1.bf16.msra.mxu0 %v3554
        %4405 = vmatprep.subr.bf16.mxu0 0
        %4406 = vmatpush1.bf16.msra.mxu0 %v3555
        %4407 = vmatprep.subr.bf16.mxu0 0
        %4408 = vmatpush1.bf16.msra.mxu0 %v3556
        %4409 = vmatprep.subr.bf16.mxu0 0
        %4410 = vmatpush1.bf16.msra.mxu0 %v3557
        %4411 = vmatprep.subr.bf16.mxu0 0
        %4412 = vmatpush1.bf16.msra.mxu0 %v3558
        %4413 = vmatprep.subr.bf16.mxu0 0
        %4414 = vmatpush1.bf16.msra.mxu0 %v3559
        %4415 = vmatprep.subr.bf16.mxu0 0
        %4416 = vmatpush1.bf16.msra.mxu0 %v3560
        %4417 = vmatprep.subr.bf16.mxu0 0
        %4418 = vmatpush1.bf16.msra.mxu0 %v3561
        %4419 = vmatprep.subr.bf16.mxu0 0
        %4420 = vmatpush1.bf16.msra.mxu0 %v3562
        %4421 = vmatprep.subr.bf16.mxu0 0
        %4422 = vmatpush1.bf16.msra.mxu0 %v3563
        %4423 = vmatprep.subr.bf16.mxu0 0
        %4424 = vmatpush1.bf16.msra.mxu0 %v3564
        %4425 = vmatprep.subr.bf16.mxu0 0
        %4426 = vmatpush1.bf16.msra.mxu0 %v3565
        %4427 = vmatprep.subr.bf16.mxu0 0
        %4428 = vmatpush1.bf16.msra.mxu0 %v3566
        %4429 = vmatprep.subr.bf16.mxu0 0
        %4430 = vmatpush1.bf16.msra.mxu0 %v3567
        %4431 = vmatprep.subr.bf16.mxu0 0
        %4432 = vmatpush1.bf16.msra.mxu0 %v3568
        %4433 = vmatprep.mubr.bf16.mxu0 %v2268
        %4434 = vmatmul.mubr.bf16.gmra.mrb[0].mxu0 %v2254
        %v4435 = vpop.f32.mrb[0].mxu0
        %v4436 = vadd.f32 %v4396, %v4435
        %v4437 = vpop.f32.mrb[0].mxu0
        %v4438 = vpop.f32.mrb[0].mxu0
        %v4439 = vpop.f32.mrb[0].mxu0
        %4440 = vdwg.mxu0
        %4441 = vmatprep.subr.bf16.mxu0 0
        %4442 = vmatpush1.bf16.msra.mxu0 %v3569
        %4443 = vmatprep.subr.bf16.mxu0 0
        %4444 = vmatpush1.bf16.msra.mxu0 %v3570
        %4445 = vmatprep.subr.bf16.mxu0 0
        %4446 = vmatpush1.bf16.msra.mxu0 %v3571
        %4447 = vmatprep.subr.bf16.mxu0 0
        %4448 = vmatpush1.bf16.msra.mxu0 %v3572
        %4449 = vmatprep.subr.bf16.mxu0 0
        %4450 = vmatpush1.bf16.msra.mxu0 %v3573
        %4451 = vmatprep.subr.bf16.mxu0 0
        %4452 = vmatpush1.bf16.msra.mxu0 %v3574
        %4453 = vmatprep.subr.bf16.mxu0 0
        %4454 = vmatpush1.bf16.msra.mxu0 %v3575
        %4455 = vmatprep.subr.bf16.mxu0 0
        %4456 = vmatpush1.bf16.msra.mxu0 %v3576
        %4457 = vmatprep.subr.bf16.mxu0 0
        %4458 = vmatpush1.bf16.msra.mxu0 %v3577
        %4459 = vmatprep.subr.bf16.mxu0 0
        %4460 = vmatpush1.bf16.msra.mxu0 %v3578
        %4461 = vmatprep.subr.bf16.mxu0 0
        %4462 = vmatpush1.bf16.msra.mxu0 %v3579
        %4463 = vmatprep.subr.bf16.mxu0 0
        %4464 = vmatpush1.bf16.msra.mxu0 %v3580
        %4465 = vmatprep.subr.bf16.mxu0 0
        %4466 = vmatpush1.bf16.msra.mxu0 %v3581
        %4467 = vmatprep.subr.bf16.mxu0 0
        %4468 = vmatpush1.bf16.msra.mxu0 %v3582
        %4469 = vmatprep.subr.bf16.mxu0 0
        %4470 = vmatpush1.bf16.msra.mxu0 %v3583
        %4471 = vmatprep.subr.bf16.mxu0 0
        %4472 = vmatpush1.bf16.msra.mxu0 %v3584
        %4473 = vmatprep.mubr.bf16.mxu0 %v2272
        %4474 = vmatmul.mubr.bf16.gmra.mrb[0].mxu0 %v2270
        %v4475 = vpop.f32.mrb[0].mxu0
        %v4476 = vadd.f32 %v4436, %v4475
        %v4477 = vpop.f32.mrb[0].mxu0
        %v4478 = vpop.f32.mrb[0].mxu0
        %v4479 = vpop.f32.mrb[0].mxu0
        %4480 = vdwg.mxu0
        %v4481 = vadd.f32 %v1552, %v4476
        %v4482 = vld [vmem:[%s14] sm:$0x1]
        %v4484 = vlaneseq
        %v4485 = vshrl.u32 %v4484, 7
        %v4486 = vsub.s32 0, %v4485
        %v4487 = vrot.slane %v4482, %v4486
        %v4489 = vadd.f32 %v4481, %v4487
        %vm4490 = vcmask 33792
        %4491 = vst.msk [vmem:[%s589] sm:$0x3] %vm4490, %v4489
        %p4492 = scmp.eq.s32.totalorder %s32, 3
        // Predicated region
        $region85: #{decoder_forward.1} parent=79 // pred_check
          %p4493 = pneg %p4492
        $region86: #{decoder_forward.1} parent=79 // pred_check_branch
          %4495 = sbr.rel (%p4493) target = $region88
        $region87: #{decoder_forward.1} parent=79 // pred_region
          %v4496 = vld [vmem:[#allocation2] sm:$0x3]
          %v4497 = vld [vmem:[#allocation2 + $0x2] sm:$0x3]
          %4498 = vst.msk [vmem:[#allocation4] sm:$0x3] %vm927, %v4496
          %4499 = vst.msk [vmem:[#allocation4 + $0x2] sm:$0x3] %vm927, %v4497
          %v4500 = vld [vmem:[#allocation3] sm:$0x3]
          %v4501 = vld [vmem:[#allocation3 + $0x2] sm:$0x3]
          %4502 = vst.msk [vmem:[#allocation6] sm:$0x3] %vm927, %v4500
          %4503 = vst.msk [vmem:[#allocation6 + $0x2] sm:$0x3] %vm927, %v4501
        $region88: #{decoder_forward.1} parent=79 // pred_fallthru
          _
        %p4504 = scmp.lt.s32.totalorder %s32, 3
        %s4505 = scalar_select %p4504, %s32, 3
        %s4506 = smul.addr %s4505, 2
        %s4507 = scalar_lea.vmem %s15, %s4506
        %p4508 = scmp.lt.s32.totalorder %s32, 3
        %s4509 = scalar_select %p4508, %s32, 3
        %s4510 = scalar_lea.vmem %s18, %s4509
        // Predicated region
        $region89: #{decoder_forward.1} parent=79 // pred_check
          %p4511 = pneg %p375
        $region90: #{decoder_forward.1} parent=79 // pred_check_branch
          %4513 = sbr.rel (%p4511) target = $region92
        $region91: #{decoder_forward.1} parent=79 // pred_region
          _
        $region92: #{decoder_forward.1} parent=79 // pred_fallthru
          _
        // Predicated region
        $region93: #{decoder_forward.1} parent=79 // pred_check
          %p4514 = pneg %p396
        $region94: #{decoder_forward.1} parent=79 // pred_check_branch
          %4516 = sbr.rel (%p4514) target = $region96
        $region95: #{decoder_forward.1} parent=79 // pred_region
          %s4518 = ssub.s32 64, 64
          %4519 = vsyncadd [#allocation5], %s4518
          %s4520 = sshll.u32 [#allocation4], 4
          %s4521 = int_to_ptr.vmem [resolvable:$true] %s4520
          %4526 = dma.vmem_to_hbm [thread:$0]  %s4521, 64, %s16, [#allocation5], 32, 32, 2
        $region96: #{decoder_forward.1} parent=79 // pred_fallthru
          _
        // Predicated region
        $region97: #{decoder_forward.1} parent=79 // pred_check
          %p4527 = pneg %p417
        $region98: #{decoder_forward.1} parent=79 // pred_check_branch
          %4529 = sbr.rel (%p4527) target = $region100
        $region99: #{decoder_forward.1} parent=79 // pred_region
          %s4531 = ssub.s32 64, 64
          %4532 = vsyncadd [#allocation7], %s4531
          %s4533 = sshll.u32 [#allocation6], 4
          %s4534 = int_to_ptr.vmem [resolvable:$true] %s4533
          %4539 = dma.vmem_to_hbm [thread:$0]  %s4534, 64, %s17, [#allocation7], 32, 32, 2
        $region100: #{decoder_forward.1} parent=79 // pred_fallthru
          _
        // Predicated region
        $region101: #{decoder_forward.1} parent=79 // pred_check
          %p4540 = pneg %p443
        $region102: #{decoder_forward.1} parent=79 // pred_check_branch
          %4542 = sbr.rel (%p4540) target = $region104
        $region103: #{decoder_forward.1} parent=79 // pred_region
          _
        $region104: #{decoder_forward.1} parent=79 // pred_fallthru
          _
        // Predicated region
        $region105: #{decoder_forward.1} parent=79 // pred_check
          %p4543 = pneg %p396
        $region106: #{decoder_forward.1} parent=79 // pred_check_branch
          %4545 = sbr.rel (%p4543) target = $region108
        $region107: #{decoder_forward.1} parent=79 // pred_region
          %4546 = dma.done [#allocation5], 64
        $region108: #{decoder_forward.1} parent=79 // pred_fallthru
          _
        // Predicated region
        $region109: #{decoder_forward.1} parent=79 // pred_check
          %p4547 = pneg %p417
        $region110: #{decoder_forward.1} parent=79 // pred_check_branch
          %4549 = sbr.rel (%p4547) target = $region112
        $region111: #{decoder_forward.1} parent=79 // pred_region
          %4550 = dma.done [#allocation7], 64
        $region112: #{decoder_forward.1} parent=79 // pred_fallthru
          _
      $region80: #{decoder_forward.1} parent=5 // pred_fallthru
        _
      %p4551 = scmp.le.s32.totalorder 2, %s27
      // Predicated region
      $region113: #{decoder_forward.1} parent=5 // pred_check
        %p4552 = pneg %p4551
      $region114: #{decoder_forward.1} parent=5 // pred_check_branch
        %4554 = sbr.rel (%p4552) target = $region116
      $region115: #{decoder_forward.1} parent=5 // pred_region
        %s4555 = ssub.s32 %s27, 2
        // Predicated region
        $region117: #{decoder_forward.1} parent=115 // pred_check
          %p4556 = pneg %p381
        $region118: #{decoder_forward.1} parent=115 // pred_check_branch
          %4558 = sbr.rel (%p4556) target = $region120
        $region119: #{decoder_forward.1} parent=115 // pred_region
          %p4559 = scmp.lt.s32.totalorder %s33, 3
          %s4560 = scalar_select %p4559, %s33, 3
          %s4561 = smul.addr %s4560, 2
          %s4562 = scalar_lea.vmem %s15, %s4561
        $region120: #{decoder_forward.1} parent=115 // pred_fallthru
          _
        // Predicated region
        $region121: #{decoder_forward.1} parent=115 // pred_check
          %p4563 = pneg %p449
        $region122: #{decoder_forward.1} parent=115 // pred_check_branch
          %4565 = sbr.rel (%p4563) target = $region124
        $region123: #{decoder_forward.1} parent=115 // pred_region
          %p4566 = scmp.lt.s32.totalorder %s33, 3
          %s4567 = scalar_select %p4566, %s33, 3
          %s4568 = scalar_lea.vmem %s18, %s4567
        $region124: #{decoder_forward.1} parent=115 // pred_fallthru
          _
      $region116: #{decoder_forward.1} parent=5 // pred_fallthru
        _
    $region6: #{decoder_forward.1} parent=1 // loop_footer
      %s31 = sadd.s32 1, %s27
    $region7: #{decoder_forward.1} parent=1 // loop_footer_branch
      %26 = sbr.rel target = $region3
    $region8: #{decoder_forward.1} parent=1 // loop_exit
      _
    %4569 = vsyncpa [#allocation5], 1
    %s4570 = scalar_lea.sflag [#allocation5], 1
    %4571 = vsyncpa %s4570, 1
    %4572 = vsyncpa [#allocation7], 1

</llo_original>
